<compile_context>
chip_gen: v7x
topology: tpu7x:2x2x1
jax: 0.10.0
libtpu: 0.0.40
codegen_flags: <defaults>
</compile_context>

<pallas_src>
import functools

import jax
import jax.numpy as jnp
from jax import lax
from jax.experimental import pallas as pl
from jax.experimental.pallas import tpu as pltpu


# ----------------------------------------------------------------------------
# Pallas kernel: separable bilinear grid-resample (+ optional photometric aug)
# ----------------------------------------------------------------------------
def _aug_kernel(params_ref,
                l0_ref, l1_ref, l2_ref, r0_ref, r1_ref, r2_ref,
                wy_ref, wxt_ref,
                ol0_ref, ol1_ref, ol2_ref, or0_ref, or1_ref, or2_ref,
                rows_ref,
                *, Hr, Wr, ct, photometric):
    b = pl.program_id(0)       # batch index            ("parallel")
    ci = pl.program_id(1)      # channel-tile index     ("parallel")

    wy = wy_ref[0]             # (Hr, H)  bf16
    wxt = wxt_ref[0]           # (W, Wr)  bf16

    in_refs = (l0_ref, l1_ref, l2_ref, r0_ref, r1_ref, r2_ref)
    out_refs = (ol0_ref, ol1_ref, ol2_ref, or0_ref, or1_ref, or2_ref)
    n_ch = 6 * ct

    # Row (Wy) pass first (downsampling H -> Hr shrinks the intermediate).
    # Each channel's result goes straight into the shared bf16 scratch: no f32
    # concatenate, no separate full-tile cast pass.  The bf16 cast of the image
    # happens here, right before the matmul (inputs stay f32 in HBM).
    for i, ref in enumerate(in_refs):
        for c in range(ct):
            row = jnp.dot(wy, ref[0, c].astype(jnp.bfloat16),
                          preferred_element_type=jnp.float32)        # (Hr, W)
            rows_ref[pl.ds((i * ct + c) * Hr, Hr), :] = row.astype(jnp.bfloat16)

    # Column (WxT) pass fused across all six images & channels: one big MXU
    # matmul with M = 6*ct*Hr.
    o = jnp.dot(rows_ref[...], wxt, preferred_element_type=jnp.float32)
    o = o.reshape(n_ch, Hr, Wr)                                       # f32

    def _store(vals):
        for i, oref in enumerate(out_refs):
            oref[0] = vals[i * ct:(i + 1) * ct]                       # (ct,Hr,Wr)

    if photometric:
        gamma = params_ref[b, 0]
        sr = params_ref[b, 1]      # brightness pre-multiplied (wrapper side)
        sg = params_ref[b, 2]
        sb = params_ref[b, 3]
        flag = params_ref[b, 4]

        @pl.when(flag > 0.5)
        def _photo():
            # RGB-shift select on a tiny (n_ch,1,1) vector, then broadcast.
            g = lax.broadcasted_iota(jnp.int32, (n_ch, 1, 1), 0)
            cidx = (ci * ct + g % ct) % 3
            shift = jnp.where(cidx == 0, sr, jnp.where(cidx == 1, sg, sb))
            powed = jnp.where(o > 0.0,
                              jnp.exp(gamma * jnp.log(jnp.maximum(o, 1e-30))),
                              0.0)
            _store(jnp.clip(powed * shift, 0.0, 1.0))

        @pl.when(flag <= 0.5)
        def _plain():
            _store(o)
    else:
        _store(o)


# ----------------------------------------------------------------------------
# VMEM sizing (generation aware) and channel-tile auto-derivation
# ----------------------------------------------------------------------------
def _pad(n, m):
    return ((n + m - 1) // m) * m


def _blk_bytes(rows, cols, itemsize):
    # VMEM blocks pad the minor dim to 128 lanes, the 2nd-minor to 8 sublanes.
    return _pad(rows, 8) * _pad(cols, 128) * itemsize


def _vmem_capacity_bytes():
    try:
        info = pltpu.get_tpu_info()
        cap = getattr(info, "vmem_capacity_bytes", None)
        if cap:
            return int(cap)
    except Exception:
        pass
    return 64 * 1024 * 1024        # conservative (v7x-sized) fallback


def _pick_channel_tile(C, H, W, Hr, Wr):
    """Largest per-image channel tile whose per-step working set fits a
    generation-aware VMEM budget (bigger ct -> fewer grid steps, a larger fused
    column matmul and better DMA amortisation)."""
    cap = _vmem_capacity_bytes()
    if cap <= 64 * 1024 * 1024:                 # v7x: 64 MiB per TensorCore
        budget, limit = 40 << 20, 48 << 20
    else:                                       # v5e / v6e: 128 MiB
        budget, limit = 88 << 20, 100 << 20
    weights = 2 * (_blk_bytes(Hr, H, 2) + _blk_bytes(W, Wr, 2))     # bf16, x2 buf
    for ct in sorted((d for d in range(1, C + 1) if C % d == 0), reverse=True):
        in_b = 6 * 2 * ct * _blk_bytes(H, W, 4)        # f32 inputs, 2 buffers
        out_b = 6 * 2 * ct * _blk_bytes(Hr, Wr, 4)     # f32 outputs, 2 buffers
        rows_b = _blk_bytes(6 * ct * Hr, W, 2)         # bf16 row-pass scratch
        tmp_b = _blk_bytes(6 * ct * Hr, Wr, 4)         # column-pass f32 temp
        if in_b + out_b + rows_b + tmp_b + weights <= budget:
            return ct, limit
    return 1, limit


def run_aug_kernel(images, wy, wxt, params, Hr, Wr, photometric, channel_tile=None):
    """images: 6-tuple of (B, C, H, W) f32 arrays (NOT stacked, NOT pre-cast).
    wy: (B, Hr, H) bf16 row weights, wxt: (B, W, Wr) bf16 column weights,
    params: (B, 5) f32 = [gamma, shift_r*bright, shift_g*bright, shift_b*bright, flag]."""
    B, C, H, W = images[0].shape
    ct_auto, vmem_limit = _pick_channel_tile(C, H, W, Hr, Wr)
    ct = ct_auto if channel_tile is None else channel_tile
    assert C % ct == 0, "channel_tile must divide the per-image channel count"
    num_ct = C // ct

    img_spec = pl.BlockSpec((1, ct, H, W), lambda b, ci, p: (b, ci, 0, 0))
    wy_spec = pl.BlockSpec((1, Hr, H), lambda b, ci, p: (b, 0, 0))
    wxt_spec = pl.BlockSpec((1, W, Wr), lambda b, ci, p: (b, 0, 0))
    out_spec = pl.BlockSpec((1, ct, Hr, Wr), lambda b, ci, p: (b, ci, 0, 0))

    kern = functools.partial(_aug_kernel, Hr=Hr, Wr=Wr, ct=ct,
                             photometric=photometric)
    outs = pl.pallas_call(
        kern,
        out_shape=tuple(jax.ShapeDtypeStruct((B, C, Hr, Wr), jnp.float32)
                        for _ in range(6)),
        grid_spec=pltpu.PrefetchScalarGridSpec(
            num_scalar_prefetch=1,
            grid=(B, num_ct),
            in_specs=[img_spec] * 6 + [wy_spec, wxt_spec],
            out_specs=[out_spec] * 6,
            scratch_shapes=[pltpu.VMEM((6 * ct * Hr, W), jnp.bfloat16)],
        ),
        compiler_params=pltpu.CompilerParams(
            dimension_semantics=("parallel", "parallel"),
            vmem_limit_bytes=vmem_limit),
    )(params, *images, wy, wxt)
    return outs


# ----------------------------------------------------------------------------
# Plain-JAX glue reproducing the scalar-level parts of the module
# ----------------------------------------------------------------------------
class AugmentSceneFlowPallas:
    def __init__(self, batch, photometric=True, trans=0.07,
                 scale=(0.93, 1.0), resize=(16, 32), channel_tile=None):
        self.photometric = photometric
        self.max_trans = trans
        self.min_scale = scale[0]
        self.max_scale = scale[1]
        self.resize = list(resize)
        self.batch = batch
        self.channel_tile = channel_tile
        # photometric ranges (from PhotometricAugmentation.__init__)
        self.min_gamma, self.intv_gamma = 0.8, 0.4
        self.min_brght, self.intv_brght = 0.5, 1.5
        self.min_shift, self.intv_shift = 0.8, 0.4
        self._forward = jax.jit(self._forward_impl)

    # ---- find_invalid (tiny 3x3 matmuls, plain JAX) ----
    def _find_invalid(self, img_size, params):
        H, W = img_size
        B = self.batch
        scale = params[:, 0:1]
        tx = params[:, 2:3]
        ty = params[:, 3:4]
        intm_h = jnp.floor(H * scale)
        intm_w = jnp.floor(W * scale)
        hf_h = ((intm_h - 1.0) / 2.0)[:, :, None]      # (B,1,1)
        hf_w = ((intm_w - 1.0) / 2.0)[:, :, None]
        o = jnp.zeros_like(hf_h)
        i = jnp.ones_like(hf_h)
        pt_mat = jnp.concatenate([
            jnp.concatenate([hf_w, o, o], axis=2),
            jnp.concatenate([o, hf_h, o], axis=2),
            jnp.concatenate([o, o, i], axis=2)], axis=1)               # (B,3,3)
        ref_mat = jnp.tile(jnp.array([[1., 1., 1.],
                                      [1., -1., 1.],
                                      [-1., 1., 1.],
                                      [-1., -1., 1.]], jnp.float32)[None], (B, 1, 1))
        ref_pts = jnp.matmul(ref_mat, pt_mat).transpose(0, 2, 1)        # (B,3,4)
        tform = jnp.tile(jnp.eye(3, dtype=jnp.float32)[None], (B, 1, 1))
        tform = tform.at[:, 0, 2].set(tx[:, 0]).at[:, 1, 2].set(ty[:, 0])
        pts = jnp.matmul(tform, ref_pts)
        img_hf_h = (H - 1.0) / 2.0
        img_hf_w = (W - 1.0) / 2.0
        x_tf = pts[:, 0, :]
        y_tf = pts[:, 1, :]
        bad = ((x_tf <= -img_hf_w) | (y_tf <= -img_hf_h)
               | (x_tf >= img_hf_w) | (y_tf >= img_hf_h))
        return (bad.sum(axis=1, keepdims=True) > 0).astype(jnp.float32)

    # ---- find_aug_params: on-device rejection sampling (lax.while_loop) ----
    def _find_aug_params(self, key, H, W):
        B = self.batch
        Hf, Wf = float(H), float(W)

        def cond(state):
            _, _, invalid, it = state
            return jnp.logical_and(jnp.sum(invalid) > 0.0, it < 100)

        def body(state):
            key, params, invalid, it = state
            key, k1, k2, k3 = jax.random.split(key, 4)
            scale = jax.random.uniform(k1, (B, 1), jnp.float32,
                                       self.min_scale, self.max_scale)
            max_t = jnp.minimum(1.0 - scale, self.max_trans) * 0.5
            tx = jax.random.uniform(k2, (B, 1), jnp.float32, -1.0, 1.0) * max_t * Wf
            ty = jax.random.uniform(k3, (B, 1), jnp.float32, -1.0, 1.0) * max_t * Hf
            params_new = jnp.concatenate(
                [scale, jnp.zeros_like(scale), tx, ty], axis=1)
            params = invalid * params_new + (1.0 - invalid) * params
            invalid = self._find_invalid((Hf, Wf), params)
            return key, params, invalid, it + 1

        init = (key,
                jnp.zeros((B, 4), jnp.float32),
                jnp.ones((B, 1), jnp.float32),
                jnp.int32(0))
        _, params, _, _ = lax.while_loop(cond, body, init)
        return params

    # ---- separable bilinear interpolation weights (per batch item) ----
    @staticmethod
    def _interp_weights(n_out, n_in, scale, trans):
        # Reproduces F.grid_sample(align_corners=True, padding_mode='zeros')
        # through the module's "/img_size*2" grid normalization.
        r = jnp.arange(n_out, dtype=jnp.float32) - (n_out - 1.0) / 2.0
        g = (r[None, :] * scale + trans) / float(n_in) * 2.0           # (B,n_out)
        pos = (g + 1.0) * 0.5 * (n_in - 1.0)
        p0 = jnp.floor(pos)[:, :, None]                                # (B,n_out,1)
        w1 = (pos - jnp.floor(pos))[:, :, None]
        w0 = 1.0 - w1
        idx = jnp.arange(n_in, dtype=jnp.float32)[None, None, :]       # (1,1,n_in)
        in0 = (p0 >= 0.0) & (p0 <= n_in - 1.0)
        in1 = (p0 + 1.0 >= 0.0) & (p0 + 1.0 <= n_in - 1.0)
        w = (jnp.where((idx == p0) & in0, w0, 0.0)
             + jnp.where((idx == p0 + 1.0) & in1, w1, 0.0))
        return w                                                        # (B,n_out,n_in)

    # ---- augment_intrinsic_matrices (3x3 per-batch math, plain JAX) ----
    def _augment_intrinsics(self, kl, kr, H, W, Hr, Wr, scale_x, scale_y, tx, ty):
        intr = jnp.stack([kl, kr], axis=1).astype(jnp.float32)          # (B,2,3,3)
        gww = 0.0 - (Wr - 1.0) / 2.0
        ghh = 0.0 - (Hr - 1.0) / 2.0
        px0 = gww * scale_x[:, 0] + tx[:, 0]                            # (B,)
        py0 = ghh * scale_y[:, 0] + ty[:, 0]
        str_ww = px0 + float(W) * 0.5
        str_hh = py0 + float(H) * 0.5
        intr = intr.at[:, :, 0, 2].add(-str_ww[:, None])
        intr = intr.at[:, :, 1, 2].add(-str_hh[:, None])
        intr = intr.at[:, :, 0, 0].set(intr[:, :, 0, 0] / scale_x)
        intr = intr.at[:, :, 1, 1].set(intr[:, :, 1, 1] / scale_y)
        intr = intr.at[:, :, 0, 2].set(intr[:, :, 0, 2] / scale_x)
        intr = intr.at[:, :, 1, 2].set(intr[:, :, 1, 2] / scale_y)
        return intr[:, 0], intr[:, 1]

    def _forward_impl(self, example_dict, key):
        im_l0 = example_dict['input_l0']
        im_l1 = example_dict['input_l1']
        im_l2 = example_dict['input_l2']
        im_r0 = example_dict['input_r0']
        im_r1 = example_dict['input_r1']
        im_r2 = example_dict['input_r2']
        B, C, H, W = im_l1.shape
        Hr, Wr = self.resize

        key, kp, kphoto, kcoin = jax.random.split(key, 4)

        # augmentation params (on-device rejection sampling)
        params = self._find_aug_params(kp, H, W)                        # (B,4)
        scale = params[:, 0:1]
        tx = params[:, 2:3]
        ty = params[:, 3:4]
        intm_h = jnp.floor(H * scale)
        intm_w = jnp.floor(W * scale)
        scale_x = intm_w / float(Wr)                                    # (B,1)
        scale_y = intm_h / float(Hr)

        # sampling grid (== torch coords), tiny -> plain JAX
        xs = jnp.arange(Wr, dtype=jnp.float32) - (Wr - 1.0) / 2.0
        ys = jnp.arange(Hr, dtype=jnp.float32) - (Hr - 1.0) / 2.0
        gx = (xs[None, None, :] * scale_x[:, :, None] + tx[:, :, None]) / float(W) * 2.0
        gy = (ys[None, :, None] * scale_y[:, :, None] + ty[:, :, None]) / float(H) * 2.0
        coords = jnp.stack([jnp.broadcast_to(gx, (B, Hr, Wr)),
                            jnp.broadcast_to(gy, (B, Hr, Wr))], axis=-1)  # (B,Hr,Wr,2)

        # separable bilinear weights, hoisted out of the kernel (both grid axes
        # parallel / v7x megacore safe; tiny HBM cost vs. image traffic)
        wy = self._interp_weights(Hr, H, scale_y, ty).astype(jnp.bfloat16)        # (B,Hr,H)
        wxt = jnp.swapaxes(self._interp_weights(Wr, W, scale_x, tx), 1, 2)
        wxt = wxt.astype(jnp.bfloat16)                                            # (B,W,Wr)

        # photometric randoms + coin flip (device scalar, no host sync)
        kg, kb, ks = jax.random.split(kphoto, 3)
        gamma = jax.random.uniform(kg, (B, 1), jnp.float32) * self.intv_gamma + self.min_gamma
        bright = jax.random.uniform(kb, (B, 1), jnp.float32) * self.intv_brght + self.min_brght
        shift = jax.random.uniform(ks, (B, 3), jnp.float32) * self.intv_shift + self.min_shift
        if self.photometric:
            photo_flag = jnp.broadcast_to(
                (jax.random.uniform(kcoin, ()) > 0.5).astype(jnp.float32), (B, 1))
        else:
            photo_flag = jnp.zeros((B, 1), jnp.float32)
        # brightness pre-multiplied into the RGB shifts (scalar side)
        kernel_params = jnp.concatenate([gamma, shift * bright, photo_flag],
                                        axis=1).astype(jnp.float32)     # (B,5)

        outs = run_aug_kernel((im_l0, im_l1, im_l2, im_r0, im_r1, im_r2),
                              wy, wxt, kernel_params, Hr, Wr,
                              self.photometric, self.channel_tile)
        im_l0a, im_l1a, im_l2a, im_r0a, im_r1a, im_r2a = outs

        kl_aug, kr_aug = self._augment_intrinsics(
            example_dict['kl'], example_dict['kr'], H, W, Hr, Wr,
            scale_x, scale_y, tx, ty)

        kl_flip = kl_aug.at[:, 0, 2].set(float(Wr) - kl_aug[:, 0, 2])
        kr_flip = kr_aug.at[:, 0, 2].set(float(Wr) - kr_aug[:, 0, 2])

        aug_size = jnp.zeros_like(example_dict['input_size'])
        aug_size = aug_size.at[:, 0].set(float(Hr)).at[:, 1].set(float(Wr))

        out = dict(example_dict)
        out['input_coords'] = coords
        out['input_aug_scale'] = scale
        out['input_l0_aug'] = im_l0a
        out['input_l1_aug'] = im_l1a
        out['input_l2_aug'] = im_l2a
        out['input_r0_aug'] = im_r0a
        out['input_r1_aug'] = im_r1a
        out['input_r2_aug'] = im_r2a
        out['kl_aug'] = kl_aug
        out['kr_aug'] = kr_aug
        out['kl_flip_aug'] = kl_flip
        out['kr_flip_aug'] = kr_flip
        out['aug_size'] = aug_size
        return out

    def forward(self, example_dict, key):
        return self._forward(example_dict, key)


if __name__ == "__main__":
    B, C, H, W = 2, 3, 24, 40
    resize = [16, 32]

    key = jax.random.PRNGKey(0)
    key, *ikeys = jax.random.split(key, 7)

    example_dict = {}
    names = ['input_l0', 'input_l1', 'input_l2', 'input_r0', 'input_r1', 'input_r2']
    for name, k in zip(names, ikeys):
        example_dict[name] = jax.random.uniform(k, (B, C, H, W), jnp.float32)

    # deterministic synthetic intrinsics
    k_base = jnp.array([[200.0, 0.0, W / 2.0],
                        [0.0, 200.0, H / 2.0],
                        [0.0, 0.0, 1.0]], jnp.float32)
    example_dict['kl'] = jnp.tile(k_base[None], (B, 1, 1))
    example_dict['kr'] = jnp.tile(k_base[None] * jnp.array([[1.0, 1.0, 1.02],
                                                            [1.0, 1.0, 1.01],
                                                            [1.0, 1.0, 1.0]]), (B, 1, 1))
    example_dict['input_size'] = jnp.tile(
        jnp.array([[float(H), float(W)]], jnp.float32), (B, 1))

    # channel_tile left at None -> auto-derived (ct == C here -> grid (B, 1)).
    aug = AugmentSceneFlowPallas(batch=B, photometric=True, trans=0.07,
                                 scale=(0.93, 1.0), resize=resize)
    key, fwd_key = jax.random.split(key)
    result = aug.forward(example_dict, fwd_key)

    jax.block_until_ready(result['input_l1_aug'])
    jax.block_until_ready(result['input_coords'])
    jax.block_until_ready(result['kl_aug'])

    assert result['input_l1_aug'].shape == (B, C, resize[0], resize[1])
    assert result['input_r2_aug'].shape == (B, C, resize[0], resize[1])
    assert result['input_coords'].shape == (B, resize[0], resize[1], 2)
    assert result['kl_aug'].shape == (B, 3, 3)
    assert bool(jnp.isfinite(result['input_l1_aug']).all())
    assert bool(jnp.isfinite(result['input_coords']).all())
    print("KERNEL_OK")
</pallas_src>

<mosaic_0001>
module attributes {stable_mosaic.version = 11 : i64} {
  func.func @_aug_kernel(%arg0: i32, %arg1: i32, %arg2: memref<2x5xf32, #tpu.memory_space<smem>>, %arg3: memref<1x3x24x40xf32, #tpu.memory_space<vmem>>, %arg4: memref<1x3x24x40xf32, #tpu.memory_space<vmem>>, %arg5: memref<1x3x24x40xf32, #tpu.memory_space<vmem>>, %arg6: memref<1x3x24x40xf32, #tpu.memory_space<vmem>>, %arg7: memref<1x3x24x40xf32, #tpu.memory_space<vmem>>, %arg8: memref<1x3x24x40xf32, #tpu.memory_space<vmem>>, %arg9: memref<1x16x24xbf16, #tpu.memory_space<vmem>>, %arg10: memref<1x40x32xbf16, #tpu.memory_space<vmem>>, %arg11: memref<1x3x16x32xf32, #tpu.memory_space<vmem>>, %arg12: memref<1x3x16x32xf32, #tpu.memory_space<vmem>>, %arg13: memref<1x3x16x32xf32, #tpu.memory_space<vmem>>, %arg14: memref<1x3x16x32xf32, #tpu.memory_space<vmem>>, %arg15: memref<1x3x16x32xf32, #tpu.memory_space<vmem>>, %arg16: memref<1x3x16x32xf32, #tpu.memory_space<vmem>>, %arg17: memref<288x40xbf16, #tpu.memory_space<vmem>>) attributes {dimension_semantics = [#tpu.dimension_semantics<parallel>, #tpu.dimension_semantics<parallel>], iteration_bounds = array<i64: 2, 1>, scalar_prefetch = 1 : i64, scratch_operands = 1 : i64, tpu.core_type = #tpu.core_type<tc>, window_params = [{transform_indices = @transform_0, window_bounds = array<i64: 1, 3, 24, 40>}, {transform_indices = @transform_1, window_bounds = array<i64: 1, 3, 24, 40>}, {transform_indices = @transform_2, window_bounds = array<i64: 1, 3, 24, 40>}, {transform_indices = @transform_3, window_bounds = array<i64: 1, 3, 24, 40>}, {transform_indices = @transform_4, window_bounds = array<i64: 1, 3, 24, 40>}, {transform_indices = @transform_5, window_bounds = array<i64: 1, 3, 24, 40>}, {transform_indices = @transform_6, window_bounds = array<i64: 1, 16, 24>}, {transform_indices = @transform_7, window_bounds = array<i64: 1, 40, 32>}, {transform_indices = @transform_8, window_bounds = array<i64: 1, 3, 16, 32>}, {transform_indices = @transform_9, window_bounds = array<i64: 1, 3, 16, 32>}, {transform_indices = @transform_10, window_bounds = array<i64: 1, 3, 16, 32>}, {transform_indices = @transform_11, window_bounds = array<i64: 1, 3, 16, 32>}, {transform_indices = @transform_12, window_bounds = array<i64: 1, 3, 16, 32>}, {transform_indices = @transform_13, window_bounds = array<i64: 1, 3, 16, 32>}]} {
    %c0 = arith.constant 0 : index
    %c0_0 = arith.constant 0 : index
    %c0_1 = arith.constant 0 : index
    %0 = vector.load %arg9[%c0, %c0_0, %c0_1] : memref<1x16x24xbf16, #tpu.memory_space<vmem>>, vector<1x16x24xbf16>
    %1 = vector.shape_cast %0 : vector<1x16x24xbf16> to vector<16x24xbf16>
    %c0_2 = arith.constant 0 : index
    %c0_3 = arith.constant 0 : index
    %c0_4 = arith.constant 0 : index
    %2 = vector.load %arg10[%c0_2, %c0_3, %c0_4] : memref<1x40x32xbf16, #tpu.memory_space<vmem>>, vector<1x40x32xbf16>
    %3 = vector.shape_cast %2 : vector<1x40x32xbf16> to vector<40x32xbf16>
    %c0_5 = arith.constant 0 : index
    %c0_6 = arith.constant 0 : index
    %c0_7 = arith.constant 0 : index
    %c0_8 = arith.constant 0 : index
    %4 = vector.load %arg3[%c0_5, %c0_6, %c0_7, %c0_8] : memref<1x3x24x40xf32, #tpu.memory_space<vmem>>, vector<1x1x24x40xf32>
    %5 = vector.shape_cast %4 : vector<1x1x24x40xf32> to vector<24x40xf32>
    %6 = arith.truncf %5 : vector<24x40xf32> to vector<24x40xbf16>
    %cst = arith.constant dense<0.000000e+00> : vector<16x40xf32>
    %7 = tpu.matmul %1, %6, %cst {dimension_numbers = #tpu.dot_dimension_numbers<[1], [0], [0], [1], [0, 0, 1, 1], [], []>} : vector<16x24xbf16>, vector<24x40xbf16>, vector<16x40xf32> -> vector<16x40xf32>
    %8 = arith.truncf %7 : vector<16x40xf32> to vector<16x40xbf16>
    %c0_9 = arith.constant 0 : index
    %c0_10 = arith.constant 0 : index
    %9 = vector.load %arg17[%c0_9, %c0_10] : memref<288x40xbf16, #tpu.memory_space<vmem>>, vector<16x40xbf16>
    tpu.vector_store %arg17[%c0_9, %c0_10], %8 {strides = array<i32>} : memref<288x40xbf16, #tpu.memory_space<vmem>>, vector<16x40xbf16>,
    %c0_11 = arith.constant 0 : index
    %c1 = arith.constant 1 : index
    %c0_12 = arith.constant 0 : index
    %c0_13 = arith.constant 0 : index
    %10 = vector.load %arg3[%c0_11, %c1, %c0_12, %c0_13] : memref<1x3x24x40xf32, #tpu.memory_space<vmem>>, vector<1x1x24x40xf32>
    %11 = vector.shape_cast %10 : vector<1x1x24x40xf32> to vector<24x40xf32>
    %12 = arith.truncf %11 : vector<24x40xf32> to vector<24x40xbf16>
    %cst_14 = arith.constant dense<0.000000e+00> : vector<16x40xf32>
    %13 = tpu.matmul %1, %12, %cst_14 {dimension_numbers = #tpu.dot_dimension_numbers<[1], [0], [0], [1], [0, 0, 1, 1], [], []>} : vector<16x24xbf16>, vector<24x40xbf16>, vector<16x40xf32> -> vector<16x40xf32>
    %14 = arith.truncf %13 : vector<16x40xf32> to vector<16x40xbf16>
    %c16 = arith.constant 16 : index
    %c0_15 = arith.constant 0 : index
    %15 = vector.load %arg17[%c16, %c0_15] : memref<288x40xbf16, #tpu.memory_space<vmem>>, vector<16x40xbf16>
    tpu.vector_store %arg17[%c16, %c0_15], %14 {strides = array<i32>} : memref<288x40xbf16, #tpu.memory_space<vmem>>, vector<16x40xbf16>,
    %c0_16 = arith.constant 0 : index
    %c2 = arith.constant 2 : index
    %c0_17 = arith.constant 0 : index
    %c0_18 = arith.constant 0 : index
    %16 = vector.load %arg3[%c0_16, %c2, %c0_17, %c0_18] : memref<1x3x24x40xf32, #tpu.memory_space<vmem>>, vector<1x1x24x40xf32>
    %17 = vector.shape_cast %16 : vector<1x1x24x40xf32> to vector<24x40xf32>
    %18 = arith.truncf %17 : vector<24x40xf32> to vector<24x40xbf16>
    %cst_19 = arith.constant dense<0.000000e+00> : vector<16x40xf32>
    %19 = tpu.matmul %1, %18, %cst_19 {dimension_numbers = #tpu.dot_dimension_numbers<[1], [0], [0], [1], [0, 0, 1, 1], [], []>} : vector<16x24xbf16>, vector<24x40xbf16>, vector<16x40xf32> -> vector<16x40xf32>
    %20 = arith.truncf %19 : vector<16x40xf32> to vector<16x40xbf16>
    %c32 = arith.constant 32 : index
    %c0_20 = arith.constant 0 : index
    %21 = vector.load %arg17[%c32, %c0_20] : memref<288x40xbf16, #tpu.memory_space<vmem>>, vector<16x40xbf16>
    tpu.vector_store %arg17[%c32, %c0_20], %20 {strides = array<i32>} : memref<288x40xbf16, #tpu.memory_space<vmem>>, vector<16x40xbf16>,
    %c0_21 = arith.constant 0 : index
    %c0_22 = arith.constant 0 : index
    %c0_23 = arith.constant 0 : index
    %c0_24 = arith.constant 0 : index
    %22 = vector.load %arg4[%c0_21, %c0_22, %c0_23, %c0_24] : memref<1x3x24x40xf32, #tpu.memory_space<vmem>>, vector<1x1x24x40xf32>
    %23 = vector.shape_cast %22 : vector<1x1x24x40xf32> to vector<24x40xf32>
    %24 = arith.truncf %23 : vector<24x40xf32> to vector<24x40xbf16>
    %cst_25 = arith.constant dense<0.000000e+00> : vector<16x40xf32>
    %25 = tpu.matmul %1, %24, %cst_25 {dimension_numbers = #tpu.dot_dimension_numbers<[1], [0], [0], [1], [0, 0, 1, 1], [], []>} : vector<16x24xbf16>, vector<24x40xbf16>, vector<16x40xf32> -> vector<16x40xf32>
    %26 = arith.truncf %25 : vector<16x40xf32> to vector<16x40xbf16>
    %c48 = arith.constant 48 : index
    %c0_26 = arith.constant 0 : index
    %27 = vector.load %arg17[%c48, %c0_26] : memref<288x40xbf16, #tpu.memory_space<vmem>>, vector<16x40xbf16>
    tpu.vector_store %arg17[%c48, %c0_26], %26 {strides = array<i32>} : memref<288x40xbf16, #tpu.memory_space<vmem>>, vector<16x40xbf16>,
    %c0_27 = arith.constant 0 : index
    %c1_28 = arith.constant 1 : index
    %c0_29 = arith.constant 0 : index
    %c0_30 = arith.constant 0 : index
    %28 = vector.load %arg4[%c0_27, %c1_28, %c0_29, %c0_30] : memref<1x3x24x40xf32, #tpu.memory_space<vmem>>, vector<1x1x24x40xf32>
    %29 = vector.shape_cast %28 : vector<1x1x24x40xf32> to vector<24x40xf32>
    %30 = arith.truncf %29 : vector<24x40xf32> to vector<24x40xbf16>
    %cst_31 = arith.constant dense<0.000000e+00> : vector<16x40xf32>
    %31 = tpu.matmul %1, %30, %cst_31 {dimension_numbers = #tpu.dot_dimension_numbers<[1], [0], [0], [1], [0, 0, 1, 1], [], []>} : vector<16x24xbf16>, vector<24x40xbf16>, vector<16x40xf32> -> vector<16x40xf32>
    %32 = arith.truncf %31 : vector<16x40xf32> to vector<16x40xbf16>
    %c64 = arith.constant 64 : index
    %c0_32 = arith.constant 0 : index
    %33 = vector.load %arg17[%c64, %c0_32] : memref<288x40xbf16, #tpu.memory_space<vmem>>, vector<16x40xbf16>
    tpu.vector_store %arg17[%c64, %c0_32], %32 {strides = array<i32>} : memref<288x40xbf16, #tpu.memory_space<vmem>>, vector<16x40xbf16>,
    %c0_33 = arith.constant 0 : index
    %c2_34 = arith.constant 2 : index
    %c0_35 = arith.constant 0 : index
    %c0_36 = arith.constant 0 : index
    %34 = vector.load %arg4[%c0_33, %c2_34, %c0_35, %c0_36] : memref<1x3x24x40xf32, #tpu.memory_space<vmem>>, vector<1x1x24x40xf32>
    %35 = vector.shape_cast %34 : vector<1x1x24x40xf32> to vector<24x40xf32>
    %36 = arith.truncf %35 : vector<24x40xf32> to vector<24x40xbf16>
    %cst_37 = arith.constant dense<0.000000e+00> : vector<16x40xf32>
    %37 = tpu.matmul %1, %36, %cst_37 {dimension_numbers = #tpu.dot_dimension_numbers<[1], [0], [0], [1], [0, 0, 1, 1], [], []>} : vector<16x24xbf16>, vector<24x40xbf16>, vector<16x40xf32> -> vector<16x40xf32>
    %38 = arith.truncf %37 : vector<16x40xf32> to vector<16x40xbf16>
    %c80 = arith.constant 80 : index
    %c0_38 = arith.constant 0 : index
    %39 = vector.load %arg17[%c80, %c0_38] : memref<288x40xbf16, #tpu.memory_space<vmem>>, vector<16x40xbf16>
    tpu.vector_store %arg17[%c80, %c0_38], %38 {strides = array<i32>} : memref<288x40xbf16, #tpu.memory_space<vmem>>, vector<16x40xbf16>,
    %c0_39 = arith.constant 0 : index
    %c0_40 = arith.constant 0 : index
    %c0_41 = arith.constant 0 : index
    %c0_42 = arith.constant 0 : index
    %40 = vector.load %arg5[%c0_39, %c0_40, %c0_41, %c0_42] : memref<1x3x24x40xf32, #tpu.memory_space<vmem>>, vector<1x1x24x40xf32>
    %41 = vector.shape_cast %40 : vector<1x1x24x40xf32> to vector<24x40xf32>
    %42 = arith.truncf %41 : vector<24x40xf32> to vector<24x40xbf16>
    %cst_43 = arith.constant dense<0.000000e+00> : vector<16x40xf32>
    %43 = tpu.matmul %1, %42, %cst_43 {dimension_numbers = #tpu.dot_dimension_numbers<[1], [0], [0], [1], [0, 0, 1, 1], [], []>} : vector<16x24xbf16>, vector<24x40xbf16>, vector<16x40xf32> -> vector<16x40xf32>
    %44 = arith.truncf %43 : vector<16x40xf32> to vector<16x40xbf16>
    %c96 = arith.constant 96 : index
    %c0_44 = arith.constant 0 : index
    %45 = vector.load %arg17[%c96, %c0_44] : memref<288x40xbf16, #tpu.memory_space<vmem>>, vector<16x40xbf16>
    tpu.vector_store %arg17[%c96, %c0_44], %44 {strides = array<i32>} : memref<288x40xbf16, #tpu.memory_space<vmem>>, vector<16x40xbf16>,
    %c0_45 = arith.constant 0 : index
    %c1_46 = arith.constant 1 : index
    %c0_47 = arith.constant 0 : index
    %c0_48 = arith.constant 0 : index
    %46 = vector.load %arg5[%c0_45, %c1_46, %c0_47, %c0_48] : memref<1x3x24x40xf32, #tpu.memory_space<vmem>>, vector<1x1x24x40xf32>
    %47 = vector.shape_cast %46 : vector<1x1x24x40xf32> to vector<24x40xf32>
    %48 = arith.truncf %47 : vector<24x40xf32> to vector<24x40xbf16>
    %cst_49 = arith.constant dense<0.000000e+00> : vector<16x40xf32>
    %49 = tpu.matmul %1, %48, %cst_49 {dimension_numbers = #tpu.dot_dimension_numbers<[1], [0], [0], [1], [0, 0, 1, 1], [], []>} : vector<16x24xbf16>, vector<24x40xbf16>, vector<16x40xf32> -> vector<16x40xf32>
    %50 = arith.truncf %49 : vector<16x40xf32> to vector<16x40xbf16>
    %c112 = arith.constant 112 : index
    %c0_50 = arith.constant 0 : index
    %51 = vector.load %arg17[%c112, %c0_50] : memref<288x40xbf16, #tpu.memory_space<vmem>>, vector<16x40xbf16>
    tpu.vector_store %arg17[%c112, %c0_50], %50 {strides = array<i32>} : memref<288x40xbf16, #tpu.memory_space<vmem>>, vector<16x40xbf16>,
    %c0_51 = arith.constant 0 : index
    %c2_52 = arith.constant 2 : index
    %c0_53 = arith.constant 0 : index
    %c0_54 = arith.constant 0 : index
    %52 = vector.load %arg5[%c0_51, %c2_52, %c0_53, %c0_54] : memref<1x3x24x40xf32, #tpu.memory_space<vmem>>, vector<1x1x24x40xf32>
    %53 = vector.shape_cast %52 : vector<1x1x24x40xf32> to vector<24x40xf32>
    %54 = arith.truncf %53 : vector<24x40xf32> to vector<24x40xbf16>
    %cst_55 = arith.constant dense<0.000000e+00> : vector<16x40xf32>
    %55 = tpu.matmul %1, %54, %cst_55 {dimension_numbers = #tpu.dot_dimension_numbers<[1], [0], [0], [1], [0, 0, 1, 1], [], []>} : vector<16x24xbf16>, vector<24x40xbf16>, vector<16x40xf32> -> vector<16x40xf32>
    %56 = arith.truncf %55 : vector<16x40xf32> to vector<16x40xbf16>
    %c128 = arith.constant 128 : index
    %c0_56 = arith.constant 0 : index
    %57 = vector.load %arg17[%c128, %c0_56] : memref<288x40xbf16, #tpu.memory_space<vmem>>, vector<16x40xbf16>
    tpu.vector_store %arg17[%c128, %c0_56], %56 {strides = array<i32>} : memref<288x40xbf16, #tpu.memory_space<vmem>>, vector<16x40xbf16>,
    %c0_57 = arith.constant 0 : index
    %c0_58 = arith.constant 0 : index
    %c0_59 = arith.constant 0 : index
    %c0_60 = arith.constant 0 : index
    %58 = vector.load %arg6[%c0_57, %c0_58, %c0_59, %c0_60] : memref<1x3x24x40xf32, #tpu.memory_space<vmem>>, vector<1x1x24x40xf32>
    %59 = vector.shape_cast %58 : vector<1x1x24x40xf32> to vector<24x40xf32>
    %60 = arith.truncf %59 : vector<24x40xf32> to vector<24x40xbf16>
    %cst_61 = arith.constant dense<0.000000e+00> : vector<16x40xf32>
    %61 = tpu.matmul %1, %60, %cst_61 {dimension_numbers = #tpu.dot_dimension_numbers<[1], [0], [0], [1], [0, 0, 1, 1], [], []>} : vector<16x24xbf16>, vector<24x40xbf16>, vector<16x40xf32> -> vector<16x40xf32>
    %62 = arith.truncf %61 : vector<16x40xf32> to vector<16x40xbf16>
    %c144 = arith.constant 144 : index
    %c0_62 = arith.constant 0 : index
    %63 = vector.load %arg17[%c144, %c0_62] : memref<288x40xbf16, #tpu.memory_space<vmem>>, vector<16x40xbf16>
    tpu.vector_store %arg17[%c144, %c0_62], %62 {strides = array<i32>} : memref<288x40xbf16, #tpu.memory_space<vmem>>, vector<16x40xbf16>,
    %c0_63 = arith.constant 0 : index
    %c1_64 = arith.constant 1 : index
    %c0_65 = arith.constant 0 : index
    %c0_66 = arith.constant 0 : index
    %64 = vector.load %arg6[%c0_63, %c1_64, %c0_65, %c0_66] : memref<1x3x24x40xf32, #tpu.memory_space<vmem>>, vector<1x1x24x40xf32>
    %65 = vector.shape_cast %64 : vector<1x1x24x40xf32> to vector<24x40xf32>
    %66 = arith.truncf %65 : vector<24x40xf32> to vector<24x40xbf16>
    %cst_67 = arith.constant dense<0.000000e+00> : vector<16x40xf32>
    %67 = tpu.matmul %1, %66, %cst_67 {dimension_numbers = #tpu.dot_dimension_numbers<[1], [0], [0], [1], [0, 0, 1, 1], [], []>} : vector<16x24xbf16>, vector<24x40xbf16>, vector<16x40xf32> -> vector<16x40xf32>
    %68 = arith.truncf %67 : vector<16x40xf32> to vector<16x40xbf16>
    %c160 = arith.constant 160 : index
    %c0_68 = arith.constant 0 : index
    %69 = vector.load %arg17[%c160, %c0_68] : memref<288x40xbf16, #tpu.memory_space<vmem>>, vector<16x40xbf16>
    tpu.vector_store %arg17[%c160, %c0_68], %68 {strides = array<i32>} : memref<288x40xbf16, #tpu.memory_space<vmem>>, vector<16x40xbf16>,
    %c0_69 = arith.constant 0 : index
    %c2_70 = arith.constant 2 : index
    %c0_71 = arith.constant 0 : index
    %c0_72 = arith.constant 0 : index
    %70 = vector.load %arg6[%c0_69, %c2_70, %c0_71, %c0_72] : memref<1x3x24x40xf32, #tpu.memory_space<vmem>>, vector<1x1x24x40xf32>
    %71 = vector.shape_cast %70 : vector<1x1x24x40xf32> to vector<24x40xf32>
    %72 = arith.truncf %71 : vector<24x40xf32> to vector<24x40xbf16>
    %cst_73 = arith.constant dense<0.000000e+00> : vector<16x40xf32>
    %73 = tpu.matmul %1, %72, %cst_73 {dimension_numbers = #tpu.dot_dimension_numbers<[1], [0], [0], [1], [0, 0, 1, 1], [], []>} : vector<16x24xbf16>, vector<24x40xbf16>, vector<16x40xf32> -> vector<16x40xf32>
    %74 = arith.truncf %73 : vector<16x40xf32> to vector<16x40xbf16>
    %c176 = arith.constant 176 : index
    %c0_74 = arith.constant 0 : index
    %75 = vector.load %arg17[%c176, %c0_74] : memref<288x40xbf16, #tpu.memory_space<vmem>>, vector<16x40xbf16>
    tpu.vector_store %arg17[%c176, %c0_74], %74 {strides = array<i32>} : memref<288x40xbf16, #tpu.memory_space<vmem>>, vector<16x40xbf16>,
    %c0_75 = arith.constant 0 : index
    %c0_76 = arith.constant 0 : index
    %c0_77 = arith.constant 0 : index
    %c0_78 = arith.constant 0 : index
    %76 = vector.load %arg7[%c0_75, %c0_76, %c0_77, %c0_78] : memref<1x3x24x40xf32, #tpu.memory_space<vmem>>, vector<1x1x24x40xf32>
    %77 = vector.shape_cast %76 : vector<1x1x24x40xf32> to vector<24x40xf32>
    %78 = arith.truncf %77 : vector<24x40xf32> to vector<24x40xbf16>
    %cst_79 = arith.constant dense<0.000000e+00> : vector<16x40xf32>
    %79 = tpu.matmul %1, %78, %cst_79 {dimension_numbers = #tpu.dot_dimension_numbers<[1], [0], [0], [1], [0, 0, 1, 1], [], []>} : vector<16x24xbf16>, vector<24x40xbf16>, vector<16x40xf32> -> vector<16x40xf32>
    %80 = arith.truncf %79 : vector<16x40xf32> to vector<16x40xbf16>
    %c192 = arith.constant 192 : index
    %c0_80 = arith.constant 0 : index
    %81 = vector.load %arg17[%c192, %c0_80] : memref<288x40xbf16, #tpu.memory_space<vmem>>, vector<16x40xbf16>
    tpu.vector_store %arg17[%c192, %c0_80], %80 {strides = array<i32>} : memref<288x40xbf16, #tpu.memory_space<vmem>>, vector<16x40xbf16>,
    %c0_81 = arith.constant 0 : index
    %c1_82 = arith.constant 1 : index
    %c0_83 = arith.constant 0 : index
    %c0_84 = arith.constant 0 : index
    %82 = vector.load %arg7[%c0_81, %c1_82, %c0_83, %c0_84] : memref<1x3x24x40xf32, #tpu.memory_space<vmem>>, vector<1x1x24x40xf32>
    %83 = vector.shape_cast %82 : vector<1x1x24x40xf32> to vector<24x40xf32>
    %84 = arith.truncf %83 : vector<24x40xf32> to vector<24x40xbf16>
    %cst_85 = arith.constant dense<0.000000e+00> : vector<16x40xf32>
    %85 = tpu.matmul %1, %84, %cst_85 {dimension_numbers = #tpu.dot_dimension_numbers<[1], [0], [0], [1], [0, 0, 1, 1], [], []>} : vector<16x24xbf16>, vector<24x40xbf16>, vector<16x40xf32> -> vector<16x40xf32>
    %86 = arith.truncf %85 : vector<16x40xf32> to vector<16x40xbf16>
    %c208 = arith.constant 208 : index
    %c0_86 = arith.constant 0 : index
    %87 = vector.load %arg17[%c208, %c0_86] : memref<288x40xbf16, #tpu.memory_space<vmem>>, vector<16x40xbf16>
    tpu.vector_store %arg17[%c208, %c0_86], %86 {strides = array<i32>} : memref<288x40xbf16, #tpu.memory_space<vmem>>, vector<16x40xbf16>,
    %c0_87 = arith.constant 0 : index
    %c2_88 = arith.constant 2 : index
    %c0_89 = arith.constant 0 : index
    %c0_90 = arith.constant 0 : index
    %88 = vector.load %arg7[%c0_87, %c2_88, %c0_89, %c0_90] : memref<1x3x24x40xf32, #tpu.memory_space<vmem>>, vector<1x1x24x40xf32>
    %89 = vector.shape_cast %88 : vector<1x1x24x40xf32> to vector<24x40xf32>
    %90 = arith.truncf %89 : vector<24x40xf32> to vector<24x40xbf16>
    %cst_91 = arith.constant dense<0.000000e+00> : vector<16x40xf32>
    %91 = tpu.matmul %1, %90, %cst_91 {dimension_numbers = #tpu.dot_dimension_numbers<[1], [0], [0], [1], [0, 0, 1, 1], [], []>} : vector<16x24xbf16>, vector<24x40xbf16>, vector<16x40xf32> -> vector<16x40xf32>
    %92 = arith.truncf %91 : vector<16x40xf32> to vector<16x40xbf16>
    %c224 = arith.constant 224 : index
    %c0_92 = arith.constant 0 : index
    %93 = vector.load %arg17[%c224, %c0_92] : memref<288x40xbf16, #tpu.memory_space<vmem>>, vector<16x40xbf16>
    tpu.vector_store %arg17[%c224, %c0_92], %92 {strides = array<i32>} : memref<288x40xbf16, #tpu.memory_space<vmem>>, vector<16x40xbf16>,
    %c0_93 = arith.constant 0 : index
    %c0_94 = arith.constant 0 : index
    %c0_95 = arith.constant 0 : index
    %c0_96 = arith.constant 0 : index
    %94 = vector.load %arg8[%c0_93, %c0_94, %c0_95, %c0_96] : memref<1x3x24x40xf32, #tpu.memory_space<vmem>>, vector<1x1x24x40xf32>
    %95 = vector.shape_cast %94 : vector<1x1x24x40xf32> to vector<24x40xf32>
    %96 = arith.truncf %95 : vector<24x40xf32> to vector<24x40xbf16>
    %cst_97 = arith.constant dense<0.000000e+00> : vector<16x40xf32>
    %97 = tpu.matmul %1, %96, %cst_97 {dimension_numbers = #tpu.dot_dimension_numbers<[1], [0], [0], [1], [0, 0, 1, 1], [], []>} : vector<16x24xbf16>, vector<24x40xbf16>, vector<16x40xf32> -> vector<16x40xf32>
    %98 = arith.truncf %97 : vector<16x40xf32> to vector<16x40xbf16>
    %c240 = arith.constant 240 : index
    %c0_98 = arith.constant 0 : index
    %99 = vector.load %arg17[%c240, %c0_98] : memref<288x40xbf16, #tpu.memory_space<vmem>>, vector<16x40xbf16>
    tpu.vector_store %arg17[%c240, %c0_98], %98 {strides = array<i32>} : memref<288x40xbf16, #tpu.memory_space<vmem>>, vector<16x40xbf16>,
    %c0_99 = arith.constant 0 : index
    %c1_100 = arith.constant 1 : index
    %c0_101 = arith.constant 0 : index
    %c0_102 = arith.constant 0 : index
    %100 = vector.load %arg8[%c0_99, %c1_100, %c0_101, %c0_102] : memref<1x3x24x40xf32, #tpu.memory_space<vmem>>, vector<1x1x24x40xf32>
    %101 = vector.shape_cast %100 : vector<1x1x24x40xf32> to vector<24x40xf32>
    %102 = arith.truncf %101 : vector<24x40xf32> to vector<24x40xbf16>
    %cst_103 = arith.constant dense<0.000000e+00> : vector<16x40xf32>
    %103 = tpu.matmul %1, %102, %cst_103 {dimension_numbers = #tpu.dot_dimension_numbers<[1], [0], [0], [1], [0, 0, 1, 1], [], []>} : vector<16x24xbf16>, vector<24x40xbf16>, vector<16x40xf32> -> vector<16x40xf32>
    %104 = arith.truncf %103 : vector<16x40xf32> to vector<16x40xbf16>
    %c256 = arith.constant 256 : index
    %c0_104 = arith.constant 0 : index
    %105 = vector.load %arg17[%c256, %c0_104] : memref<288x40xbf16, #tpu.memory_space<vmem>>, vector<16x40xbf16>
    tpu.vector_store %arg17[%c256, %c0_104], %104 {strides = array<i32>} : memref<288x40xbf16, #tpu.memory_space<vmem>>, vector<16x40xbf16>,
    %c0_105 = arith.constant 0 : index
    %c2_106 = arith.constant 2 : index
    %c0_107 = arith.constant 0 : index
    %c0_108 = arith.constant 0 : index
    %106 = vector.load %arg8[%c0_105, %c2_106, %c0_107, %c0_108] : memref<1x3x24x40xf32, #tpu.memory_space<vmem>>, vector<1x1x24x40xf32>
    %107 = vector.shape_cast %106 : vector<1x1x24x40xf32> to vector<24x40xf32>
    %108 = arith.truncf %107 : vector<24x40xf32> to vector<24x40xbf16>
    %cst_109 = arith.constant dense<0.000000e+00> : vector<16x40xf32>
    %109 = tpu.matmul %1, %108, %cst_109 {dimension_numbers = #tpu.dot_dimension_numbers<[1], [0], [0], [1], [0, 0, 1, 1], [], []>} : vector<16x24xbf16>, vector<24x40xbf16>, vector<16x40xf32> -> vector<16x40xf32>
    %110 = arith.truncf %109 : vector<16x40xf32> to vector<16x40xbf16>
    %c272 = arith.constant 272 : index
    %c0_110 = arith.constant 0 : index
    %111 = vector.load %arg17[%c272, %c0_110] : memref<288x40xbf16, #tpu.memory_space<vmem>>, vector<16x40xbf16>
    tpu.vector_store %arg17[%c272, %c0_110], %110 {strides = array<i32>} : memref<288x40xbf16, #tpu.memory_space<vmem>>, vector<16x40xbf16>,
    %c0_111 = arith.constant 0 : index
    %c0_112 = arith.constant 0 : index
    %112 = vector.load %arg17[%c0_111, %c0_112] : memref<288x40xbf16, #tpu.memory_space<vmem>>, vector<288x40xbf16>
    %cst_113 = arith.constant dense<0.000000e+00> : vector<288x32xf32>
    %113 = tpu.matmul %112, %3, %cst_113 {dimension_numbers = #tpu.dot_dimension_numbers<[1], [0], [0], [1], [0, 0, 1, 1], [], []>} : vector<288x40xbf16>, vector<40x32xbf16>, vector<288x32xf32> -> vector<288x32xf32>
    %114 = vector.shape_cast %113 : vector<288x32xf32> to vector<18x16x32xf32>
    %115 = arith.index_cast %arg0 : i32 to index
    %c0_114 = arith.constant 0 : index
    %116 = memref.load %arg2[%115, %c0_114] : memref<2x5xf32, #tpu.memory_space<smem>>
    %117 = arith.index_cast %arg0 : i32 to index
    %c1_115 = arith.constant 1 : index
    %118 = memref.load %arg2[%117, %c1_115] : memref<2x5xf32, #tpu.memory_space<smem>>
    %119 = arith.index_cast %arg0 : i32 to index
    %c2_116 = arith.constant 2 : index
    %120 = memref.load %arg2[%119, %c2_116] : memref<2x5xf32, #tpu.memory_space<smem>>
    %121 = arith.index_cast %arg0 : i32 to index
    %c3 = arith.constant 3 : index
    %122 = memref.load %arg2[%121, %c3] : memref<2x5xf32, #tpu.memory_space<smem>>
    %123 = arith.index_cast %arg0 : i32 to index
    %c4 = arith.constant 4 : index
    %124 = memref.load %arg2[%123, %c4] : memref<2x5xf32, #tpu.memory_space<smem>>
    %cst_117 = arith.constant 5.000000e-01 : f32
    %125 = arith.cmpf ogt, %124, %cst_117 : f32
    %126 = arith.extui %125 : i1 to i32
    %c0_i32 = arith.constant 0 : i32
    %127 = arith.cmpi ne, %126, %c0_i32 : i32
    scf.if %127 {
      %131 = tpu.iota {dimensions = array<i32: 0>} : vector<18x1x1xi32>
      %c3_i32 = arith.constant 3 : i32
      %132 = arith.muli %arg1, %c3_i32 : i32
      %c3_i32_120 = arith.constant 3 : i32
      %c0_i32_121 = arith.constant 0 : i32
      %133 = arith.cmpi eq, %c3_i32_120, %c0_i32_121 : i32
      %c1_i32 = arith.constant 1 : i32
      %134 = arith.select %133, %c1_i32, %c3_i32_120 : i32
      %135 = vector.broadcast %134 : i32 to vector<18x1x1xi32>
      %136 = arith.remsi %131, %135 : vector<18x1x1xi32>
      %c0_i32_122 = arith.constant 0 : i32
      %137 = vector.broadcast %c0_i32_122 : i32 to vector<18x1x1xi32>
      %138 = arith.cmpi ne, %136, %137 : vector<18x1x1xi32>
      %c0_i32_123 = arith.constant 0 : i32
      %139 = vector.broadcast %c0_i32_123 : i32 to vector<18x1x1xi32>
      %140 = arith.cmpi slt, %136, %139 : vector<18x1x1xi32>
      %c0_i32_124 = arith.constant 0 : i32
      %141 = arith.cmpi slt, %134, %c0_i32_124 : i32
      %142 = vector.broadcast %141 : i1 to vector<18x1x1xi1>
      %143 = vector.broadcast %142 : vector<18x1x1xi1> to vector<18x1x1xi1>
      %144 = arith.xori %140, %143 : vector<18x1x1xi1>
      %145 = arith.andi %144, %138 : vector<18x1x1xi1>
      %146 = vector.broadcast %134 : i32 to vector<18x1x1xi32>
      %147 = arith.addi %136, %146 : vector<18x1x1xi32>
      %148 = arith.select %145, %147, %136 : vector<18x1x1xi1>, vector<18x1x1xi32>
      %149 = vector.broadcast %132 : i32 to vector<18x1x1xi32>
      %150 = arith.addi %149, %148 : vector<18x1x1xi32>
      %c3_i32_125 = arith.constant 3 : i32
      %c0_i32_126 = arith.constant 0 : i32
      %151 = arith.cmpi eq, %c3_i32_125, %c0_i32_126 : i32
      %c1_i32_127 = arith.constant 1 : i32
      %152 = arith.select %151, %c1_i32_127, %c3_i32_125 : i32
      %153 = vector.broadcast %152 : i32 to vector<18x1x1xi32>
      %154 = arith.remsi %150, %153 : vector<18x1x1xi32>
      %c0_i32_128 = arith.constant 0 : i32
      %155 = vector.broadcast %c0_i32_128 : i32 to vector<18x1x1xi32>
      %156 = arith.cmpi ne, %154, %155 : vector<18x1x1xi32>
      %c0_i32_129 = arith.constant 0 : i32
      %157 = vector.broadcast %c0_i32_129 : i32 to vector<18x1x1xi32>
      %158 = arith.cmpi slt, %154, %157 : vector<18x1x1xi32>
      %c0_i32_130 = arith.constant 0 : i32
      %159 = arith.cmpi slt, %152, %c0_i32_130 : i32
      %160 = vector.broadcast %159 : i1 to vector<18x1x1xi1>
      %161 = vector.broadcast %160 : vector<18x1x1xi1> to vector<18x1x1xi1>
      %162 = arith.xori %158, %161 : vector<18x1x1xi1>
      %163 = arith.andi %162, %156 : vector<18x1x1xi1>
      %164 = vector.broadcast %152 : i32 to vector<18x1x1xi32>
      %165 = arith.addi %154, %164 : vector<18x1x1xi32>
      %166 = arith.select %163, %165, %154 : vector<18x1x1xi1>, vector<18x1x1xi32>
      %c0_i32_131 = arith.constant 0 : i32
      %167 = vector.broadcast %c0_i32_131 : i32 to vector<18x1x1xi32>
      %168 = arith.cmpi eq, %166, %167 : vector<18x1x1xi32>
      %c1_i32_132 = arith.constant 1 : i32
      %169 = vector.broadcast %c1_i32_132 : i32 to vector<18x1x1xi32>
      %170 = arith.cmpi eq, %166, %169 : vector<18x1x1xi32>
      %171 = vector.broadcast %120 : f32 to vector<18x1x1xf32>
      %172 = vector.broadcast %122 : f32 to vector<18x1x1xf32>
      %173 = arith.select %170, %171, %172 : vector<18x1x1xi1>, vector<18x1x1xf32>
      %174 = vector.broadcast %118 : f32 to vector<18x1x1xf32>
      %175 = arith.select %168, %174, %173 : vector<18x1x1xi1>, vector<18x1x1xf32>
      %cst_133 = arith.constant 0.000000e+00 : f32
      %176 = vector.broadcast %cst_133 : f32 to vector<18x16x32xf32>
      %177 = arith.cmpf ogt, %114, %176 : vector<18x16x32xf32>
      %cst_134 = arith.constant 1.000000e-30 : f32
      %178 = vector.broadcast %cst_134 : f32 to vector<18x16x32xf32>
      %179 = arith.maximumf %114, %178 : vector<18x16x32xf32>
      %180 = math.log %179 : vector<18x16x32xf32>
      %181 = vector.broadcast %116 : f32 to vector<18x16x32xf32>
      %182 = arith.mulf %181, %180 : vector<18x16x32xf32>
      %183 = math.exp %182 : vector<18x16x32xf32>
      %cst_135 = arith.constant 0.000000e+00 : f32
      %184 = vector.broadcast %cst_135 : f32 to vector<18x16x32xf32>
      %185 = arith.select %177, %183, %184 : vector<18x16x32xi1>, vector<18x16x32xf32>
      %186 = vector.broadcast %175 : vector<18x1x1xf32> to vector<18x16x32xf32>
      %187 = arith.mulf %185, %186 : vector<18x16x32xf32>
      %cst_136 = arith.constant 0.000000e+00 : f32
      %cst_137 = arith.constant 1.000000e+00 : f32
      %188 = vector.broadcast %cst_136 : f32 to vector<18x16x32xf32>
      %189 = arith.maximumf %188, %187 : vector<18x16x32xf32>
      %190 = vector.broadcast %cst_137 : f32 to vector<18x16x32xf32>
      %191 = arith.minimumf %190, %189 : vector<18x16x32xf32>
      %192 = vector.extract_strided_slice %191 {offsets = [0, 0, 0], sizes = [3, 16, 32], strides = [1, 1, 1]} : vector<18x16x32xf32> to vector<3x16x32xf32>
      %c0_138 = arith.constant 0 : index
      %c0_139 = arith.constant 0 : index
      %c0_140 = arith.constant 0 : index
      %c0_141 = arith.constant 0 : index
      %193 = vector.load %arg11[%c0_138, %c0_139, %c0_140, %c0_141] : memref<1x3x16x32xf32, #tpu.memory_space<vmem>>, vector<1x3x16x32xf32>
      %194 = vector.shape_cast %193 : vector<1x3x16x32xf32> to vector<3x16x32xf32>
      %195 = vector.shape_cast %192 : vector<3x16x32xf32> to vector<1x3x16x32xf32>
      tpu.vector_store %arg11[%c0_138, %c0_139, %c0_140, %c0_141], %195 {strides = array<i32>} : memref<1x3x16x32xf32, #tpu.memory_space<vmem>>, vector<1x3x16x32xf32>,
      %196 = vector.extract_strided_slice %191 {offsets = [3, 0, 0], sizes = [3, 16, 32], strides = [1, 1, 1]} : vector<18x16x32xf32> to vector<3x16x32xf32>
      %c0_142 = arith.constant 0 : index
      %c0_143 = arith.constant 0 : index
      %c0_144 = arith.constant 0 : index
      %c0_145 = arith.constant 0 : index
      %197 = vector.load %arg12[%c0_142, %c0_143, %c0_144, %c0_145] : memref<1x3x16x32xf32, #tpu.memory_space<vmem>>, vector<1x3x16x32xf32>
      %198 = vector.shape_cast %197 : vector<1x3x16x32xf32> to vector<3x16x32xf32>
      %199 = vector.shape_cast %196 : vector<3x16x32xf32> to vector<1x3x16x32xf32>
      tpu.vector_store %arg12[%c0_142, %c0_143, %c0_144, %c0_145], %199 {strides = array<i32>} : memref<1x3x16x32xf32, #tpu.memory_space<vmem>>, vector<1x3x16x32xf32>,
      %200 = vector.extract_strided_slice %191 {offsets = [6, 0, 0], sizes = [3, 16, 32], strides = [1, 1, 1]} : vector<18x16x32xf32> to vector<3x16x32xf32>
      %c0_146 = arith.constant 0 : index
      %c0_147 = arith.constant 0 : index
      %c0_148 = arith.constant 0 : index
      %c0_149 = arith.constant 0 : index
      %201 = vector.load %arg13[%c0_146, %c0_147, %c0_148, %c0_149] : memref<1x3x16x32xf32, #tpu.memory_space<vmem>>, vector<1x3x16x32xf32>
      %202 = vector.shape_cast %201 : vector<1x3x16x32xf32> to vector<3x16x32xf32>
      %203 = vector.shape_cast %200 : vector<3x16x32xf32> to vector<1x3x16x32xf32>
      tpu.vector_store %arg13[%c0_146, %c0_147, %c0_148, %c0_149], %203 {strides = array<i32>} : memref<1x3x16x32xf32, #tpu.memory_space<vmem>>, vector<1x3x16x32xf32>,
      %204 = vector.extract_strided_slice %191 {offsets = [9, 0, 0], sizes = [3, 16, 32], strides = [1, 1, 1]} : vector<18x16x32xf32> to vector<3x16x32xf32>
      %c0_150 = arith.constant 0 : index
      %c0_151 = arith.constant 0 : index
      %c0_152 = arith.constant 0 : index
      %c0_153 = arith.constant 0 : index
      %205 = vector.load %arg14[%c0_150, %c0_151, %c0_152, %c0_153] : memref<1x3x16x32xf32, #tpu.memory_space<vmem>>, vector<1x3x16x32xf32>
      %206 = vector.shape_cast %205 : vector<1x3x16x32xf32> to vector<3x16x32xf32>
      %207 = vector.shape_cast %204 : vector<3x16x32xf32> to vector<1x3x16x32xf32>
      tpu.vector_store %arg14[%c0_150, %c0_151, %c0_152, %c0_153], %207 {strides = array<i32>} : memref<1x3x16x32xf32, #tpu.memory_space<vmem>>, vector<1x3x16x32xf32>,
      %208 = vector.extract_strided_slice %191 {offsets = [12, 0, 0], sizes = [3, 16, 32], strides = [1, 1, 1]} : vector<18x16x32xf32> to vector<3x16x32xf32>
      %c0_154 = arith.constant 0 : index
      %c0_155 = arith.constant 0 : index
      %c0_156 = arith.constant 0 : index
      %c0_157 = arith.constant 0 : index
      %209 = vector.load %arg15[%c0_154, %c0_155, %c0_156, %c0_157] : memref<1x3x16x32xf32, #tpu.memory_space<vmem>>, vector<1x3x16x32xf32>
      %210 = vector.shape_cast %209 : vector<1x3x16x32xf32> to vector<3x16x32xf32>
      %211 = vector.shape_cast %208 : vector<3x16x32xf32> to vector<1x3x16x32xf32>
      tpu.vector_store %arg15[%c0_154, %c0_155, %c0_156, %c0_157], %211 {strides = array<i32>} : memref<1x3x16x32xf32, #tpu.memory_space<vmem>>, vector<1x3x16x32xf32>,
      %212 = vector.extract_strided_slice %191 {offsets = [15, 0, 0], sizes = [3, 16, 32], strides = [1, 1, 1]} : vector<18x16x32xf32> to vector<3x16x32xf32>
      %c0_158 = arith.constant 0 : index
      %c0_159 = arith.constant 0 : index
      %c0_160 = arith.constant 0 : index
      %c0_161 = arith.constant 0 : index
      %213 = vector.load %arg16[%c0_158, %c0_159, %c0_160, %c0_161] : memref<1x3x16x32xf32, #tpu.memory_space<vmem>>, vector<1x3x16x32xf32>
      %214 = vector.shape_cast %213 : vector<1x3x16x32xf32> to vector<3x16x32xf32>
      %215 = vector.shape_cast %212 : vector<3x16x32xf32> to vector<1x3x16x32xf32>
      tpu.vector_store %arg16[%c0_158, %c0_159, %c0_160, %c0_161], %215 {strides = array<i32>} : memref<1x3x16x32xf32, #tpu.memory_space<vmem>>, vector<1x3x16x32xf32>,
    } else {
    }
    %cst_118 = arith.constant 5.000000e-01 : f32
    %128 = arith.cmpf ole, %124, %cst_118 : f32
    %129 = arith.extui %128 : i1 to i32
    %c0_i32_119 = arith.constant 0 : i32
    %130 = arith.cmpi ne, %129, %c0_i32_119 : i32
    scf.if %130 {
      %131 = vector.extract_strided_slice %114 {offsets = [0, 0, 0], sizes = [3, 16, 32], strides = [1, 1, 1]} : vector<18x16x32xf32> to vector<3x16x32xf32>
      %c0_120 = arith.constant 0 : index
      %c0_121 = arith.constant 0 : index
      %c0_122 = arith.constant 0 : index
      %c0_123 = arith.constant 0 : index
      %132 = vector.load %arg11[%c0_120, %c0_121, %c0_122, %c0_123] : memref<1x3x16x32xf32, #tpu.memory_space<vmem>>, vector<1x3x16x32xf32>
      %133 = vector.shape_cast %132 : vector<1x3x16x32xf32> to vector<3x16x32xf32>
      %134 = vector.shape_cast %131 : vector<3x16x32xf32> to vector<1x3x16x32xf32>
      tpu.vector_store %arg11[%c0_120, %c0_121, %c0_122, %c0_123], %134 {strides = array<i32>} : memref<1x3x16x32xf32, #tpu.memory_space<vmem>>, vector<1x3x16x32xf32>,
      %135 = vector.extract_strided_slice %114 {offsets = [3, 0, 0], sizes = [3, 16, 32], strides = [1, 1, 1]} : vector<18x16x32xf32> to vector<3x16x32xf32>
      %c0_124 = arith.constant 0 : index
      %c0_125 = arith.constant 0 : index
      %c0_126 = arith.constant 0 : index
      %c0_127 = arith.constant 0 : index
      %136 = vector.load %arg12[%c0_124, %c0_125, %c0_126, %c0_127] : memref<1x3x16x32xf32, #tpu.memory_space<vmem>>, vector<1x3x16x32xf32>
      %137 = vector.shape_cast %136 : vector<1x3x16x32xf32> to vector<3x16x32xf32>
      %138 = vector.shape_cast %135 : vector<3x16x32xf32> to vector<1x3x16x32xf32>
      tpu.vector_store %arg12[%c0_124, %c0_125, %c0_126, %c0_127], %138 {strides = array<i32>} : memref<1x3x16x32xf32, #tpu.memory_space<vmem>>, vector<1x3x16x32xf32>,
      %139 = vector.extract_strided_slice %114 {offsets = [6, 0, 0], sizes = [3, 16, 32], strides = [1, 1, 1]} : vector<18x16x32xf32> to vector<3x16x32xf32>
      %c0_128 = arith.constant 0 : index
      %c0_129 = arith.constant 0 : index
      %c0_130 = arith.constant 0 : index
      %c0_131 = arith.constant 0 : index
      %140 = vector.load %arg13[%c0_128, %c0_129, %c0_130, %c0_131] : memref<1x3x16x32xf32, #tpu.memory_space<vmem>>, vector<1x3x16x32xf32>
      %141 = vector.shape_cast %140 : vector<1x3x16x32xf32> to vector<3x16x32xf32>
      %142 = vector.shape_cast %139 : vector<3x16x32xf32> to vector<1x3x16x32xf32>
      tpu.vector_store %arg13[%c0_128, %c0_129, %c0_130, %c0_131], %142 {strides = array<i32>} : memref<1x3x16x32xf32, #tpu.memory_space<vmem>>, vector<1x3x16x32xf32>,
      %143 = vector.extract_strided_slice %114 {offsets = [9, 0, 0], sizes = [3, 16, 32], strides = [1, 1, 1]} : vector<18x16x32xf32> to vector<3x16x32xf32>
      %c0_132 = arith.constant 0 : index
      %c0_133 = arith.constant 0 : index
      %c0_134 = arith.constant 0 : index
      %c0_135 = arith.constant 0 : index
      %144 = vector.load %arg14[%c0_132, %c0_133, %c0_134, %c0_135] : memref<1x3x16x32xf32, #tpu.memory_space<vmem>>, vector<1x3x16x32xf32>
      %145 = vector.shape_cast %144 : vector<1x3x16x32xf32> to vector<3x16x32xf32>
      %146 = vector.shape_cast %143 : vector<3x16x32xf32> to vector<1x3x16x32xf32>
      tpu.vector_store %arg14[%c0_132, %c0_133, %c0_134, %c0_135], %146 {strides = array<i32>} : memref<1x3x16x32xf32, #tpu.memory_space<vmem>>, vector<1x3x16x32xf32>,
      %147 = vector.extract_strided_slice %114 {offsets = [12, 0, 0], sizes = [3, 16, 32], strides = [1, 1, 1]} : vector<18x16x32xf32> to vector<3x16x32xf32>
      %c0_136 = arith.constant 0 : index
      %c0_137 = arith.constant 0 : index
      %c0_138 = arith.constant 0 : index
      %c0_139 = arith.constant 0 : index
      %148 = vector.load %arg15[%c0_136, %c0_137, %c0_138, %c0_139] : memref<1x3x16x32xf32, #tpu.memory_space<vmem>>, vector<1x3x16x32xf32>
      %149 = vector.shape_cast %148 : vector<1x3x16x32xf32> to vector<3x16x32xf32>
      %150 = vector.shape_cast %147 : vector<3x16x32xf32> to vector<1x3x16x32xf32>
      tpu.vector_store %arg15[%c0_136, %c0_137, %c0_138, %c0_139], %150 {strides = array<i32>} : memref<1x3x16x32xf32, #tpu.memory_space<vmem>>, vector<1x3x16x32xf32>,
      %151 = vector.extract_strided_slice %114 {offsets = [15, 0, 0], sizes = [3, 16, 32], strides = [1, 1, 1]} : vector<18x16x32xf32> to vector<3x16x32xf32>
      %c0_140 = arith.constant 0 : index
      %c0_141 = arith.constant 0 : index
      %c0_142 = arith.constant 0 : index
      %c0_143 = arith.constant 0 : index
      %152 = vector.load %arg16[%c0_140, %c0_141, %c0_142, %c0_143] : memref<1x3x16x32xf32, #tpu.memory_space<vmem>>, vector<1x3x16x32xf32>
      %153 = vector.shape_cast %152 : vector<1x3x16x32xf32> to vector<3x16x32xf32>
      %154 = vector.shape_cast %151 : vector<3x16x32xf32> to vector<1x3x16x32xf32>
      tpu.vector_store %arg16[%c0_140, %c0_141, %c0_142, %c0_143], %154 {strides = array<i32>} : memref<1x3x16x32xf32, #tpu.memory_space<vmem>>, vector<1x3x16x32xf32>,
    } else {
    }
    return
  }
  func.func @transform_0(%arg0: i32, %arg1: i32, %arg2: memref<2x5xf32, #tpu.memory_space<smem>>) -> (i32, i32, i32, i32) {
    %c0_i32 = arith.constant 0 : i32
    %c0_i32_0 = arith.constant 0 : i32
    %c0_i32_1 = arith.constant 0 : i32
    return %arg0, %arg1, %c0_i32, %c0_i32_0 : i32, i32, i32, i32
  }
  func.func @transform_1(%arg0: i32, %arg1: i32, %arg2: memref<2x5xf32, #tpu.memory_space<smem>>) -> (i32, i32, i32, i32) {
    %c0_i32 = arith.constant 0 : i32
    %c0_i32_0 = arith.constant 0 : i32
    %c0_i32_1 = arith.constant 0 : i32
    return %arg0, %arg1, %c0_i32, %c0_i32_0 : i32, i32, i32, i32
  }
  func.func @transform_2(%arg0: i32, %arg1: i32, %arg2: memref<2x5xf32, #tpu.memory_space<smem>>) -> (i32, i32, i32, i32) {
    %c0_i32 = arith.constant 0 : i32
    %c0_i32_0 = arith.constant 0 : i32
    %c0_i32_1 = arith.constant 0 : i32
    return %arg0, %arg1, %c0_i32, %c0_i32_0 : i32, i32, i32, i32
  }
  func.func @transform_3(%arg0: i32, %arg1: i32, %arg2: memref<2x5xf32, #tpu.memory_space<smem>>) -> (i32, i32, i32, i32) {
    %c0_i32 = arith.constant 0 : i32
    %c0_i32_0 = arith.constant 0 : i32
    %c0_i32_1 = arith.constant 0 : i32
    return %arg0, %arg1, %c0_i32, %c0_i32_0 : i32, i32, i32, i32
  }
  func.func @transform_4(%arg0: i32, %arg1: i32, %arg2: memref<2x5xf32, #tpu.memory_space<smem>>) -> (i32, i32, i32, i32) {
    %c0_i32 = arith.constant 0 : i32
    %c0_i32_0 = arith.constant 0 : i32
    %c0_i32_1 = arith.constant 0 : i32
    return %arg0, %arg1, %c0_i32, %c0_i32_0 : i32, i32, i32, i32
  }
  func.func @transform_5(%arg0: i32, %arg1: i32, %arg2: memref<2x5xf32, #tpu.memory_space<smem>>) -> (i32, i32, i32, i32) {
    %c0_i32 = arith.constant 0 : i32
    %c0_i32_0 = arith.constant 0 : i32
    %c0_i32_1 = arith.constant 0 : i32
    return %arg0, %arg1, %c0_i32, %c0_i32_0 : i32, i32, i32, i32
  }
  func.func @transform_6(%arg0: i32, %arg1: i32, %arg2: memref<2x5xf32, #tpu.memory_space<smem>>) -> (i32, i32, i32) {
    %c0_i32 = arith.constant 0 : i32
    %c0_i32_0 = arith.constant 0 : i32
    %c0_i32_1 = arith.constant 0 : i32
    return %arg0, %c0_i32, %c0_i32_0 : i32, i32, i32
  }
  func.func @transform_7(%arg0: i32, %arg1: i32, %arg2: memref<2x5xf32, #tpu.memory_space<smem>>) -> (i32, i32, i32) {
    %c0_i32 = arith.constant 0 : i32
    %c0_i32_0 = arith.constant 0 : i32
    %c0_i32_1 = arith.constant 0 : i32
    return %arg0, %c0_i32, %c0_i32_0 : i32, i32, i32
  }
  func.func @transform_8(%arg0: i32, %arg1: i32, %arg2: memref<2x5xf32, #tpu.memory_space<smem>>) -> (i32, i32, i32, i32) {
    %c0_i32 = arith.constant 0 : i32
    %c0_i32_0 = arith.constant 0 : i32
    %c0_i32_1 = arith.constant 0 : i32
    return %arg0, %arg1, %c0_i32, %c0_i32_0 : i32, i32, i32, i32
  }
  func.func @transform_9(%arg0: i32, %arg1: i32, %arg2: memref<2x5xf32, #tpu.memory_space<smem>>) -> (i32, i32, i32, i32) {
    %c0_i32 = arith.constant 0 : i32
    %c0_i32_0 = arith.constant 0 : i32
    %c0_i32_1 = arith.constant 0 : i32
    return %arg0, %arg1, %c0_i32, %c0_i32_0 : i32, i32, i32, i32
  }
  func.func @transform_10(%arg0: i32, %arg1: i32, %arg2: memref<2x5xf32, #tpu.memory_space<smem>>) -> (i32, i32, i32, i32) {
    %c0_i32 = arith.constant 0 : i32
    %c0_i32_0 = arith.constant 0 : i32
    %c0_i32_1 = arith.constant 0 : i32
    return %arg0, %arg1, %c0_i32, %c0_i32_0 : i32, i32, i32, i32
  }
  func.func @transform_11(%arg0: i32, %arg1: i32, %arg2: memref<2x5xf32, #tpu.memory_space<smem>>) -> (i32, i32, i32, i32) {
    %c0_i32 = arith.constant 0 : i32
    %c0_i32_0 = arith.constant 0 : i32
    %c0_i32_1 = arith.constant 0 : i32
    return %arg0, %arg1, %c0_i32, %c0_i32_0 : i32, i32, i32, i32
  }
  func.func @transform_12(%arg0: i32, %arg1: i32, %arg2: memref<2x5xf32, #tpu.memory_space<smem>>) -> (i32, i32, i32, i32) {
    %c0_i32 = arith.constant 0 : i32
    %c0_i32_0 = arith.constant 0 : i32
    %c0_i32_1 = arith.constant 0 : i32
    return %arg0, %arg1, %c0_i32, %c0_i32_0 : i32, i32, i32, i32
  }
  func.func @transform_13(%arg0: i32, %arg1: i32, %arg2: memref<2x5xf32, #tpu.memory_space<smem>>) -> (i32, i32, i32, i32) {
    %c0_i32 = arith.constant 0 : i32
    %c0_i32_0 = arith.constant 0 : i32
    %c0_i32_1 = arith.constant 0 : i32
    return %arg0, %arg1, %c0_i32, %c0_i32_0 : i32, i32, i32, i32
  }
}

</mosaic_0001>

<llo_original>
// kernel: _forward_impl.1
$region0: #{_forward_impl.1}
  #allocation0 [shape = 'u32[]', space=smem, size = 0x4, offset = 0x4, fixed_abs, tag = 'smem constant byte address 0x4 - core index']
  #allocation1 [shape = 'u32[144,128]{1,0:T(1,128)}', space=vmem, size = 0x12000, scoped, tag = 'internal scratch']
  #allocation2 [shape = 'bf16[288,40]{1,0:T(16,128)(2,1)}', space=vmem, size = 0x12000, scoped, tag = 'scratch operand']
  #allocation3 [shape = 's32[1]{0}', space=sflag, size = 0x4, scoped, tag = 'scoped memory for _forward_impl.1']
  #allocation4 [shape = 'u8[1024]{0}', space=smem, size = 0x400, scoped, tag = 'prefetched SMEM operand 0']
  %s0 = inlined_call_operand.vmem [shape: f32[2,5], index: 0, kind: input, shape index: {}]
  %s1 = inlined_call_operand.vmem [shape: f32[2,3,24,40], index: 1, kind: input, shape index: {}]
  %s2 = inlined_call_operand.vmem [shape: f32[2,3,24,40], index: 2, kind: input, shape index: {}]
  %s3 = inlined_call_operand.vmem [shape: f32[2,3,24,40], index: 3, kind: input, shape index: {}]
  %s4 = inlined_call_operand.vmem [shape: f32[2,3,24,40], index: 4, kind: input, shape index: {}]
  %s5 = inlined_call_operand.vmem [shape: f32[2,3,24,40], index: 5, kind: input, shape index: {}]
  %s6 = inlined_call_operand.vmem [shape: f32[2,3,24,40], index: 6, kind: input, shape index: {}]
  %s7 = inlined_call_operand.vmem [shape: bf16[2,16,24], index: 7, kind: input, shape index: {}]
  %s8 = inlined_call_operand.vmem [shape: bf16[2,40,32], index: 8, kind: input, shape index: {}]
  %s9 = inlined_call_operand.hbm [shape: f32[2,3,16,32], index: 9, kind: output, shape index: {0}]
  %s10 = inlined_call_operand.hbm [shape: f32[2,3,16,32], index: 10, kind: output, shape index: {1}]
  %s11 = inlined_call_operand.hbm [shape: f32[2,3,16,32], index: 11, kind: output, shape index: {2}]
  %s12 = inlined_call_operand.hbm [shape: f32[2,3,16,32], index: 12, kind: output, shape index: {3}]
  %s13 = inlined_call_operand.hbm [shape: f32[2,3,16,32], index: 13, kind: output, shape index: {4}]
  %s14 = inlined_call_operand.hbm [shape: f32[2,3,16,32], index: 14, kind: output, shape index: {5}]
  %15 = xla_tuple %s9, %s10, %s11, %s12, %s13, %s14
  %s16 = sld [smem:[#allocation0]]
  $region113: #{_forward_impl.1} parent=0
    _
  %s18 = ssub.s32 1, %s16
  %s19 = scalar_select 0, %s18, %s16
  %s20 = sshll.u32 %s0, 4
  %s21 = int_to_ptr.vmem [resolvable:$true] %s20
  %23 = dma.vmem_to_smem %s21, 32, [#allocation4], [#allocation3]
  %24 = dma.done [#allocation3], 32
  %25 = sfence
  $region1: #{_forward_impl.1} parent=0
    #allocation5 [shape = 'u8[49152]{0}', space=vmem, size = 0xc000, scoped, tag = 'output window, operand 0']
    #allocation6 [shape = 's32[2]{0}', space=sflag, size = 0x8, scoped, tag = 'scoped memory for _forward_impl.1']
    #allocation7 [shape = 'u8[49152]{0}', space=vmem, size = 0xc000, scoped, tag = 'output window, operand 1']
    #allocation8 [shape = 's32[2]{0}', space=sflag, size = 0x8, scoped, tag = 'scoped memory for _forward_impl.1']
    #allocation9 [shape = 'u8[49152]{0}', space=vmem, size = 0xc000, scoped, tag = 'output window, operand 2']
    #allocation10 [shape = 'u8[49152]{0}', space=vmem, size = 0xc000, scoped, tag = 'output window, operand 3']
    #allocation11 [shape = 's32[2]{0}', space=sflag, size = 0x8, scoped, tag = 'scoped memory for _forward_impl.1']
    #allocation12 [shape = 'u8[49152]{0}', space=vmem, size = 0xc000, scoped, tag = 'output window, operand 4']
    #allocation13 [shape = 'u8[49152]{0}', space=vmem, size = 0xc000, scoped, tag = 'output window, operand 5']
    #allocation14 [shape = 's32[2]{0}', space=sflag, size = 0x8, scoped, tag = 'scoped memory for _forward_impl.1']
    %26 = vsyncpa [#allocation6], 0
    %s27 = scalar_lea.sflag [#allocation6], 1
    %28 = vsyncpa %s27, 0
    %29 = vsyncpa [#allocation8], 0
    %s30 = scalar_lea.sflag [#allocation8], 1
    %31 = vsyncpa %s30, 0
    %32 = vsyncpa [#allocation11], 0
    %s33 = scalar_lea.sflag [#allocation11], 1
    %34 = vsyncpa %s33, 0
    %35 = vsyncpa [#allocation14], 0
    %s36 = scalar_lea.sflag [#allocation14], 1
    %37 = vsyncpa %s36, 0
    loop: start=0, step=1, limit=4
    $region2: #{_forward_impl.1} parent=1 // loop_pre_header
      _
    $region3: #{_forward_impl.1} parent=1 // loop_header
      %s39 = sphi 0, %s43
      %p40 = scmp.ge.s32.totalorder %s39, 4
      %s46 = sphi 0, %s58
      %s47 = sphi 0, %s54
      %s48 = sphi 0, %s46
      %s49 = sphi 0, %s47
      %s50 = sphi 0, %s48
      %s51 = sphi 0, %s49
      %s63 = sphi 0, %s65
      %s66 = sphi 0, %s63
      %s67 = sphi 0, %s66
      %s83 = sphi 0, %s67
      %s91 = sphi 0, %s93
      %s94 = sphi 0, %s91
      %s95 = sphi 0, %s94
      %s111 = sphi 0, %s95
      %s119 = sphi 0, %s121
      %s122 = sphi 0, %s119
      %s123 = sphi 0, %s122
      %s139 = sphi 0, %s123
      %s147 = sphi 0, %s149
      %s150 = sphi 0, %s147
      %s151 = sphi 0, %s150
      %s167 = sphi 0, %s151
      %s175 = sphi 0, %s177
      %s178 = sphi 0, %s175
      %s179 = sphi 0, %s178
      %s195 = sphi 0, %s179
      %s203 = sphi 0, %s205
      %s206 = sphi 0, %s203
      %s207 = sphi 0, %s206
      %s223 = sphi 0, %s207
      %s229 = sphi 0, %s231
      %s232 = sphi 0, %s229
      %s233 = sphi 0, %s232
      %s249 = sphi 0, %s233
      %s255 = sphi 0, %s257
      %s258 = sphi 0, %s255
      %s259 = sphi 0, %s258
      %s275 = sphi 0, %s259
      %s283 = sphi 0, %s285
      %s286 = sphi 0, %s283
      %s287 = sphi 0, %s286
      %s303 = sphi 0, %s287
      %s311 = sphi 0, %s313
      %s314 = sphi 0, %s311
      %s315 = sphi 0, %s314
      %s331 = sphi 0, %s315
      %s339 = sphi 0, %s341
      %s342 = sphi 0, %s339
      %s343 = sphi 0, %s342
      %s359 = sphi 0, %s343
      %s367 = sphi 0, %s369
      %s370 = sphi 0, %s367
      %s371 = sphi 0, %s370
      %s387 = sphi 0, %s371
      %s395 = sphi 0, %s397
      %s398 = sphi 0, %s395
      %s399 = sphi 0, %s398
      %s415 = sphi 0, %s399
      %s423 = sphi 0, %s425
      %s426 = sphi 0, %s423
      %s427 = sphi 0, %s426
      %s443 = sphi 0, %s427
    $region4: #{_forward_impl.1} parent=1 // loop_header_branch
      %42 = sbr.rel (%p40) target = $region8
    $region5: #{_forward_impl.1} parent=1 // loop_body
      %s44 = ssub.s32 %s39, 1
      %s45 = ssub.s32 %s39, 2
      %s52 = sadd.s32 1, %s47
      %p53 = scmp.ge.s32.totalorder %s52, 1
      %s54 = scalar_select %p53, 0, %s52
      %s55 = sadd.s32 1, %s46
      %s56 = scalar_select %p53, %s55, %s46
      %p57 = scmp.ge.s32.totalorder %s56, 2
      %s58 = scalar_select %p57, 0, %s56
      %s59 = ssub.s32 %s46, %s58
      %s60 = ssub.s32 %s47, %s54
      %s61 = sor.u32 %s59, %s60
      %p62 = scmp.eq.s32.totalorder %s61, 0
      %s64 = sadd.s32 %s63, 1
      %s65 = scalar_select %p62, %s63, %s64
      %p68 = pneg %p62
      %p69 = scmp.eq.s32.totalorder %s39, 1
      %p70 = por %p68, %p69
      %p71 = scmp.ne.s32.totalorder %s63, %s66
      %p72 = scmp.eq.s32.totalorder %s39, 0
      %p73 = por %p71, %p72
      %p74 = scmp.ne.s32.totalorder %s63, %s66
      %p75 = scmp.eq.s32.totalorder %s44, 1
      %p76 = por %p74, %p75
      %p77 = scmp.ne.s32.totalorder %s66, %s67
      %p78 = scmp.eq.s32.totalorder %s44, 0
      %p79 = por %p77, %p78
      %p80 = scmp.ne.s32.totalorder %s66, %s67
      %p81 = scmp.eq.s32.totalorder %s45, 1
      %p82 = por %p80, %p81
      %p84 = scmp.ne.s32.totalorder %s67, %s83
      %p85 = scmp.eq.s32.totalorder %s45, 0
      %p86 = por %p84, %p85
      %s87 = ssub.s32 %s46, %s58
      %s88 = ssub.s32 %s47, %s54
      %s89 = sor.u32 %s87, %s88
      %p90 = scmp.eq.s32.totalorder %s89, 0
      %s92 = sadd.s32 %s91, 1
      %s93 = scalar_select %p90, %s91, %s92
      %p96 = pneg %p90
      %p97 = scmp.eq.s32.totalorder %s39, 1
      %p98 = por %p96, %p97
      %p99 = scmp.ne.s32.totalorder %s91, %s94
      %p100 = scmp.eq.s32.totalorder %s39, 0
      %p101 = por %p99, %p100
      %p102 = scmp.ne.s32.totalorder %s91, %s94
      %p103 = scmp.eq.s32.totalorder %s44, 1
      %p104 = por %p102, %p103
      %p105 = scmp.ne.s32.totalorder %s94, %s95
      %p106 = scmp.eq.s32.totalorder %s44, 0
      %p107 = por %p105, %p106
      %p108 = scmp.ne.s32.totalorder %s94, %s95
      %p109 = scmp.eq.s32.totalorder %s45, 1
      %p110 = por %p108, %p109
      %p112 = scmp.ne.s32.totalorder %s95, %s111
      %p113 = scmp.eq.s32.totalorder %s45, 0
      %p114 = por %p112, %p113
      %s115 = ssub.s32 %s46, %s58
      %s116 = ssub.s32 %s47, %s54
      %s117 = sor.u32 %s115, %s116
      %p118 = scmp.eq.s32.totalorder %s117, 0
      %s120 = sadd.s32 %s119, 1
      %s121 = scalar_select %p118, %s119, %s120
      %p124 = pneg %p118
      %p125 = scmp.eq.s32.totalorder %s39, 1
      %p126 = por %p124, %p125
      %p127 = scmp.ne.s32.totalorder %s119, %s122
      %p128 = scmp.eq.s32.totalorder %s39, 0
      %p129 = por %p127, %p128
      %p130 = scmp.ne.s32.totalorder %s119, %s122
      %p131 = scmp.eq.s32.totalorder %s44, 1
      %p132 = por %p130, %p131
      %p133 = scmp.ne.s32.totalorder %s122, %s123
      %p134 = scmp.eq.s32.totalorder %s44, 0
      %p135 = por %p133, %p134
      %p136 = scmp.ne.s32.totalorder %s122, %s123
      %p137 = scmp.eq.s32.totalorder %s45, 1
      %p138 = por %p136, %p137
      %p140 = scmp.ne.s32.totalorder %s123, %s139
      %p141 = scmp.eq.s32.totalorder %s45, 0
      %p142 = por %p140, %p141
      %s143 = ssub.s32 %s46, %s58
      %s144 = ssub.s32 %s47, %s54
      %s145 = sor.u32 %s143, %s144
      %p146 = scmp.eq.s32.totalorder %s145, 0
      %s148 = sadd.s32 %s147, 1
      %s149 = scalar_select %p146, %s147, %s148
      %p152 = pneg %p146
      %p153 = scmp.eq.s32.totalorder %s39, 1
      %p154 = por %p152, %p153
      %p155 = scmp.ne.s32.totalorder %s147, %s150
      %p156 = scmp.eq.s32.totalorder %s39, 0
      %p157 = por %p155, %p156
      %p158 = scmp.ne.s32.totalorder %s147, %s150
      %p159 = scmp.eq.s32.totalorder %s44, 1
      %p160 = por %p158, %p159
      %p161 = scmp.ne.s32.totalorder %s150, %s151
      %p162 = scmp.eq.s32.totalorder %s44, 0
      %p163 = por %p161, %p162
      %p164 = scmp.ne.s32.totalorder %s150, %s151
      %p165 = scmp.eq.s32.totalorder %s45, 1
      %p166 = por %p164, %p165
      %p168 = scmp.ne.s32.totalorder %s151, %s167
      %p169 = scmp.eq.s32.totalorder %s45, 0
      %p170 = por %p168, %p169
      %s171 = ssub.s32 %s46, %s58
      %s172 = ssub.s32 %s47, %s54
      %s173 = sor.u32 %s171, %s172
      %p174 = scmp.eq.s32.totalorder %s173, 0
      %s176 = sadd.s32 %s175, 1
      %s177 = scalar_select %p174, %s175, %s176
      %p180 = pneg %p174
      %p181 = scmp.eq.s32.totalorder %s39, 1
      %p182 = por %p180, %p181
      %p183 = scmp.ne.s32.totalorder %s175, %s178
      %p184 = scmp.eq.s32.totalorder %s39, 0
      %p185 = por %p183, %p184
      %p186 = scmp.ne.s32.totalorder %s175, %s178
      %p187 = scmp.eq.s32.totalorder %s44, 1
      %p188 = por %p186, %p187
      %p189 = scmp.ne.s32.totalorder %s178, %s179
      %p190 = scmp.eq.s32.totalorder %s44, 0
      %p191 = por %p189, %p190
      %p192 = scmp.ne.s32.totalorder %s178, %s179
      %p193 = scmp.eq.s32.totalorder %s45, 1
      %p194 = por %p192, %p193
      %p196 = scmp.ne.s32.totalorder %s179, %s195
      %p197 = scmp.eq.s32.totalorder %s45, 0
      %p198 = por %p196, %p197
      %s199 = ssub.s32 %s46, %s58
      %s200 = ssub.s32 %s47, %s54
      %s201 = sor.u32 %s199, %s200
      %p202 = scmp.eq.s32.totalorder %s201, 0
      %s204 = sadd.s32 %s203, 1
      %s205 = scalar_select %p202, %s203, %s204
      %p208 = pneg %p202
      %p209 = scmp.eq.s32.totalorder %s39, 1
      %p210 = por %p208, %p209
      %p211 = scmp.ne.s32.totalorder %s203, %s206
      %p212 = scmp.eq.s32.totalorder %s39, 0
      %p213 = por %p211, %p212
      %p214 = scmp.ne.s32.totalorder %s203, %s206
      %p215 = scmp.eq.s32.totalorder %s44, 1
      %p216 = por %p214, %p215
      %p217 = scmp.ne.s32.totalorder %s206, %s207
      %p218 = scmp.eq.s32.totalorder %s44, 0
      %p219 = por %p217, %p218
      %p220 = scmp.ne.s32.totalorder %s206, %s207
      %p221 = scmp.eq.s32.totalorder %s45, 1
      %p222 = por %p220, %p221
      %p224 = scmp.ne.s32.totalorder %s207, %s223
      %p225 = scmp.eq.s32.totalorder %s45, 0
      %p226 = por %p224, %p225
      %s227 = ssub.s32 %s46, %s58
      %p228 = scmp.eq.s32.totalorder %s227, 0
      %s230 = sadd.s32 %s229, 1
      %s231 = scalar_select %p228, %s229, %s230
      %p234 = pneg %p228
      %p235 = scmp.eq.s32.totalorder %s39, 1
      %p236 = por %p234, %p235
      %p237 = scmp.ne.s32.totalorder %s229, %s232
      %p238 = scmp.eq.s32.totalorder %s39, 0
      %p239 = por %p237, %p238
      %p240 = scmp.ne.s32.totalorder %s229, %s232
      %p241 = scmp.eq.s32.totalorder %s44, 1
      %p242 = por %p240, %p241
      %p243 = scmp.ne.s32.totalorder %s232, %s233
      %p244 = scmp.eq.s32.totalorder %s44, 0
      %p245 = por %p243, %p244
      %p246 = scmp.ne.s32.totalorder %s232, %s233
      %p247 = scmp.eq.s32.totalorder %s45, 1
      %p248 = por %p246, %p247
      %p250 = scmp.ne.s32.totalorder %s233, %s249
      %p251 = scmp.eq.s32.totalorder %s45, 0
      %p252 = por %p250, %p251
      %s253 = ssub.s32 %s46, %s58
      %p254 = scmp.eq.s32.totalorder %s253, 0
      %s256 = sadd.s32 %s255, 1
      %s257 = scalar_select %p254, %s255, %s256
      %p260 = pneg %p254
      %p261 = scmp.eq.s32.totalorder %s39, 1
      %p262 = por %p260, %p261
      %p263 = scmp.ne.s32.totalorder %s255, %s258
      %p264 = scmp.eq.s32.totalorder %s39, 0
      %p265 = por %p263, %p264
      %p266 = scmp.ne.s32.totalorder %s255, %s258
      %p267 = scmp.eq.s32.totalorder %s44, 1
      %p268 = por %p266, %p267
      %p269 = scmp.ne.s32.totalorder %s258, %s259
      %p270 = scmp.eq.s32.totalorder %s44, 0
      %p271 = por %p269, %p270
      %p272 = scmp.ne.s32.totalorder %s258, %s259
      %p273 = scmp.eq.s32.totalorder %s45, 1
      %p274 = por %p272, %p273
      %p276 = scmp.ne.s32.totalorder %s259, %s275
      %p277 = scmp.eq.s32.totalorder %s45, 0
      %p278 = por %p276, %p277
      %s279 = ssub.s32 %s46, %s58
      %s280 = ssub.s32 %s47, %s54
      %s281 = sor.u32 %s279, %s280
      %p282 = scmp.eq.s32.totalorder %s281, 0
      %s284 = sadd.s32 %s283, 1
      %s285 = scalar_select %p282, %s283, %s284
      %p288 = pneg %p282
      %p289 = scmp.eq.s32.totalorder %s39, 1
      %p290 = por %p288, %p289
      %p291 = scmp.ne.s32.totalorder %s283, %s286
      %p292 = scmp.eq.s32.totalorder %s39, 0
      %p293 = por %p291, %p292
      %p294 = scmp.ne.s32.totalorder %s283, %s286
      %p295 = scmp.eq.s32.totalorder %s44, 1
      %p296 = por %p294, %p295
      %p297 = scmp.ne.s32.totalorder %s286, %s287
      %p298 = scmp.eq.s32.totalorder %s44, 0
      %p299 = por %p297, %p298
      %p300 = scmp.ne.s32.totalorder %s286, %s287
      %p301 = scmp.eq.s32.totalorder %s45, 1
      %p302 = por %p300, %p301
      %p304 = scmp.ne.s32.totalorder %s287, %s303
      %p305 = scmp.eq.s32.totalorder %s45, 0
      %p306 = por %p304, %p305
      %s307 = ssub.s32 %s46, %s58
      %s308 = ssub.s32 %s47, %s54
      %s309 = sor.u32 %s307, %s308
      %p310 = scmp.eq.s32.totalorder %s309, 0
      %s312 = sadd.s32 %s311, 1
      %s313 = scalar_select %p310, %s311, %s312
      %p316 = pneg %p310
      %p317 = scmp.eq.s32.totalorder %s39, 1
      %p318 = por %p316, %p317
      %p319 = scmp.ne.s32.totalorder %s311, %s314
      %p320 = scmp.eq.s32.totalorder %s39, 0
      %p321 = por %p319, %p320
      %p322 = scmp.ne.s32.totalorder %s311, %s314
      %p323 = scmp.eq.s32.totalorder %s44, 1
      %p324 = por %p322, %p323
      %p325 = scmp.ne.s32.totalorder %s314, %s315
      %p326 = scmp.eq.s32.totalorder %s44, 0
      %p327 = por %p325, %p326
      %p328 = scmp.ne.s32.totalorder %s314, %s315
      %p329 = scmp.eq.s32.totalorder %s45, 1
      %p330 = por %p328, %p329
      %p332 = scmp.ne.s32.totalorder %s315, %s331
      %p333 = scmp.eq.s32.totalorder %s45, 0
      %p334 = por %p332, %p333
      %s335 = ssub.s32 %s46, %s58
      %s336 = ssub.s32 %s47, %s54
      %s337 = sor.u32 %s335, %s336
      %p338 = scmp.eq.s32.totalorder %s337, 0
      %s340 = sadd.s32 %s339, 1
      %s341 = scalar_select %p338, %s339, %s340
      %p344 = pneg %p338
      %p345 = scmp.eq.s32.totalorder %s39, 1
      %p346 = por %p344, %p345
      %p347 = scmp.ne.s32.totalorder %s339, %s342
      %p348 = scmp.eq.s32.totalorder %s39, 0
      %p349 = por %p347, %p348
      %p350 = scmp.ne.s32.totalorder %s339, %s342
      %p351 = scmp.eq.s32.totalorder %s44, 1
      %p352 = por %p350, %p351
      %p353 = scmp.ne.s32.totalorder %s342, %s343
      %p354 = scmp.eq.s32.totalorder %s44, 0
      %p355 = por %p353, %p354
      %p356 = scmp.ne.s32.totalorder %s342, %s343
      %p357 = scmp.eq.s32.totalorder %s45, 1
      %p358 = por %p356, %p357
      %p360 = scmp.ne.s32.totalorder %s343, %s359
      %p361 = scmp.eq.s32.totalorder %s45, 0
      %p362 = por %p360, %p361
      %s363 = ssub.s32 %s46, %s58
      %s364 = ssub.s32 %s47, %s54
      %s365 = sor.u32 %s363, %s364
      %p366 = scmp.eq.s32.totalorder %s365, 0
      %s368 = sadd.s32 %s367, 1
      %s369 = scalar_select %p366, %s367, %s368
      %p372 = pneg %p366
      %p373 = scmp.eq.s32.totalorder %s39, 1
      %p374 = por %p372, %p373
      %p375 = scmp.ne.s32.totalorder %s367, %s370
      %p376 = scmp.eq.s32.totalorder %s39, 0
      %p377 = por %p375, %p376
      %p378 = scmp.ne.s32.totalorder %s367, %s370
      %p379 = scmp.eq.s32.totalorder %s44, 1
      %p380 = por %p378, %p379
      %p381 = scmp.ne.s32.totalorder %s370, %s371
      %p382 = scmp.eq.s32.totalorder %s44, 0
      %p383 = por %p381, %p382
      %p384 = scmp.ne.s32.totalorder %s370, %s371
      %p385 = scmp.eq.s32.totalorder %s45, 1
      %p386 = por %p384, %p385
      %p388 = scmp.ne.s32.totalorder %s371, %s387
      %p389 = scmp.eq.s32.totalorder %s45, 0
      %p390 = por %p388, %p389
      %s391 = ssub.s32 %s46, %s58
      %s392 = ssub.s32 %s47, %s54
      %s393 = sor.u32 %s391, %s392
      %p394 = scmp.eq.s32.totalorder %s393, 0
      %s396 = sadd.s32 %s395, 1
      %s397 = scalar_select %p394, %s395, %s396
      %p400 = pneg %p394
      %p401 = scmp.eq.s32.totalorder %s39, 1
      %p402 = por %p400, %p401
      %p403 = scmp.ne.s32.totalorder %s395, %s398
      %p404 = scmp.eq.s32.totalorder %s39, 0
      %p405 = por %p403, %p404
      %p406 = scmp.ne.s32.totalorder %s395, %s398
      %p407 = scmp.eq.s32.totalorder %s44, 1
      %p408 = por %p406, %p407
      %p409 = scmp.ne.s32.totalorder %s398, %s399
      %p410 = scmp.eq.s32.totalorder %s44, 0
      %p411 = por %p409, %p410
      %p412 = scmp.ne.s32.totalorder %s398, %s399
      %p413 = scmp.eq.s32.totalorder %s45, 1
      %p414 = por %p412, %p413
      %p416 = scmp.ne.s32.totalorder %s399, %s415
      %p417 = scmp.eq.s32.totalorder %s45, 0
      %p418 = por %p416, %p417
      %s419 = ssub.s32 %s46, %s58
      %s420 = ssub.s32 %s47, %s54
      %s421 = sor.u32 %s419, %s420
      %p422 = scmp.eq.s32.totalorder %s421, 0
      %s424 = sadd.s32 %s423, 1
      %s425 = scalar_select %p422, %s423, %s424
      %p428 = pneg %p422
      %p429 = scmp.eq.s32.totalorder %s39, 1
      %p430 = por %p428, %p429
      %p431 = scmp.ne.s32.totalorder %s423, %s426
      %p432 = scmp.eq.s32.totalorder %s39, 0
      %p433 = por %p431, %p432
      %p434 = scmp.ne.s32.totalorder %s423, %s426
      %p435 = scmp.eq.s32.totalorder %s44, 1
      %p436 = por %p434, %p435
      %p437 = scmp.ne.s32.totalorder %s426, %s427
      %p438 = scmp.eq.s32.totalorder %s44, 0
      %p439 = por %p437, %p438
      %p440 = scmp.ne.s32.totalorder %s426, %s427
      %p441 = scmp.eq.s32.totalorder %s45, 1
      %p442 = por %p440, %p441
      %p444 = scmp.ne.s32.totalorder %s427, %s443
      %p445 = scmp.eq.s32.totalorder %s45, 0
      %p446 = por %p444, %p445
      %p447 = scmp.le.s32.totalorder 1, %s39
      %p448 = scmp.lt.s32.totalorder %s39, 3
      %p449 = pnand %p447, %p448
      %p450 = pneg %p449
      // Predicated region
      $region9: #{_forward_impl.1} parent=5 // pred_check
        _
      $region10: #{_forward_impl.1} parent=5 // pred_check_branch
        %452 = sbr.rel (%p449) target = $region12
      $region11: #{_forward_impl.1} parent=5 // pred_region
        %s453 = ssub.s32 %s39, 1
      $region12: #{_forward_impl.1} parent=5 // pred_fallthru
        _
      %p454 = scmp.lt.s32.totalorder %s39, 2
      // Predicated region
      $region13: #{_forward_impl.1} parent=5 // pred_check
        %p455 = pneg %p454
      $region14: #{_forward_impl.1} parent=5 // pred_check_branch
        %457 = sbr.rel (%p455) target = $region16
      $region15: #{_forward_impl.1} parent=5 // pred_region
        // Predicated region
        $region17: #{_forward_impl.1} parent=15 // pred_check
          %p458 = pneg %p73
        $region18: #{_forward_impl.1} parent=15 // pred_check_branch
          %460 = sbr.rel (%p458) target = $region20
        $region19: #{_forward_impl.1} parent=15 // pred_region
          %s461 = smul.u32 3, %s47
          %p462 = scmp.lt.s32.totalorder %s46, 1
          %s463 = scalar_select %p462, %s46, 1
          %p464 = scmp.lt.s32.totalorder %s461, 2
          %s465 = scalar_select %p464, %s461, 2
          %s466 = smul.addr %s465, 3
          %s467 = smul.addr %s463, 9
          %s468 = sadd.s32 %s466, %s467
          %s469 = smul.addr %s468, 8
          %s470 = scalar_lea.vmem %s1, %s469
          %s471 = smul.u32 3, %s47
        $region20: #{_forward_impl.1} parent=15 // pred_fallthru
          _
        // Predicated region
        $region21: #{_forward_impl.1} parent=15 // pred_check
          %p472 = pneg %p101
        $region22: #{_forward_impl.1} parent=15 // pred_check_branch
          %474 = sbr.rel (%p472) target = $region24
        $region23: #{_forward_impl.1} parent=15 // pred_region
          %s475 = smul.u32 3, %s47
          %p476 = scmp.lt.s32.totalorder %s46, 1
          %s477 = scalar_select %p476, %s46, 1
          %p478 = scmp.lt.s32.totalorder %s475, 2
          %s479 = scalar_select %p478, %s475, 2
          %s480 = smul.addr %s479, 3
          %s481 = smul.addr %s477, 9
          %s482 = sadd.s32 %s480, %s481
          %s483 = smul.addr %s482, 8
          %s484 = scalar_lea.vmem %s2, %s483
          %s485 = smul.u32 3, %s47
        $region24: #{_forward_impl.1} parent=15 // pred_fallthru
          _
        // Predicated region
        $region25: #{_forward_impl.1} parent=15 // pred_check
          %p486 = pneg %p129
        $region26: #{_forward_impl.1} parent=15 // pred_check_branch
          %488 = sbr.rel (%p486) target = $region28
        $region27: #{_forward_impl.1} parent=15 // pred_region
          %s489 = smul.u32 3, %s47
          %p490 = scmp.lt.s32.totalorder %s46, 1
          %s491 = scalar_select %p490, %s46, 1
          %p492 = scmp.lt.s32.totalorder %s489, 2
          %s493 = scalar_select %p492, %s489, 2
          %s494 = smul.addr %s493, 3
          %s495 = smul.addr %s491, 9
          %s496 = sadd.s32 %s494, %s495
          %s497 = smul.addr %s496, 8
          %s498 = scalar_lea.vmem %s3, %s497
          %s499 = smul.u32 3, %s47
        $region28: #{_forward_impl.1} parent=15 // pred_fallthru
          _
        // Predicated region
        $region29: #{_forward_impl.1} parent=15 // pred_check
          %p500 = pneg %p157
        $region30: #{_forward_impl.1} parent=15 // pred_check_branch
          %502 = sbr.rel (%p500) target = $region32
        $region31: #{_forward_impl.1} parent=15 // pred_region
          %s503 = smul.u32 3, %s47
          %p504 = scmp.lt.s32.totalorder %s46, 1
          %s505 = scalar_select %p504, %s46, 1
          %p506 = scmp.lt.s32.totalorder %s503, 2
          %s507 = scalar_select %p506, %s503, 2
          %s508 = smul.addr %s507, 3
          %s509 = smul.addr %s505, 9
          %s510 = sadd.s32 %s508, %s509
          %s511 = smul.addr %s510, 8
          %s512 = scalar_lea.vmem %s4, %s511
          %s513 = smul.u32 3, %s47
        $region32: #{_forward_impl.1} parent=15 // pred_fallthru
          _
        // Predicated region
        $region33: #{_forward_impl.1} parent=15 // pred_check
          %p514 = pneg %p185
        $region34: #{_forward_impl.1} parent=15 // pred_check_branch
          %516 = sbr.rel (%p514) target = $region36
        $region35: #{_forward_impl.1} parent=15 // pred_region
          %s517 = smul.u32 3, %s47
          %p518 = scmp.lt.s32.totalorder %s46, 1
          %s519 = scalar_select %p518, %s46, 1
          %p520 = scmp.lt.s32.totalorder %s517, 2
          %s521 = scalar_select %p520, %s517, 2
          %s522 = smul.addr %s521, 3
          %s523 = smul.addr %s519, 9
          %s524 = sadd.s32 %s522, %s523
          %s525 = smul.addr %s524, 8
          %s526 = scalar_lea.vmem %s5, %s525
          %s527 = smul.u32 3, %s47
        $region36: #{_forward_impl.1} parent=15 // pred_fallthru
          _
        // Predicated region
        $region37: #{_forward_impl.1} parent=15 // pred_check
          %p528 = pneg %p213
        $region38: #{_forward_impl.1} parent=15 // pred_check_branch
          %530 = sbr.rel (%p528) target = $region40
        $region39: #{_forward_impl.1} parent=15 // pred_region
          %s531 = smul.u32 3, %s47
          %p532 = scmp.lt.s32.totalorder %s46, 1
          %s533 = scalar_select %p532, %s46, 1
          %p534 = scmp.lt.s32.totalorder %s531, 2
          %s535 = scalar_select %p534, %s531, 2
          %s536 = smul.addr %s535, 3
          %s537 = smul.addr %s533, 9
          %s538 = sadd.s32 %s536, %s537
          %s539 = smul.addr %s538, 8
          %s540 = scalar_lea.vmem %s6, %s539
          %s541 = smul.u32 3, %s47
        $region40: #{_forward_impl.1} parent=15 // pred_fallthru
          _
        // Predicated region
        $region41: #{_forward_impl.1} parent=15 // pred_check
          %p542 = pneg %p239
        $region42: #{_forward_impl.1} parent=15 // pred_check_branch
          %544 = sbr.rel (%p542) target = $region44
        $region43: #{_forward_impl.1} parent=15 // pred_region
          %p545 = scmp.lt.s32.totalorder %s46, 1
          %s546 = scalar_select %p545, %s46, 1
          %s547 = smul.addr %s546, 2
          %s548 = smul.addr %s547, 4
          %s549 = scalar_lea.vmem %s7, %s548
        $region44: #{_forward_impl.1} parent=15 // pred_fallthru
          _
        // Predicated region
        $region45: #{_forward_impl.1} parent=15 // pred_check
          %p550 = pneg %p265
        $region46: #{_forward_impl.1} parent=15 // pred_check_branch
          %552 = sbr.rel (%p550) target = $region48
        $region47: #{_forward_impl.1} parent=15 // pred_region
          %p553 = scmp.lt.s32.totalorder %s46, 1
          %s554 = scalar_select %p553, %s46, 1
          %s555 = smul.addr %s554, 5
          %s556 = smul.addr %s555, 4
          %s557 = scalar_lea.vmem %s8, %s556
        $region48: #{_forward_impl.1} parent=15 // pred_fallthru
          _
      $region16: #{_forward_impl.1} parent=5 // pred_fallthru
        _
      %p558 = scmp.le.s32.totalorder 1, %s39
      %p559 = scmp.lt.s32.totalorder %s39, 3
      %p560 = pnand %p558, %p559
      %p561 = pneg %p560
      // Predicated region
      $region49: #{_forward_impl.1} parent=5 // pred_check
        _
      $region50: #{_forward_impl.1} parent=5 // pred_check_branch
        %563 = sbr.rel (%p560) target = $region52
      $region51: #{_forward_impl.1} parent=5 // pred_region
        %s564 = ssub.s32 %s39, 1
        %s565 = smul.u32 3, %s49
        %p566 = scmp.lt.s32.totalorder %s48, 1
        %s567 = scalar_select %p566, %s48, 1
        %p568 = scmp.lt.s32.totalorder %s565, 2
        %s569 = scalar_select %p568, %s565, 2
        %s570 = smul.addr %s569, 3
        %s571 = smul.addr %s567, 9
        %s572 = sadd.s32 %s570, %s571
        %s573 = smul.addr %s572, 8
        %s574 = scalar_lea.vmem %s1, %s573
        %p575 = pneg %p79
        %p576 = pneg %p76
        %s577 = smul.u32 3, %s49
        %p578 = scmp.lt.s32.totalorder %s48, 1
        %s579 = scalar_select %p578, %s48, 1
        %p580 = scmp.lt.s32.totalorder %s577, 2
        %s581 = scalar_select %p580, %s577, 2
        %s582 = smul.addr %s581, 3
        %s583 = smul.addr %s579, 9
        %s584 = sadd.s32 %s582, %s583
        %s585 = smul.addr %s584, 8
        %s586 = scalar_lea.vmem %s2, %s585
        %p587 = pneg %p107
        %p588 = pneg %p104
        %s589 = smul.u32 3, %s49
        %p590 = scmp.lt.s32.totalorder %s48, 1
        %s591 = scalar_select %p590, %s48, 1
        %p592 = scmp.lt.s32.totalorder %s589, 2
        %s593 = scalar_select %p592, %s589, 2
        %s594 = smul.addr %s593, 3
        %s595 = smul.addr %s591, 9
        %s596 = sadd.s32 %s594, %s595
        %s597 = smul.addr %s596, 8
        %s598 = scalar_lea.vmem %s3, %s597
        %p599 = pneg %p135
        %p600 = pneg %p132
        %s601 = smul.u32 3, %s49
        %p602 = scmp.lt.s32.totalorder %s48, 1
        %s603 = scalar_select %p602, %s48, 1
        %p604 = scmp.lt.s32.totalorder %s601, 2
        %s605 = scalar_select %p604, %s601, 2
        %s606 = smul.addr %s605, 3
        %s607 = smul.addr %s603, 9
        %s608 = sadd.s32 %s606, %s607
        %s609 = smul.addr %s608, 8
        %s610 = scalar_lea.vmem %s4, %s609
        %p611 = pneg %p163
        %p612 = pneg %p160
        %s613 = smul.u32 3, %s49
        %p614 = scmp.lt.s32.totalorder %s48, 1
        %s615 = scalar_select %p614, %s48, 1
        %p616 = scmp.lt.s32.totalorder %s613, 2
        %s617 = scalar_select %p616, %s613, 2
        %s618 = smul.addr %s617, 3
        %s619 = smul.addr %s615, 9
        %s620 = sadd.s32 %s618, %s619
        %s621 = smul.addr %s620, 8
        %s622 = scalar_lea.vmem %s5, %s621
        %p623 = pneg %p191
        %p624 = pneg %p188
        %s625 = smul.u32 3, %s49
        %p626 = scmp.lt.s32.totalorder %s48, 1
        %s627 = scalar_select %p626, %s48, 1
        %p628 = scmp.lt.s32.totalorder %s625, 2
        %s629 = scalar_select %p628, %s625, 2
        %s630 = smul.addr %s629, 3
        %s631 = smul.addr %s627, 9
        %s632 = sadd.s32 %s630, %s631
        %s633 = smul.addr %s632, 8
        %s634 = scalar_lea.vmem %s6, %s633
        %p635 = pneg %p219
        %p636 = pneg %p216
        %p637 = scmp.lt.s32.totalorder %s48, 1
        %s638 = scalar_select %p637, %s48, 1
        %s639 = smul.addr %s638, 2
        %s640 = smul.addr %s639, 4
        %s641 = scalar_lea.vmem %s7, %s640
        %p642 = pneg %p245
        %p643 = pneg %p242
        %p644 = scmp.lt.s32.totalorder %s48, 1
        %s645 = scalar_select %p644, %s48, 1
        %s646 = smul.addr %s645, 5
        %s647 = smul.addr %s646, 4
        %s648 = scalar_lea.vmem %s8, %s647
        %p649 = pneg %p271
        %p650 = pneg %p268
        %p651 = pneg %p299
        %p652 = pneg %p296
        %s653 = sand.u32 %s286, 1
        %s654 = scalar_lea.sflag [#allocation6], %s653
        %s655 = sand.u32 %s286, 1
        %s656 = smul.addr %s655, 48
        %s657 = scalar_lea.vmem [#allocation5], %s656
        %p658 = pneg %p327
        %p659 = pneg %p324
        %s660 = sand.u32 %s44, 1
        %s661 = scalar_lea.sflag [#allocation8], %s660
        %s662 = sand.u32 %s314, 1
        %s663 = smul.addr %s662, 48
        %s664 = scalar_lea.vmem [#allocation7], %s663
        %p665 = pneg %p355
        %p666 = pneg %p352
        %s667 = sand.u32 %s44, 1
        %s668 = scalar_lea.sflag [#allocation8], %s667
        %s669 = sand.u32 %s342, 1
        %s670 = smul.addr %s669, 48
        %s671 = scalar_lea.vmem [#allocation9], %s670
        %p672 = pneg %p383
        %p673 = pneg %p380
        %s674 = sand.u32 %s44, 1
        %s675 = scalar_lea.sflag [#allocation11], %s674
        %s676 = sand.u32 %s370, 1
        %s677 = smul.addr %s676, 48
        %s678 = scalar_lea.vmem [#allocation10], %s677
        %p679 = pneg %p411
        %p680 = pneg %p408
        %s681 = sand.u32 %s44, 1
        %s682 = scalar_lea.sflag [#allocation11], %s681
        %s683 = sand.u32 %s398, 1
        %s684 = smul.addr %s683, 48
        %s685 = scalar_lea.vmem [#allocation12], %s684
        %p686 = pneg %p439
        %p687 = pneg %p436
        %s688 = sand.u32 %s426, 1
        %s689 = scalar_lea.sflag [#allocation14], %s688
        %s690 = sand.u32 %s426, 1
        %s691 = smul.addr %s690, 48
        %s692 = scalar_lea.vmem [#allocation13], %s691
        %s693 = smul.u32 3, %s49
        %p694 = scmp.lt.s32.totalorder %s48, 1
        %s695 = scalar_select %p694, %s48, 1
        %p696 = scmp.lt.s32.totalorder %s693, 2
        %s697 = scalar_select %p696, %s693, 2
        %s698 = smul.addr %s697, 3
        %s699 = smul.addr %s695, 9
        %s700 = sadd.s32 %s698, %s699
        %s701 = smul.addr %s700, 8
        %s702 = scalar_lea.vmem %s1, %s701
        %s703 = smul.u32 3, %s49
        %s704 = smul.u32 3, %s49
        %p705 = scmp.lt.s32.totalorder %s48, 1
        %s706 = scalar_select %p705, %s48, 1
        %p707 = scmp.lt.s32.totalorder %s704, 2
        %s708 = scalar_select %p707, %s704, 2
        %s709 = smul.addr %s708, 3
        %s710 = smul.addr %s706, 9
        %s711 = sadd.s32 %s709, %s710
        %s712 = smul.addr %s711, 8
        %s713 = scalar_lea.vmem %s2, %s712
        %s714 = smul.u32 3, %s49
        %s715 = smul.u32 3, %s49
        %p716 = scmp.lt.s32.totalorder %s48, 1
        %s717 = scalar_select %p716, %s48, 1
        %p718 = scmp.lt.s32.totalorder %s715, 2
        %s719 = scalar_select %p718, %s715, 2
        %s720 = smul.addr %s719, 3
        %s721 = smul.addr %s717, 9
        %s722 = sadd.s32 %s720, %s721
        %s723 = smul.addr %s722, 8
        %s724 = scalar_lea.vmem %s3, %s723
        %s725 = smul.u32 3, %s49
        %s726 = smul.u32 3, %s49
        %p727 = scmp.lt.s32.totalorder %s48, 1
        %s728 = scalar_select %p727, %s48, 1
        %p729 = scmp.lt.s32.totalorder %s726, 2
        %s730 = scalar_select %p729, %s726, 2
        %s731 = smul.addr %s730, 3
        %s732 = smul.addr %s728, 9
        %s733 = sadd.s32 %s731, %s732
        %s734 = smul.addr %s733, 8
        %s735 = scalar_lea.vmem %s4, %s734
        %s736 = smul.u32 3, %s49
        %s737 = smul.u32 3, %s49
        %p738 = scmp.lt.s32.totalorder %s48, 1
        %s739 = scalar_select %p738, %s48, 1
        %p740 = scmp.lt.s32.totalorder %s737, 2
        %s741 = scalar_select %p740, %s737, 2
        %s742 = smul.addr %s741, 3
        %s743 = smul.addr %s739, 9
        %s744 = sadd.s32 %s742, %s743
        %s745 = smul.addr %s744, 8
        %s746 = scalar_lea.vmem %s5, %s745
        %s747 = smul.u32 3, %s49
        %s748 = smul.u32 3, %s49
        %p749 = scmp.lt.s32.totalorder %s48, 1
        %s750 = scalar_select %p749, %s48, 1
        %p751 = scmp.lt.s32.totalorder %s748, 2
        %s752 = scalar_select %p751, %s748, 2
        %s753 = smul.addr %s752, 3
        %s754 = smul.addr %s750, 9
        %s755 = sadd.s32 %s753, %s754
        %s756 = smul.addr %s755, 8
        %s757 = scalar_lea.vmem %s6, %s756
        %s758 = smul.u32 3, %s49
        %p759 = scmp.lt.s32.totalorder %s48, 1
        %s760 = scalar_select %p759, %s48, 1
        %s761 = smul.addr %s760, 2
        %s762 = smul.addr %s761, 4
        %s763 = scalar_lea.vmem %s7, %s762
        %p764 = scmp.lt.s32.totalorder %s48, 1
        %s765 = scalar_select %p764, %s48, 1
        %s766 = smul.addr %s765, 5
        %s767 = smul.addr %s766, 4
        %s768 = scalar_lea.vmem %s8, %s767
        %s769 = smul.u32 3, %s49
        %s770 = smul.u32 3, %s49
        %s771 = smul.u32 3, %s49
        %s772 = smul.u32 3, %s49
        %s773 = smul.u32 3, %s49
        %s774 = smul.u32 3, %s49
        %v776 = vld [vmem:[%s763] sm:$0xf]
        %v777 = vld [vmem:[%s763 + $0x4] sm:$0xf]
        %v778 = vld [vmem:[%s768] sm:$0xf]
        %v779 = vld [vmem:[%s768 + $0x4] sm:$0xf]
        %v780 = vld [vmem:[%s768 + $0x8] sm:$0xf]
        %v781 = vld [vmem:[%s768 + $0xc] sm:$0xf]
        %v782 = vld [vmem:[%s768 + $0x10] sm:$0xf]
        %v783 = vld [vmem:[%s702] sm:$0xff]
        %v784 = vld [vmem:[%s702 + $0x8] sm:$0xff]
        %v785 = vld [vmem:[%s702 + $0x10] sm:$0xff]
        %v786 = vpack.c.bf16 %v784, %v783
        %v787 = vpack.c.bf16 %v785, %v785
        %v790 = vunpack.c.l.b16 %v776
        %v791 = vunpack.c.l.b16 %v777
        %v792 = vpack.c.b16 %v791, %v790
        %vm793 = vcmask 195584
        %v795 = vsel %vm793, %v792, 0
        %vm797 = vcmask 1043456
        %v799 = vsel %vm797, %v787, 0
        %801 = vmatprep.subr.bf16.mxu0 0
        %802 = vmatpush1.bf16.msra.mxu0 %v786
        %803 = vmatprep.subr.bf16.mxu0 0
        %804 = vmatpush1.bf16.msra.mxu0 %v799
        %805 = vmatprep.subr.bf16.mxu0 0
        %806 = vmatpush1.bf16.msra.mxu0 0
        %807 = vmatprep.subr.bf16.mxu0 0
        %808 = vmatpush1.bf16.msra.mxu0 0
        %809 = vmatprep.subr.bf16.mxu0 0
        %810 = vmatpush1.bf16.msra.mxu0 0
        %811 = vmatprep.subr.bf16.mxu0 0
        %812 = vmatpush1.bf16.msra.mxu0 0
        %813 = vmatprep.subr.bf16.mxu0 0
        %814 = vmatpush1.bf16.msra.mxu0 0
        %815 = vmatprep.subr.bf16.mxu0 0
        %816 = vmatpush1.bf16.msra.mxu0 0
        %817 = vmatprep.subr.bf16.mxu0 0
        %818 = vmatpush1.bf16.msra.mxu0 0
        %819 = vmatprep.subr.bf16.mxu0 0
        %820 = vmatpush1.bf16.msra.mxu0 0
        %821 = vmatprep.subr.bf16.mxu0 0
        %822 = vmatpush1.bf16.msra.mxu0 0
        %823 = vmatprep.subr.bf16.mxu0 0
        %824 = vmatpush1.bf16.msra.mxu0 0
        %825 = vmatprep.subr.bf16.mxu0 0
        %826 = vmatpush1.bf16.msra.mxu0 0
        %827 = vmatprep.subr.bf16.mxu0 0
        %828 = vmatpush1.bf16.msra.mxu0 0
        %829 = vmatprep.subr.bf16.mxu0 0
        %830 = vmatpush1.bf16.msra.mxu0 0
        %831 = vmatprep.subr.bf16.mxu0 0
        %832 = vmatpush1.bf16.msra.mxu0 0
        %833 = vmatprep.mubr.bf16.mxu0 0
        %834 = vmatmul.mubr.bf16.gmra.mrb[0].mxu0 %v795
        %v835 = vpop.f32.mrb[0].mxu0
        %v836 = vadd.f32 0.0, %v835
        %v837 = vpop.f32.mrb[0].mxu0
        %v838 = vpop.f32.mrb[0].mxu0
        %v839 = vadd.f32 0.0, %v838
        %v840 = vpop.f32.mrb[0].mxu0
        %841 = vdwg.mxu0
        %v842 = vpack.c.bf16 %v839, %v836
        %vm843 = vcmask 326656
        %844 = vst.msk [vmem:[#allocation2] sm:$0xff] %vm843, %v842
        %s845 = scalar_lea.vmem %s702, 24
        %v846 = vld [vmem:[%s845] sm:$0xff]
        %v847 = vld [vmem:[%s845 + $0x8] sm:$0xff]
        %v848 = vld [vmem:[%s845 + $0x10] sm:$0xff]
        %v849 = vpack.c.bf16 %v847, %v846
        %v850 = vpack.c.bf16 %v848, %v848
        %v852 = vsel %vm797, %v850, 0
        %854 = vmatprep.subr.bf16.mxu0 0
        %855 = vmatpush1.bf16.msra.mxu0 %v849
        %856 = vmatprep.subr.bf16.mxu0 0
        %857 = vmatpush1.bf16.msra.mxu0 %v852
        %858 = vmatprep.subr.bf16.mxu0 0
        %859 = vmatpush1.bf16.msra.mxu0 0
        %860 = vmatprep.subr.bf16.mxu0 0
        %861 = vmatpush1.bf16.msra.mxu0 0
        %862 = vmatprep.subr.bf16.mxu0 0
        %863 = vmatpush1.bf16.msra.mxu0 0
        %864 = vmatprep.subr.bf16.mxu0 0
        %865 = vmatpush1.bf16.msra.mxu0 0
        %866 = vmatprep.subr.bf16.mxu0 0
        %867 = vmatpush1.bf16.msra.mxu0 0
        %868 = vmatprep.subr.bf16.mxu0 0
        %869 = vmatpush1.bf16.msra.mxu0 0
        %870 = vmatprep.subr.bf16.mxu0 0
        %871 = vmatpush1.bf16.msra.mxu0 0
        %872 = vmatprep.subr.bf16.mxu0 0
        %873 = vmatpush1.bf16.msra.mxu0 0
        %874 = vmatprep.subr.bf16.mxu0 0
        %875 = vmatpush1.bf16.msra.mxu0 0
        %876 = vmatprep.subr.bf16.mxu0 0
        %877 = vmatpush1.bf16.msra.mxu0 0
        %878 = vmatprep.subr.bf16.mxu0 0
        %879 = vmatpush1.bf16.msra.mxu0 0
        %880 = vmatprep.subr.bf16.mxu0 0
        %881 = vmatpush1.bf16.msra.mxu0 0
        %882 = vmatprep.subr.bf16.mxu0 0
        %883 = vmatpush1.bf16.msra.mxu0 0
        %884 = vmatprep.subr.bf16.mxu0 0
        %885 = vmatpush1.bf16.msra.mxu0 0
        %886 = vmatprep.mubr.bf16.mxu0 0
        %887 = vmatmul.mubr.bf16.gmra.mrb[0].mxu0 %v795
        %v888 = vpop.f32.mrb[0].mxu0
        %v889 = vadd.f32 0.0, %v888
        %v890 = vpop.f32.mrb[0].mxu0
        %v891 = vpop.f32.mrb[0].mxu0
        %v892 = vadd.f32 0.0, %v891
        %v893 = vpop.f32.mrb[0].mxu0
        %894 = vdwg.mxu0
        %v895 = vpack.c.bf16 %v892, %v889
        %896 = vst.msk [vmem:[#allocation2 + $0x8] sm:$0xff] %vm843, %v895
        %s897 = scalar_lea.vmem %s702, 48
        %v898 = vld [vmem:[%s897] sm:$0xff]
        %v899 = vld [vmem:[%s897 + $0x8] sm:$0xff]
        %v900 = vld [vmem:[%s897 + $0x10] sm:$0xff]
        %v901 = vpack.c.bf16 %v899, %v898
        %v902 = vpack.c.bf16 %v900, %v900
        %v904 = vsel %vm797, %v902, 0
        %906 = vmatprep.subr.bf16.mxu0 0
        %907 = vmatpush1.bf16.msra.mxu0 %v901
        %908 = vmatprep.subr.bf16.mxu0 0
        %909 = vmatpush1.bf16.msra.mxu0 %v904
        %910 = vmatprep.subr.bf16.mxu0 0
        %911 = vmatpush1.bf16.msra.mxu0 0
        %912 = vmatprep.subr.bf16.mxu0 0
        %913 = vmatpush1.bf16.msra.mxu0 0
        %914 = vmatprep.subr.bf16.mxu0 0
        %915 = vmatpush1.bf16.msra.mxu0 0
        %916 = vmatprep.subr.bf16.mxu0 0
        %917 = vmatpush1.bf16.msra.mxu0 0
        %918 = vmatprep.subr.bf16.mxu0 0
        %919 = vmatpush1.bf16.msra.mxu0 0
        %920 = vmatprep.subr.bf16.mxu0 0
        %921 = vmatpush1.bf16.msra.mxu0 0
        %922 = vmatprep.subr.bf16.mxu0 0
        %923 = vmatpush1.bf16.msra.mxu0 0
        %924 = vmatprep.subr.bf16.mxu0 0
        %925 = vmatpush1.bf16.msra.mxu0 0
        %926 = vmatprep.subr.bf16.mxu0 0
        %927 = vmatpush1.bf16.msra.mxu0 0
        %928 = vmatprep.subr.bf16.mxu0 0
        %929 = vmatpush1.bf16.msra.mxu0 0
        %930 = vmatprep.subr.bf16.mxu0 0
        %931 = vmatpush1.bf16.msra.mxu0 0
        %932 = vmatprep.subr.bf16.mxu0 0
        %933 = vmatpush1.bf16.msra.mxu0 0
        %934 = vmatprep.subr.bf16.mxu0 0
        %935 = vmatpush1.bf16.msra.mxu0 0
        %936 = vmatprep.subr.bf16.mxu0 0
        %937 = vmatpush1.bf16.msra.mxu0 0
        %938 = vmatprep.mubr.bf16.mxu0 0
        %939 = vmatmul.mubr.bf16.gmra.mrb[0].mxu0 %v795
        %v940 = vpop.f32.mrb[0].mxu0
        %v941 = vadd.f32 0.0, %v940
        %v942 = vpop.f32.mrb[0].mxu0
        %v943 = vpop.f32.mrb[0].mxu0
        %v944 = vadd.f32 0.0, %v943
        %v945 = vpop.f32.mrb[0].mxu0
        %946 = vdwg.mxu0
        %v947 = vpack.c.bf16 %v944, %v941
        %948 = vst.msk [vmem:[#allocation2 + $0x10] sm:$0xff] %vm843, %v947
        %v949 = vld [vmem:[%s713] sm:$0xff]
        %v950 = vld [vmem:[%s713 + $0x8] sm:$0xff]
        %v951 = vld [vmem:[%s713 + $0x10] sm:$0xff]
        %v952 = vpack.c.bf16 %v950, %v949
        %v953 = vpack.c.bf16 %v951, %v951
        %v955 = vsel %vm797, %v953, 0
        %957 = vmatprep.subr.bf16.mxu0 0
        %958 = vmatpush1.bf16.msra.mxu0 %v952
        %959 = vmatprep.subr.bf16.mxu0 0
        %960 = vmatpush1.bf16.msra.mxu0 %v955
        %961 = vmatprep.subr.bf16.mxu0 0
        %962 = vmatpush1.bf16.msra.mxu0 0
        %963 = vmatprep.subr.bf16.mxu0 0
        %964 = vmatpush1.bf16.msra.mxu0 0
        %965 = vmatprep.subr.bf16.mxu0 0
        %966 = vmatpush1.bf16.msra.mxu0 0
        %967 = vmatprep.subr.bf16.mxu0 0
        %968 = vmatpush1.bf16.msra.mxu0 0
        %969 = vmatprep.subr.bf16.mxu0 0
        %970 = vmatpush1.bf16.msra.mxu0 0
        %971 = vmatprep.subr.bf16.mxu0 0
        %972 = vmatpush1.bf16.msra.mxu0 0
        %973 = vmatprep.subr.bf16.mxu0 0
        %974 = vmatpush1.bf16.msra.mxu0 0
        %975 = vmatprep.subr.bf16.mxu0 0
        %976 = vmatpush1.bf16.msra.mxu0 0
        %977 = vmatprep.subr.bf16.mxu0 0
        %978 = vmatpush1.bf16.msra.mxu0 0
        %979 = vmatprep.subr.bf16.mxu0 0
        %980 = vmatpush1.bf16.msra.mxu0 0
        %981 = vmatprep.subr.bf16.mxu0 0
        %982 = vmatpush1.bf16.msra.mxu0 0
        %983 = vmatprep.subr.bf16.mxu0 0
        %984 = vmatpush1.bf16.msra.mxu0 0
        %985 = vmatprep.subr.bf16.mxu0 0
        %986 = vmatpush1.bf16.msra.mxu0 0
        %987 = vmatprep.subr.bf16.mxu0 0
        %988 = vmatpush1.bf16.msra.mxu0 0
        %989 = vmatprep.mubr.bf16.mxu0 0
        %990 = vmatmul.mubr.bf16.gmra.mrb[0].mxu0 %v795
        %v991 = vpop.f32.mrb[0].mxu0
        %v992 = vadd.f32 0.0, %v991
        %v993 = vpop.f32.mrb[0].mxu0
        %v994 = vpop.f32.mrb[0].mxu0
        %v995 = vadd.f32 0.0, %v994
        %v996 = vpop.f32.mrb[0].mxu0
        %997 = vdwg.mxu0
        %v998 = vpack.c.bf16 %v995, %v992
        %999 = vst.msk [vmem:[#allocation2 + $0x18] sm:$0xff] %vm843, %v998
        %s1000 = scalar_lea.vmem %s713, 24
        %v1001 = vld [vmem:[%s1000] sm:$0xff]
        %v1002 = vld [vmem:[%s1000 + $0x8] sm:$0xff]
        %v1003 = vld [vmem:[%s1000 + $0x10] sm:$0xff]
        %v1004 = vpack.c.bf16 %v1002, %v1001
        %v1005 = vpack.c.bf16 %v1003, %v1003
        %v1007 = vsel %vm797, %v1005, 0
        %1009 = vmatprep.subr.bf16.mxu0 0
        %1010 = vmatpush1.bf16.msra.mxu0 %v1004
        %1011 = vmatprep.subr.bf16.mxu0 0
        %1012 = vmatpush1.bf16.msra.mxu0 %v1007
        %1013 = vmatprep.subr.bf16.mxu0 0
        %1014 = vmatpush1.bf16.msra.mxu0 0
        %1015 = vmatprep.subr.bf16.mxu0 0
        %1016 = vmatpush1.bf16.msra.mxu0 0
        %1017 = vmatprep.subr.bf16.mxu0 0
        %1018 = vmatpush1.bf16.msra.mxu0 0
        %1019 = vmatprep.subr.bf16.mxu0 0
        %1020 = vmatpush1.bf16.msra.mxu0 0
        %1021 = vmatprep.subr.bf16.mxu0 0
        %1022 = vmatpush1.bf16.msra.mxu0 0
        %1023 = vmatprep.subr.bf16.mxu0 0
        %1024 = vmatpush1.bf16.msra.mxu0 0
        %1025 = vmatprep.subr.bf16.mxu0 0
        %1026 = vmatpush1.bf16.msra.mxu0 0
        %1027 = vmatprep.subr.bf16.mxu0 0
        %1028 = vmatpush1.bf16.msra.mxu0 0
        %1029 = vmatprep.subr.bf16.mxu0 0
        %1030 = vmatpush1.bf16.msra.mxu0 0
        %1031 = vmatprep.subr.bf16.mxu0 0
        %1032 = vmatpush1.bf16.msra.mxu0 0
        %1033 = vmatprep.subr.bf16.mxu0 0
        %1034 = vmatpush1.bf16.msra.mxu0 0
        %1035 = vmatprep.subr.bf16.mxu0 0
        %1036 = vmatpush1.bf16.msra.mxu0 0
        %1037 = vmatprep.subr.bf16.mxu0 0
        %1038 = vmatpush1.bf16.msra.mxu0 0
        %1039 = vmatprep.subr.bf16.mxu0 0
        %1040 = vmatpush1.bf16.msra.mxu0 0
        %1041 = vmatprep.mubr.bf16.mxu0 0
        %1042 = vmatmul.mubr.bf16.gmra.mrb[0].mxu0 %v795
        %v1043 = vpop.f32.mrb[0].mxu0
        %v1044 = vadd.f32 0.0, %v1043
        %v1045 = vpop.f32.mrb[0].mxu0
        %v1046 = vpop.f32.mrb[0].mxu0
        %v1047 = vadd.f32 0.0, %v1046
        %v1048 = vpop.f32.mrb[0].mxu0
        %1049 = vdwg.mxu0
        %v1050 = vpack.c.bf16 %v1047, %v1044
        %1051 = vst.msk [vmem:[#allocation2 + $0x20] sm:$0xff] %vm843, %v1050
        %s1052 = scalar_lea.vmem %s713, 48
        %v1053 = vld [vmem:[%s1052] sm:$0xff]
        %v1054 = vld [vmem:[%s1052 + $0x8] sm:$0xff]
        %v1055 = vld [vmem:[%s1052 + $0x10] sm:$0xff]
        %v1056 = vpack.c.bf16 %v1054, %v1053
        %v1057 = vpack.c.bf16 %v1055, %v1055
        %v1059 = vsel %vm797, %v1057, 0
        %1061 = vmatprep.subr.bf16.mxu0 0
        %1062 = vmatpush1.bf16.msra.mxu0 %v1056
        %1063 = vmatprep.subr.bf16.mxu0 0
        %1064 = vmatpush1.bf16.msra.mxu0 %v1059
        %1065 = vmatprep.subr.bf16.mxu0 0
        %1066 = vmatpush1.bf16.msra.mxu0 0
        %1067 = vmatprep.subr.bf16.mxu0 0
        %1068 = vmatpush1.bf16.msra.mxu0 0
        %1069 = vmatprep.subr.bf16.mxu0 0
        %1070 = vmatpush1.bf16.msra.mxu0 0
        %1071 = vmatprep.subr.bf16.mxu0 0
        %1072 = vmatpush1.bf16.msra.mxu0 0
        %1073 = vmatprep.subr.bf16.mxu0 0
        %1074 = vmatpush1.bf16.msra.mxu0 0
        %1075 = vmatprep.subr.bf16.mxu0 0
        %1076 = vmatpush1.bf16.msra.mxu0 0
        %1077 = vmatprep.subr.bf16.mxu0 0
        %1078 = vmatpush1.bf16.msra.mxu0 0
        %1079 = vmatprep.subr.bf16.mxu0 0
        %1080 = vmatpush1.bf16.msra.mxu0 0
        %1081 = vmatprep.subr.bf16.mxu0 0
        %1082 = vmatpush1.bf16.msra.mxu0 0
        %1083 = vmatprep.subr.bf16.mxu0 0
        %1084 = vmatpush1.bf16.msra.mxu0 0
        %1085 = vmatprep.subr.bf16.mxu0 0
        %1086 = vmatpush1.bf16.msra.mxu0 0
        %1087 = vmatprep.subr.bf16.mxu0 0
        %1088 = vmatpush1.bf16.msra.mxu0 0
        %1089 = vmatprep.subr.bf16.mxu0 0
        %1090 = vmatpush1.bf16.msra.mxu0 0
        %1091 = vmatprep.subr.bf16.mxu0 0
        %1092 = vmatpush1.bf16.msra.mxu0 0
        %1093 = vmatprep.mubr.bf16.mxu0 0
        %1094 = vmatmul.mubr.bf16.gmra.mrb[0].mxu0 %v795
        %v1095 = vpop.f32.mrb[0].mxu0
        %v1096 = vadd.f32 0.0, %v1095
        %v1097 = vpop.f32.mrb[0].mxu0
        %v1098 = vpop.f32.mrb[0].mxu0
        %v1099 = vadd.f32 0.0, %v1098
        %v1100 = vpop.f32.mrb[0].mxu0
        %1101 = vdwg.mxu0
        %v1102 = vpack.c.bf16 %v1099, %v1096
        %1103 = vst.msk [vmem:[#allocation2 + $0x28] sm:$0xff] %vm843, %v1102
        %v1104 = vld [vmem:[%s724] sm:$0xff]
        %v1105 = vld [vmem:[%s724 + $0x8] sm:$0xff]
        %v1106 = vld [vmem:[%s724 + $0x10] sm:$0xff]
        %v1107 = vpack.c.bf16 %v1105, %v1104
        %v1108 = vpack.c.bf16 %v1106, %v1106
        %v1110 = vsel %vm797, %v1108, 0
        %1112 = vmatprep.subr.bf16.mxu0 0
        %1113 = vmatpush1.bf16.msra.mxu0 %v1107
        %1114 = vmatprep.subr.bf16.mxu0 0
        %1115 = vmatpush1.bf16.msra.mxu0 %v1110
        %1116 = vmatprep.subr.bf16.mxu0 0
        %1117 = vmatpush1.bf16.msra.mxu0 0
        %1118 = vmatprep.subr.bf16.mxu0 0
        %1119 = vmatpush1.bf16.msra.mxu0 0
        %1120 = vmatprep.subr.bf16.mxu0 0
        %1121 = vmatpush1.bf16.msra.mxu0 0
        %1122 = vmatprep.subr.bf16.mxu0 0
        %1123 = vmatpush1.bf16.msra.mxu0 0
        %1124 = vmatprep.subr.bf16.mxu0 0
        %1125 = vmatpush1.bf16.msra.mxu0 0
        %1126 = vmatprep.subr.bf16.mxu0 0
        %1127 = vmatpush1.bf16.msra.mxu0 0
        %1128 = vmatprep.subr.bf16.mxu0 0
        %1129 = vmatpush1.bf16.msra.mxu0 0
        %1130 = vmatprep.subr.bf16.mxu0 0
        %1131 = vmatpush1.bf16.msra.mxu0 0
        %1132 = vmatprep.subr.bf16.mxu0 0
        %1133 = vmatpush1.bf16.msra.mxu0 0
        %1134 = vmatprep.subr.bf16.mxu0 0
        %1135 = vmatpush1.bf16.msra.mxu0 0
        %1136 = vmatprep.subr.bf16.mxu0 0
        %1137 = vmatpush1.bf16.msra.mxu0 0
        %1138 = vmatprep.subr.bf16.mxu0 0
        %1139 = vmatpush1.bf16.msra.mxu0 0
        %1140 = vmatprep.subr.bf16.mxu0 0
        %1141 = vmatpush1.bf16.msra.mxu0 0
        %1142 = vmatprep.subr.bf16.mxu0 0
        %1143 = vmatpush1.bf16.msra.mxu0 0
        %1144 = vmatprep.mubr.bf16.mxu0 0
        %1145 = vmatmul.mubr.bf16.gmra.mrb[0].mxu0 %v795
        %v1146 = vpop.f32.mrb[0].mxu0
        %v1147 = vadd.f32 0.0, %v1146
        %v1148 = vpop.f32.mrb[0].mxu0
        %v1149 = vpop.f32.mrb[0].mxu0
        %v1150 = vadd.f32 0.0, %v1149
        %v1151 = vpop.f32.mrb[0].mxu0
        %1152 = vdwg.mxu0
        %v1153 = vpack.c.bf16 %v1150, %v1147
        %1154 = vst.msk [vmem:[#allocation2 + $0x30] sm:$0xff] %vm843, %v1153
        %s1155 = scalar_lea.vmem %s724, 24
        %v1156 = vld [vmem:[%s1155] sm:$0xff]
        %v1157 = vld [vmem:[%s1155 + $0x8] sm:$0xff]
        %v1158 = vld [vmem:[%s1155 + $0x10] sm:$0xff]
        %v1159 = vpack.c.bf16 %v1157, %v1156
        %v1160 = vpack.c.bf16 %v1158, %v1158
        %v1162 = vsel %vm797, %v1160, 0
        %1164 = vmatprep.subr.bf16.mxu0 0
        %1165 = vmatpush1.bf16.msra.mxu0 %v1159
        %1166 = vmatprep.subr.bf16.mxu0 0
        %1167 = vmatpush1.bf16.msra.mxu0 %v1162
        %1168 = vmatprep.subr.bf16.mxu0 0
        %1169 = vmatpush1.bf16.msra.mxu0 0
        %1170 = vmatprep.subr.bf16.mxu0 0
        %1171 = vmatpush1.bf16.msra.mxu0 0
        %1172 = vmatprep.subr.bf16.mxu0 0
        %1173 = vmatpush1.bf16.msra.mxu0 0
        %1174 = vmatprep.subr.bf16.mxu0 0
        %1175 = vmatpush1.bf16.msra.mxu0 0
        %1176 = vmatprep.subr.bf16.mxu0 0
        %1177 = vmatpush1.bf16.msra.mxu0 0
        %1178 = vmatprep.subr.bf16.mxu0 0
        %1179 = vmatpush1.bf16.msra.mxu0 0
        %1180 = vmatprep.subr.bf16.mxu0 0
        %1181 = vmatpush1.bf16.msra.mxu0 0
        %1182 = vmatprep.subr.bf16.mxu0 0
        %1183 = vmatpush1.bf16.msra.mxu0 0
        %1184 = vmatprep.subr.bf16.mxu0 0
        %1185 = vmatpush1.bf16.msra.mxu0 0
        %1186 = vmatprep.subr.bf16.mxu0 0
        %1187 = vmatpush1.bf16.msra.mxu0 0
        %1188 = vmatprep.subr.bf16.mxu0 0
        %1189 = vmatpush1.bf16.msra.mxu0 0
        %1190 = vmatprep.subr.bf16.mxu0 0
        %1191 = vmatpush1.bf16.msra.mxu0 0
        %1192 = vmatprep.subr.bf16.mxu0 0
        %1193 = vmatpush1.bf16.msra.mxu0 0
        %1194 = vmatprep.subr.bf16.mxu0 0
        %1195 = vmatpush1.bf16.msra.mxu0 0
        %1196 = vmatprep.mubr.bf16.mxu0 0
        %1197 = vmatmul.mubr.bf16.gmra.mrb[0].mxu0 %v795
        %v1198 = vpop.f32.mrb[0].mxu0
        %v1199 = vadd.f32 0.0, %v1198
        %v1200 = vpop.f32.mrb[0].mxu0
        %v1201 = vpop.f32.mrb[0].mxu0
        %v1202 = vadd.f32 0.0, %v1201
        %v1203 = vpop.f32.mrb[0].mxu0
        %1204 = vdwg.mxu0
        %v1205 = vpack.c.bf16 %v1202, %v1199
        %1206 = vst.msk [vmem:[#allocation2 + $0x38] sm:$0xff] %vm843, %v1205
        %s1207 = scalar_lea.vmem %s724, 48
        %v1208 = vld [vmem:[%s1207] sm:$0xff]
        %v1209 = vld [vmem:[%s1207 + $0x8] sm:$0xff]
        %v1210 = vld [vmem:[%s1207 + $0x10] sm:$0xff]
        %v1211 = vpack.c.bf16 %v1209, %v1208
        %v1212 = vpack.c.bf16 %v1210, %v1210
        %v1214 = vsel %vm797, %v1212, 0
        %1216 = vmatprep.subr.bf16.mxu0 0
        %1217 = vmatpush1.bf16.msra.mxu0 %v1211
        %1218 = vmatprep.subr.bf16.mxu0 0
        %1219 = vmatpush1.bf16.msra.mxu0 %v1214
        %1220 = vmatprep.subr.bf16.mxu0 0
        %1221 = vmatpush1.bf16.msra.mxu0 0
        %1222 = vmatprep.subr.bf16.mxu0 0
        %1223 = vmatpush1.bf16.msra.mxu0 0
        %1224 = vmatprep.subr.bf16.mxu0 0
        %1225 = vmatpush1.bf16.msra.mxu0 0
        %1226 = vmatprep.subr.bf16.mxu0 0
        %1227 = vmatpush1.bf16.msra.mxu0 0
        %1228 = vmatprep.subr.bf16.mxu0 0
        %1229 = vmatpush1.bf16.msra.mxu0 0
        %1230 = vmatprep.subr.bf16.mxu0 0
        %1231 = vmatpush1.bf16.msra.mxu0 0
        %1232 = vmatprep.subr.bf16.mxu0 0
        %1233 = vmatpush1.bf16.msra.mxu0 0
        %1234 = vmatprep.subr.bf16.mxu0 0
        %1235 = vmatpush1.bf16.msra.mxu0 0
        %1236 = vmatprep.subr.bf16.mxu0 0
        %1237 = vmatpush1.bf16.msra.mxu0 0
        %1238 = vmatprep.subr.bf16.mxu0 0
        %1239 = vmatpush1.bf16.msra.mxu0 0
        %1240 = vmatprep.subr.bf16.mxu0 0
        %1241 = vmatpush1.bf16.msra.mxu0 0
        %1242 = vmatprep.subr.bf16.mxu0 0
        %1243 = vmatpush1.bf16.msra.mxu0 0
        %1244 = vmatprep.subr.bf16.mxu0 0
        %1245 = vmatpush1.bf16.msra.mxu0 0
        %1246 = vmatprep.subr.bf16.mxu0 0
        %1247 = vmatpush1.bf16.msra.mxu0 0
        %1248 = vmatprep.mubr.bf16.mxu0 0
        %1249 = vmatmul.mubr.bf16.gmra.mrb[0].mxu0 %v795
        %v1250 = vpop.f32.mrb[0].mxu0
        %v1251 = vadd.f32 0.0, %v1250
        %v1252 = vpop.f32.mrb[0].mxu0
        %v1253 = vpop.f32.mrb[0].mxu0
        %v1254 = vadd.f32 0.0, %v1253
        %v1255 = vpop.f32.mrb[0].mxu0
        %1256 = vdwg.mxu0
        %v1257 = vpack.c.bf16 %v1254, %v1251
        %1258 = vst.msk [vmem:[#allocation2 + $0x40] sm:$0xff] %vm843, %v1257
        %v1259 = vld [vmem:[%s735] sm:$0xff]
        %v1260 = vld [vmem:[%s735 + $0x8] sm:$0xff]
        %v1261 = vld [vmem:[%s735 + $0x10] sm:$0xff]
        %v1262 = vpack.c.bf16 %v1260, %v1259
        %v1263 = vpack.c.bf16 %v1261, %v1261
        %v1265 = vsel %vm797, %v1263, 0
        %1267 = vmatprep.subr.bf16.mxu0 0
        %1268 = vmatpush1.bf16.msra.mxu0 %v1262
        %1269 = vmatprep.subr.bf16.mxu0 0
        %1270 = vmatpush1.bf16.msra.mxu0 %v1265
        %1271 = vmatprep.subr.bf16.mxu0 0
        %1272 = vmatpush1.bf16.msra.mxu0 0
        %1273 = vmatprep.subr.bf16.mxu0 0
        %1274 = vmatpush1.bf16.msra.mxu0 0
        %1275 = vmatprep.subr.bf16.mxu0 0
        %1276 = vmatpush1.bf16.msra.mxu0 0
        %1277 = vmatprep.subr.bf16.mxu0 0
        %1278 = vmatpush1.bf16.msra.mxu0 0
        %1279 = vmatprep.subr.bf16.mxu0 0
        %1280 = vmatpush1.bf16.msra.mxu0 0
        %1281 = vmatprep.subr.bf16.mxu0 0
        %1282 = vmatpush1.bf16.msra.mxu0 0
        %1283 = vmatprep.subr.bf16.mxu0 0
        %1284 = vmatpush1.bf16.msra.mxu0 0
        %1285 = vmatprep.subr.bf16.mxu0 0
        %1286 = vmatpush1.bf16.msra.mxu0 0
        %1287 = vmatprep.subr.bf16.mxu0 0
        %1288 = vmatpush1.bf16.msra.mxu0 0
        %1289 = vmatprep.subr.bf16.mxu0 0
        %1290 = vmatpush1.bf16.msra.mxu0 0
        %1291 = vmatprep.subr.bf16.mxu0 0
        %1292 = vmatpush1.bf16.msra.mxu0 0
        %1293 = vmatprep.subr.bf16.mxu0 0
        %1294 = vmatpush1.bf16.msra.mxu0 0
        %1295 = vmatprep.subr.bf16.mxu0 0
        %1296 = vmatpush1.bf16.msra.mxu0 0
        %1297 = vmatprep.subr.bf16.mxu0 0
        %1298 = vmatpush1.bf16.msra.mxu0 0
        %1299 = vmatprep.mubr.bf16.mxu0 0
        %1300 = vmatmul.mubr.bf16.gmra.mrb[0].mxu0 %v795
        %v1301 = vpop.f32.mrb[0].mxu0
        %v1302 = vadd.f32 0.0, %v1301
        %v1303 = vpop.f32.mrb[0].mxu0
        %v1304 = vpop.f32.mrb[0].mxu0
        %v1305 = vadd.f32 0.0, %v1304
        %v1306 = vpop.f32.mrb[0].mxu0
        %1307 = vdwg.mxu0
        %v1308 = vpack.c.bf16 %v1305, %v1302
        %1309 = vst.msk [vmem:[#allocation2 + $0x48] sm:$0xff] %vm843, %v1308
        %s1310 = scalar_lea.vmem %s735, 24
        %v1311 = vld [vmem:[%s1310] sm:$0xff]
        %v1312 = vld [vmem:[%s1310 + $0x8] sm:$0xff]
        %v1313 = vld [vmem:[%s1310 + $0x10] sm:$0xff]
        %v1314 = vpack.c.bf16 %v1312, %v1311
        %v1315 = vpack.c.bf16 %v1313, %v1313
        %v1317 = vsel %vm797, %v1315, 0
        %1319 = vmatprep.subr.bf16.mxu0 0
        %1320 = vmatpush1.bf16.msra.mxu0 %v1314
        %1321 = vmatprep.subr.bf16.mxu0 0
        %1322 = vmatpush1.bf16.msra.mxu0 %v1317
        %1323 = vmatprep.subr.bf16.mxu0 0
        %1324 = vmatpush1.bf16.msra.mxu0 0
        %1325 = vmatprep.subr.bf16.mxu0 0
        %1326 = vmatpush1.bf16.msra.mxu0 0
        %1327 = vmatprep.subr.bf16.mxu0 0
        %1328 = vmatpush1.bf16.msra.mxu0 0
        %1329 = vmatprep.subr.bf16.mxu0 0
        %1330 = vmatpush1.bf16.msra.mxu0 0
        %1331 = vmatprep.subr.bf16.mxu0 0
        %1332 = vmatpush1.bf16.msra.mxu0 0
        %1333 = vmatprep.subr.bf16.mxu0 0
        %1334 = vmatpush1.bf16.msra.mxu0 0
        %1335 = vmatprep.subr.bf16.mxu0 0
        %1336 = vmatpush1.bf16.msra.mxu0 0
        %1337 = vmatprep.subr.bf16.mxu0 0
        %1338 = vmatpush1.bf16.msra.mxu0 0
        %1339 = vmatprep.subr.bf16.mxu0 0
        %1340 = vmatpush1.bf16.msra.mxu0 0
        %1341 = vmatprep.subr.bf16.mxu0 0
        %1342 = vmatpush1.bf16.msra.mxu0 0
        %1343 = vmatprep.subr.bf16.mxu0 0
        %1344 = vmatpush1.bf16.msra.mxu0 0
        %1345 = vmatprep.subr.bf16.mxu0 0
        %1346 = vmatpush1.bf16.msra.mxu0 0
        %1347 = vmatprep.subr.bf16.mxu0 0
        %1348 = vmatpush1.bf16.msra.mxu0 0
        %1349 = vmatprep.subr.bf16.mxu0 0
        %1350 = vmatpush1.bf16.msra.mxu0 0
        %1351 = vmatprep.mubr.bf16.mxu0 0
        %1352 = vmatmul.mubr.bf16.gmra.mrb[0].mxu0 %v795
        %v1353 = vpop.f32.mrb[0].mxu0
        %v1354 = vadd.f32 0.0, %v1353
        %v1355 = vpop.f32.mrb[0].mxu0
        %v1356 = vpop.f32.mrb[0].mxu0
        %v1357 = vadd.f32 0.0, %v1356
        %v1358 = vpop.f32.mrb[0].mxu0
        %1359 = vdwg.mxu0
        %v1360 = vpack.c.bf16 %v1357, %v1354
        %1361 = vst.msk [vmem:[#allocation2 + $0x50] sm:$0xff] %vm843, %v1360
        %s1362 = scalar_lea.vmem %s735, 48
        %v1363 = vld [vmem:[%s1362] sm:$0xff]
        %v1364 = vld [vmem:[%s1362 + $0x8] sm:$0xff]
        %v1365 = vld [vmem:[%s1362 + $0x10] sm:$0xff]
        %v1366 = vpack.c.bf16 %v1364, %v1363
        %v1367 = vpack.c.bf16 %v1365, %v1365
        %v1369 = vsel %vm797, %v1367, 0
        %1371 = vmatprep.subr.bf16.mxu0 0
        %1372 = vmatpush1.bf16.msra.mxu0 %v1366
        %1373 = vmatprep.subr.bf16.mxu0 0
        %1374 = vmatpush1.bf16.msra.mxu0 %v1369
        %1375 = vmatprep.subr.bf16.mxu0 0
        %1376 = vmatpush1.bf16.msra.mxu0 0
        %1377 = vmatprep.subr.bf16.mxu0 0
        %1378 = vmatpush1.bf16.msra.mxu0 0
        %1379 = vmatprep.subr.bf16.mxu0 0
        %1380 = vmatpush1.bf16.msra.mxu0 0
        %1381 = vmatprep.subr.bf16.mxu0 0
        %1382 = vmatpush1.bf16.msra.mxu0 0
        %1383 = vmatprep.subr.bf16.mxu0 0
        %1384 = vmatpush1.bf16.msra.mxu0 0
        %1385 = vmatprep.subr.bf16.mxu0 0
        %1386 = vmatpush1.bf16.msra.mxu0 0
        %1387 = vmatprep.subr.bf16.mxu0 0
        %1388 = vmatpush1.bf16.msra.mxu0 0
        %1389 = vmatprep.subr.bf16.mxu0 0
        %1390 = vmatpush1.bf16.msra.mxu0 0
        %1391 = vmatprep.subr.bf16.mxu0 0
        %1392 = vmatpush1.bf16.msra.mxu0 0
        %1393 = vmatprep.subr.bf16.mxu0 0
        %1394 = vmatpush1.bf16.msra.mxu0 0
        %1395 = vmatprep.subr.bf16.mxu0 0
        %1396 = vmatpush1.bf16.msra.mxu0 0
        %1397 = vmatprep.subr.bf16.mxu0 0
        %1398 = vmatpush1.bf16.msra.mxu0 0
        %1399 = vmatprep.subr.bf16.mxu0 0
        %1400 = vmatpush1.bf16.msra.mxu0 0
        %1401 = vmatprep.subr.bf16.mxu0 0
        %1402 = vmatpush1.bf16.msra.mxu0 0
        %1403 = vmatprep.mubr.bf16.mxu0 0
        %1404 = vmatmul.mubr.bf16.gmra.mrb[0].mxu0 %v795
        %v1405 = vpop.f32.mrb[0].mxu0
        %v1406 = vadd.f32 0.0, %v1405
        %v1407 = vpop.f32.mrb[0].mxu0
        %v1408 = vpop.f32.mrb[0].mxu0
        %v1409 = vadd.f32 0.0, %v1408
        %v1410 = vpop.f32.mrb[0].mxu0
        %1411 = vdwg.mxu0
        %v1412 = vpack.c.bf16 %v1409, %v1406
        %1413 = vst.msk [vmem:[#allocation2 + $0x58] sm:$0xff] %vm843, %v1412
        %v1414 = vld [vmem:[%s746] sm:$0xff]
        %v1415 = vld [vmem:[%s746 + $0x8] sm:$0xff]
        %v1416 = vld [vmem:[%s746 + $0x10] sm:$0xff]
        %v1417 = vpack.c.bf16 %v1415, %v1414
        %v1418 = vpack.c.bf16 %v1416, %v1416
        %v1420 = vsel %vm797, %v1418, 0
        %1422 = vmatprep.subr.bf16.mxu0 0
        %1423 = vmatpush1.bf16.msra.mxu0 %v1417
        %1424 = vmatprep.subr.bf16.mxu0 0
        %1425 = vmatpush1.bf16.msra.mxu0 %v1420
        %1426 = vmatprep.subr.bf16.mxu0 0
        %1427 = vmatpush1.bf16.msra.mxu0 0
        %1428 = vmatprep.subr.bf16.mxu0 0
        %1429 = vmatpush1.bf16.msra.mxu0 0
        %1430 = vmatprep.subr.bf16.mxu0 0
        %1431 = vmatpush1.bf16.msra.mxu0 0
        %1432 = vmatprep.subr.bf16.mxu0 0
        %1433 = vmatpush1.bf16.msra.mxu0 0
        %1434 = vmatprep.subr.bf16.mxu0 0
        %1435 = vmatpush1.bf16.msra.mxu0 0
        %1436 = vmatprep.subr.bf16.mxu0 0
        %1437 = vmatpush1.bf16.msra.mxu0 0
        %1438 = vmatprep.subr.bf16.mxu0 0
        %1439 = vmatpush1.bf16.msra.mxu0 0
        %1440 = vmatprep.subr.bf16.mxu0 0
        %1441 = vmatpush1.bf16.msra.mxu0 0
        %1442 = vmatprep.subr.bf16.mxu0 0
        %1443 = vmatpush1.bf16.msra.mxu0 0
        %1444 = vmatprep.subr.bf16.mxu0 0
        %1445 = vmatpush1.bf16.msra.mxu0 0
        %1446 = vmatprep.subr.bf16.mxu0 0
        %1447 = vmatpush1.bf16.msra.mxu0 0
        %1448 = vmatprep.subr.bf16.mxu0 0
        %1449 = vmatpush1.bf16.msra.mxu0 0
        %1450 = vmatprep.subr.bf16.mxu0 0
        %1451 = vmatpush1.bf16.msra.mxu0 0
        %1452 = vmatprep.subr.bf16.mxu0 0
        %1453 = vmatpush1.bf16.msra.mxu0 0
        %1454 = vmatprep.mubr.bf16.mxu0 0
        %1455 = vmatmul.mubr.bf16.gmra.mrb[0].mxu0 %v795
        %v1456 = vpop.f32.mrb[0].mxu0
        %v1457 = vadd.f32 0.0, %v1456
        %v1458 = vpop.f32.mrb[0].mxu0
        %v1459 = vpop.f32.mrb[0].mxu0
        %v1460 = vadd.f32 0.0, %v1459
        %v1461 = vpop.f32.mrb[0].mxu0
        %1462 = vdwg.mxu0
        %v1463 = vpack.c.bf16 %v1460, %v1457
        %1464 = vst.msk [vmem:[#allocation2 + $0x60] sm:$0xff] %vm843, %v1463
        %s1465 = scalar_lea.vmem %s746, 24
        %v1466 = vld [vmem:[%s1465] sm:$0xff]
        %v1467 = vld [vmem:[%s1465 + $0x8] sm:$0xff]
        %v1468 = vld [vmem:[%s1465 + $0x10] sm:$0xff]
        %v1469 = vpack.c.bf16 %v1467, %v1466
        %v1470 = vpack.c.bf16 %v1468, %v1468
        %v1472 = vsel %vm797, %v1470, 0
        %1474 = vmatprep.subr.bf16.mxu0 0
        %1475 = vmatpush1.bf16.msra.mxu0 %v1469
        %1476 = vmatprep.subr.bf16.mxu0 0
        %1477 = vmatpush1.bf16.msra.mxu0 %v1472
        %1478 = vmatprep.subr.bf16.mxu0 0
        %1479 = vmatpush1.bf16.msra.mxu0 0
        %1480 = vmatprep.subr.bf16.mxu0 0
        %1481 = vmatpush1.bf16.msra.mxu0 0
        %1482 = vmatprep.subr.bf16.mxu0 0
        %1483 = vmatpush1.bf16.msra.mxu0 0
        %1484 = vmatprep.subr.bf16.mxu0 0
        %1485 = vmatpush1.bf16.msra.mxu0 0
        %1486 = vmatprep.subr.bf16.mxu0 0
        %1487 = vmatpush1.bf16.msra.mxu0 0
        %1488 = vmatprep.subr.bf16.mxu0 0
        %1489 = vmatpush1.bf16.msra.mxu0 0
        %1490 = vmatprep.subr.bf16.mxu0 0
        %1491 = vmatpush1.bf16.msra.mxu0 0
        %1492 = vmatprep.subr.bf16.mxu0 0
        %1493 = vmatpush1.bf16.msra.mxu0 0
        %1494 = vmatprep.subr.bf16.mxu0 0
        %1495 = vmatpush1.bf16.msra.mxu0 0
        %1496 = vmatprep.subr.bf16.mxu0 0
        %1497 = vmatpush1.bf16.msra.mxu0 0
        %1498 = vmatprep.subr.bf16.mxu0 0
        %1499 = vmatpush1.bf16.msra.mxu0 0
        %1500 = vmatprep.subr.bf16.mxu0 0
        %1501 = vmatpush1.bf16.msra.mxu0 0
        %1502 = vmatprep.subr.bf16.mxu0 0
        %1503 = vmatpush1.bf16.msra.mxu0 0
        %1504 = vmatprep.subr.bf16.mxu0 0
        %1505 = vmatpush1.bf16.msra.mxu0 0
        %1506 = vmatprep.mubr.bf16.mxu0 0
        %1507 = vmatmul.mubr.bf16.gmra.mrb[0].mxu0 %v795
        %v1508 = vpop.f32.mrb[0].mxu0
        %v1509 = vadd.f32 0.0, %v1508
        %v1510 = vpop.f32.mrb[0].mxu0
        %v1511 = vpop.f32.mrb[0].mxu0
        %v1512 = vadd.f32 0.0, %v1511
        %v1513 = vpop.f32.mrb[0].mxu0
        %1514 = vdwg.mxu0
        %v1515 = vpack.c.bf16 %v1512, %v1509
        %1516 = vst.msk [vmem:[#allocation2 + $0x68] sm:$0xff] %vm843, %v1515
        %s1517 = scalar_lea.vmem %s746, 48
        %v1518 = vld [vmem:[%s1517] sm:$0xff]
        %v1519 = vld [vmem:[%s1517 + $0x8] sm:$0xff]
        %v1520 = vld [vmem:[%s1517 + $0x10] sm:$0xff]
        %v1521 = vpack.c.bf16 %v1519, %v1518
        %v1522 = vpack.c.bf16 %v1520, %v1520
        %v1524 = vsel %vm797, %v1522, 0
        %1526 = vmatprep.subr.bf16.mxu0 0
        %1527 = vmatpush1.bf16.msra.mxu0 %v1521
        %1528 = vmatprep.subr.bf16.mxu0 0
        %1529 = vmatpush1.bf16.msra.mxu0 %v1524
        %1530 = vmatprep.subr.bf16.mxu0 0
        %1531 = vmatpush1.bf16.msra.mxu0 0
        %1532 = vmatprep.subr.bf16.mxu0 0
        %1533 = vmatpush1.bf16.msra.mxu0 0
        %1534 = vmatprep.subr.bf16.mxu0 0
        %1535 = vmatpush1.bf16.msra.mxu0 0
        %1536 = vmatprep.subr.bf16.mxu0 0
        %1537 = vmatpush1.bf16.msra.mxu0 0
        %1538 = vmatprep.subr.bf16.mxu0 0
        %1539 = vmatpush1.bf16.msra.mxu0 0
        %1540 = vmatprep.subr.bf16.mxu0 0
        %1541 = vmatpush1.bf16.msra.mxu0 0
        %1542 = vmatprep.subr.bf16.mxu0 0
        %1543 = vmatpush1.bf16.msra.mxu0 0
        %1544 = vmatprep.subr.bf16.mxu0 0
        %1545 = vmatpush1.bf16.msra.mxu0 0
        %1546 = vmatprep.subr.bf16.mxu0 0
        %1547 = vmatpush1.bf16.msra.mxu0 0
        %1548 = vmatprep.subr.bf16.mxu0 0
        %1549 = vmatpush1.bf16.msra.mxu0 0
        %1550 = vmatprep.subr.bf16.mxu0 0
        %1551 = vmatpush1.bf16.msra.mxu0 0
        %1552 = vmatprep.subr.bf16.mxu0 0
        %1553 = vmatpush1.bf16.msra.mxu0 0
        %1554 = vmatprep.subr.bf16.mxu0 0
        %1555 = vmatpush1.bf16.msra.mxu0 0
        %1556 = vmatprep.subr.bf16.mxu0 0
        %1557 = vmatpush1.bf16.msra.mxu0 0
        %1558 = vmatprep.mubr.bf16.mxu0 0
        %1559 = vmatmul.mubr.bf16.gmra.mrb[0].mxu0 %v795
        %v1560 = vpop.f32.mrb[0].mxu0
        %v1561 = vadd.f32 0.0, %v1560
        %v1562 = vpop.f32.mrb[0].mxu0
        %v1563 = vpop.f32.mrb[0].mxu0
        %v1564 = vadd.f32 0.0, %v1563
        %v1565 = vpop.f32.mrb[0].mxu0
        %1566 = vdwg.mxu0
        %v1567 = vpack.c.bf16 %v1564, %v1561
        %1568 = vst.msk [vmem:[#allocation2 + $0x70] sm:$0xff] %vm843, %v1567
        %v1569 = vld [vmem:[%s757] sm:$0xff]
        %v1570 = vld [vmem:[%s757 + $0x8] sm:$0xff]
        %v1571 = vld [vmem:[%s757 + $0x10] sm:$0xff]
        %v1572 = vpack.c.bf16 %v1570, %v1569
        %v1573 = vpack.c.bf16 %v1571, %v1571
        %v1575 = vsel %vm797, %v1573, 0
        %1577 = vmatprep.subr.bf16.mxu0 0
        %1578 = vmatpush1.bf16.msra.mxu0 %v1572
        %1579 = vmatprep.subr.bf16.mxu0 0
        %1580 = vmatpush1.bf16.msra.mxu0 %v1575
        %1581 = vmatprep.subr.bf16.mxu0 0
        %1582 = vmatpush1.bf16.msra.mxu0 0
        %1583 = vmatprep.subr.bf16.mxu0 0
        %1584 = vmatpush1.bf16.msra.mxu0 0
        %1585 = vmatprep.subr.bf16.mxu0 0
        %1586 = vmatpush1.bf16.msra.mxu0 0
        %1587 = vmatprep.subr.bf16.mxu0 0
        %1588 = vmatpush1.bf16.msra.mxu0 0
        %1589 = vmatprep.subr.bf16.mxu0 0
        %1590 = vmatpush1.bf16.msra.mxu0 0
        %1591 = vmatprep.subr.bf16.mxu0 0
        %1592 = vmatpush1.bf16.msra.mxu0 0
        %1593 = vmatprep.subr.bf16.mxu0 0
        %1594 = vmatpush1.bf16.msra.mxu0 0
        %1595 = vmatprep.subr.bf16.mxu0 0
        %1596 = vmatpush1.bf16.msra.mxu0 0
        %1597 = vmatprep.subr.bf16.mxu0 0
        %1598 = vmatpush1.bf16.msra.mxu0 0
        %1599 = vmatprep.subr.bf16.mxu0 0
        %1600 = vmatpush1.bf16.msra.mxu0 0
        %1601 = vmatprep.subr.bf16.mxu0 0
        %1602 = vmatpush1.bf16.msra.mxu0 0
        %1603 = vmatprep.subr.bf16.mxu0 0
        %1604 = vmatpush1.bf16.msra.mxu0 0
        %1605 = vmatprep.subr.bf16.mxu0 0
        %1606 = vmatpush1.bf16.msra.mxu0 0
        %1607 = vmatprep.subr.bf16.mxu0 0
        %1608 = vmatpush1.bf16.msra.mxu0 0
        %1609 = vmatprep.mubr.bf16.mxu0 0
        %1610 = vmatmul.mubr.bf16.gmra.mrb[0].mxu0 %v795
        %v1611 = vpop.f32.mrb[0].mxu0
        %v1612 = vadd.f32 0.0, %v1611
        %v1613 = vpop.f32.mrb[0].mxu0
        %v1614 = vpop.f32.mrb[0].mxu0
        %v1615 = vadd.f32 0.0, %v1614
        %v1616 = vpop.f32.mrb[0].mxu0
        %1617 = vdwg.mxu0
        %v1618 = vpack.c.bf16 %v1615, %v1612
        %1619 = vst.msk [vmem:[#allocation2 + $0x78] sm:$0xff] %vm843, %v1618
        %s1620 = scalar_lea.vmem %s757, 24
        %v1621 = vld [vmem:[%s1620] sm:$0xff]
        %v1622 = vld [vmem:[%s1620 + $0x8] sm:$0xff]
        %v1623 = vld [vmem:[%s1620 + $0x10] sm:$0xff]
        %v1624 = vpack.c.bf16 %v1622, %v1621
        %v1625 = vpack.c.bf16 %v1623, %v1623
        %v1627 = vsel %vm797, %v1625, 0
        %1629 = vmatprep.subr.bf16.mxu0 0
        %1630 = vmatpush1.bf16.msra.mxu0 %v1624
        %1631 = vmatprep.subr.bf16.mxu0 0
        %1632 = vmatpush1.bf16.msra.mxu0 %v1627
        %1633 = vmatprep.subr.bf16.mxu0 0
        %1634 = vmatpush1.bf16.msra.mxu0 0
        %1635 = vmatprep.subr.bf16.mxu0 0
        %1636 = vmatpush1.bf16.msra.mxu0 0
        %1637 = vmatprep.subr.bf16.mxu0 0
        %1638 = vmatpush1.bf16.msra.mxu0 0
        %1639 = vmatprep.subr.bf16.mxu0 0
        %1640 = vmatpush1.bf16.msra.mxu0 0
        %1641 = vmatprep.subr.bf16.mxu0 0
        %1642 = vmatpush1.bf16.msra.mxu0 0
        %1643 = vmatprep.subr.bf16.mxu0 0
        %1644 = vmatpush1.bf16.msra.mxu0 0
        %1645 = vmatprep.subr.bf16.mxu0 0
        %1646 = vmatpush1.bf16.msra.mxu0 0
        %1647 = vmatprep.subr.bf16.mxu0 0
        %1648 = vmatpush1.bf16.msra.mxu0 0
        %1649 = vmatprep.subr.bf16.mxu0 0
        %1650 = vmatpush1.bf16.msra.mxu0 0
        %1651 = vmatprep.subr.bf16.mxu0 0
        %1652 = vmatpush1.bf16.msra.mxu0 0
        %1653 = vmatprep.subr.bf16.mxu0 0
        %1654 = vmatpush1.bf16.msra.mxu0 0
        %1655 = vmatprep.subr.bf16.mxu0 0
        %1656 = vmatpush1.bf16.msra.mxu0 0
        %1657 = vmatprep.subr.bf16.mxu0 0
        %1658 = vmatpush1.bf16.msra.mxu0 0
        %1659 = vmatprep.subr.bf16.mxu0 0
        %1660 = vmatpush1.bf16.msra.mxu0 0
        %1661 = vmatprep.mubr.bf16.mxu0 0
        %1662 = vmatmul.mubr.bf16.gmra.mrb[0].mxu0 %v795
        %v1663 = vpop.f32.mrb[0].mxu0
        %v1664 = vadd.f32 0.0, %v1663
        %v1665 = vpop.f32.mrb[0].mxu0
        %v1666 = vpop.f32.mrb[0].mxu0
        %v1667 = vadd.f32 0.0, %v1666
        %v1668 = vpop.f32.mrb[0].mxu0
        %1669 = vdwg.mxu0
        %v1670 = vpack.c.bf16 %v1667, %v1664
        %1671 = vst.msk [vmem:[#allocation2 + $0x80] sm:$0xff] %vm843, %v1670
        %s1672 = scalar_lea.vmem %s757, 48
        %v1673 = vld [vmem:[%s1672] sm:$0xff]
        %v1674 = vld [vmem:[%s1672 + $0x8] sm:$0xff]
        %v1675 = vld [vmem:[%s1672 + $0x10] sm:$0xff]
        %v1676 = vpack.c.bf16 %v1674, %v1673
        %v1677 = vpack.c.bf16 %v1675, %v1675
        %v1679 = vsel %vm797, %v1677, 0
        %1681 = vmatprep.subr.bf16.mxu0 0
        %1682 = vmatpush1.bf16.msra.mxu0 %v1676
        %1683 = vmatprep.subr.bf16.mxu0 0
        %1684 = vmatpush1.bf16.msra.mxu0 %v1679
        %1685 = vmatprep.subr.bf16.mxu0 0
        %1686 = vmatpush1.bf16.msra.mxu0 0
        %1687 = vmatprep.subr.bf16.mxu0 0
        %1688 = vmatpush1.bf16.msra.mxu0 0
        %1689 = vmatprep.subr.bf16.mxu0 0
        %1690 = vmatpush1.bf16.msra.mxu0 0
        %1691 = vmatprep.subr.bf16.mxu0 0
        %1692 = vmatpush1.bf16.msra.mxu0 0
        %1693 = vmatprep.subr.bf16.mxu0 0
        %1694 = vmatpush1.bf16.msra.mxu0 0
        %1695 = vmatprep.subr.bf16.mxu0 0
        %1696 = vmatpush1.bf16.msra.mxu0 0
        %1697 = vmatprep.subr.bf16.mxu0 0
        %1698 = vmatpush1.bf16.msra.mxu0 0
        %1699 = vmatprep.subr.bf16.mxu0 0
        %1700 = vmatpush1.bf16.msra.mxu0 0
        %1701 = vmatprep.subr.bf16.mxu0 0
        %1702 = vmatpush1.bf16.msra.mxu0 0
        %1703 = vmatprep.subr.bf16.mxu0 0
        %1704 = vmatpush1.bf16.msra.mxu0 0
        %1705 = vmatprep.subr.bf16.mxu0 0
        %1706 = vmatpush1.bf16.msra.mxu0 0
        %1707 = vmatprep.subr.bf16.mxu0 0
        %1708 = vmatpush1.bf16.msra.mxu0 0
        %1709 = vmatprep.subr.bf16.mxu0 0
        %1710 = vmatpush1.bf16.msra.mxu0 0
        %1711 = vmatprep.subr.bf16.mxu0 0
        %1712 = vmatpush1.bf16.msra.mxu0 0
        %1713 = vmatprep.mubr.bf16.mxu0 0
        %1714 = vmatmul.mubr.bf16.gmra.mrb[0].mxu0 %v795
        %v1715 = vpop.f32.mrb[0].mxu0
        %v1716 = vadd.f32 0.0, %v1715
        %v1717 = vpop.f32.mrb[0].mxu0
        %v1718 = vpop.f32.mrb[0].mxu0
        %v1719 = vadd.f32 0.0, %v1718
        %v1720 = vpop.f32.mrb[0].mxu0
        %1721 = vdwg.mxu0
        %v1722 = vpack.c.bf16 %v1719, %v1716
        %1723 = vst.msk [vmem:[#allocation2 + $0x88] sm:$0xff] %vm843, %v1722
        %v1724 = vld [vmem:[#allocation2] sm:$0xff]
        %v1725 = vld [vmem:[#allocation2 + $0x8] sm:$0xff]
        %v1726 = vld [vmem:[#allocation2 + $0x10] sm:$0xff]
        %v1727 = vld [vmem:[#allocation2 + $0x18] sm:$0xff]
        %v1728 = vld [vmem:[#allocation2 + $0x20] sm:$0xff]
        %v1729 = vld [vmem:[#allocation2 + $0x28] sm:$0xff]
        %v1730 = vld [vmem:[#allocation2 + $0x30] sm:$0xff]
        %v1731 = vld [vmem:[#allocation2 + $0x38] sm:$0xff]
        %v1732 = vld [vmem:[#allocation2 + $0x40] sm:$0xff]
        %v1733 = vld [vmem:[#allocation2 + $0x48] sm:$0xff]
        %v1734 = vld [vmem:[#allocation2 + $0x50] sm:$0xff]
        %v1735 = vld [vmem:[#allocation2 + $0x58] sm:$0xff]
        %v1736 = vld [vmem:[#allocation2 + $0x60] sm:$0xff]
        %v1737 = vld [vmem:[#allocation2 + $0x68] sm:$0xff]
        %v1738 = vld [vmem:[#allocation2 + $0x70] sm:$0xff]
        %v1739 = vld [vmem:[#allocation2 + $0x78] sm:$0xff]
        %v1740 = vld [vmem:[#allocation2 + $0x80] sm:$0xff]
        %v1741 = vld [vmem:[#allocation2 + $0x88] sm:$0xff]
        %v1747 = vunpack.c.l.b16 %v778
        %v1748 = vunpack.c.l.b16 %v779
        %v1749 = vunpack.c.l.b16 %v780
        %v1750 = vunpack.c.l.b16 %v781
        %v1751 = vunpack.c.l.b16 %v782
        %v1752 = vpack.c.b16 %v1748, %v1747
        %v1753 = vpack.c.b16 %v1750, %v1749
        %v1754 = vpack.c.b16 %v1751, %v1751
        %v1758 = vsel %vm843, %v1724, 0
        %v1761 = vsel %vm843, %v1725, 0
        %v1764 = vsel %vm843, %v1726, 0
        %v1767 = vsel %vm843, %v1727, 0
        %v1770 = vsel %vm843, %v1728, 0
        %v1773 = vsel %vm843, %v1729, 0
        %v1776 = vsel %vm843, %v1730, 0
        %v1779 = vsel %vm843, %v1731, 0
        %v1782 = vsel %vm843, %v1732, 0
        %v1785 = vsel %vm843, %v1733, 0
        %v1788 = vsel %vm843, %v1734, 0
        %v1791 = vsel %vm843, %v1735, 0
        %v1794 = vsel %vm843, %v1736, 0
        %v1797 = vsel %vm843, %v1737, 0
        %v1800 = vsel %vm843, %v1738, 0
        %v1803 = vsel %vm843, %v1739, 0
        %v1806 = vsel %vm843, %v1740, 0
        %v1809 = vsel %vm843, %v1741, 0
        %v1812 = vsel %vm797, %v1754, 0
        %1814 = vmatprep.subr.bf16.mxu0 0
        %1815 = vmatpush1.bf16.msra.mxu0 %v1752
        %1816 = vmatprep.subr.bf16.mxu0 0
        %1817 = vmatpush1.bf16.msra.mxu0 %v1753
        %1818 = vmatprep.subr.bf16.mxu0 0
        %1819 = vmatpush1.bf16.msra.mxu0 %v1812
        %1820 = vmatprep.subr.bf16.mxu0 0
        %1821 = vmatpush1.bf16.msra.mxu0 0
        %1822 = vmatprep.subr.bf16.mxu0 0
        %1823 = vmatpush1.bf16.msra.mxu0 0
        %1824 = vmatprep.subr.bf16.mxu0 0
        %1825 = vmatpush1.bf16.msra.mxu0 0
        %1826 = vmatprep.subr.bf16.mxu0 0
        %1827 = vmatpush1.bf16.msra.mxu0 0
        %1828 = vmatprep.subr.bf16.mxu0 0
        %1829 = vmatpush1.bf16.msra.mxu0 0
        %1830 = vmatprep.subr.bf16.mxu0 0
        %1831 = vmatpush1.bf16.msra.mxu0 0
        %1832 = vmatprep.subr.bf16.mxu0 0
        %1833 = vmatpush1.bf16.msra.mxu0 0
        %1834 = vmatprep.subr.bf16.mxu0 0
        %1835 = vmatpush1.bf16.msra.mxu0 0
        %1836 = vmatprep.subr.bf16.mxu0 0
        %1837 = vmatpush1.bf16.msra.mxu0 0
        %1838 = vmatprep.subr.bf16.mxu0 0
        %1839 = vmatpush1.bf16.msra.mxu0 0
        %1840 = vmatprep.subr.bf16.mxu0 0
        %1841 = vmatpush1.bf16.msra.mxu0 0
        %1842 = vmatprep.subr.bf16.mxu0 0
        %1843 = vmatpush1.bf16.msra.mxu0 0
        %1844 = vmatprep.subr.bf16.mxu0 0
        %1845 = vmatpush1.bf16.msra.mxu0 0
        %1846 = vmatprep.mubr.bf16.mxu0 0
        %1847 = vmatmul.mubr.bf16.gmra.mrb[0].mxu0 %v1758
        %v1848 = vpop.f32.mrb[0].mxu0
        %v1849 = vadd.f32 0.0, %v1848
        %v1850 = vpop.f32.mrb[0].mxu0
        %v1851 = vpop.f32.mrb[0].mxu0
        %v1852 = vadd.f32 0.0, %v1851
        %v1853 = vpop.f32.mrb[0].mxu0
        %1854 = vmatprep.mubr.bf16.mxu0 0
        %1855 = vmatmul.mubr.bf16.gmra.mrb[0].mxu0 %v1761
        %v1856 = vpop.f32.mrb[0].mxu0
        %v1857 = vadd.f32 0.0, %v1856
        %v1858 = vpop.f32.mrb[0].mxu0
        %v1859 = vpop.f32.mrb[0].mxu0
        %v1860 = vadd.f32 0.0, %v1859
        %v1861 = vpop.f32.mrb[0].mxu0
        %1862 = vmatprep.mubr.bf16.mxu0 0
        %1863 = vmatmul.mubr.bf16.gmra.mrb[0].mxu0 %v1764
        %v1864 = vpop.f32.mrb[0].mxu0
        %v1865 = vadd.f32 0.0, %v1864
        %v1866 = vpop.f32.mrb[0].mxu0
        %v1867 = vpop.f32.mrb[0].mxu0
        %v1868 = vadd.f32 0.0, %v1867
        %v1869 = vpop.f32.mrb[0].mxu0
        %1870 = vmatprep.mubr.bf16.mxu0 0
        %1871 = vmatmul.mubr.bf16.gmra.mrb[0].mxu0 %v1767
        %v1872 = vpop.f32.mrb[0].mxu0
        %v1873 = vadd.f32 0.0, %v1872
        %v1874 = vpop.f32.mrb[0].mxu0
        %v1875 = vpop.f32.mrb[0].mxu0
        %v1876 = vadd.f32 0.0, %v1875
        %v1877 = vpop.f32.mrb[0].mxu0
        %1878 = vmatprep.mubr.bf16.mxu0 0
        %1879 = vmatmul.mubr.bf16.gmra.mrb[0].mxu0 %v1770
        %v1880 = vpop.f32.mrb[0].mxu0
        %v1881 = vadd.f32 0.0, %v1880
        %v1882 = vpop.f32.mrb[0].mxu0
        %v1883 = vpop.f32.mrb[0].mxu0
        %v1884 = vadd.f32 0.0, %v1883
        %v1885 = vpop.f32.mrb[0].mxu0
        %1886 = vmatprep.mubr.bf16.mxu0 0
        %1887 = vmatmul.mubr.bf16.gmra.mrb[0].mxu0 %v1773
        %v1888 = vpop.f32.mrb[0].mxu0
        %v1889 = vadd.f32 0.0, %v1888
        %v1890 = vpop.f32.mrb[0].mxu0
        %v1891 = vpop.f32.mrb[0].mxu0
        %v1892 = vadd.f32 0.0, %v1891
        %v1893 = vpop.f32.mrb[0].mxu0
        %1894 = vmatprep.mubr.bf16.mxu0 0
        %1895 = vmatmul.mubr.bf16.gmra.mrb[0].mxu0 %v1776
        %v1896 = vpop.f32.mrb[0].mxu0
        %v1897 = vadd.f32 0.0, %v1896
        %v1898 = vpop.f32.mrb[0].mxu0
        %v1899 = vpop.f32.mrb[0].mxu0
        %v1900 = vadd.f32 0.0, %v1899
        %v1901 = vpop.f32.mrb[0].mxu0
        %1902 = vmatprep.mubr.bf16.mxu0 0
        %1903 = vmatmul.mubr.bf16.gmra.mrb[0].mxu0 %v1779
        %v1904 = vpop.f32.mrb[0].mxu0
        %v1905 = vadd.f32 0.0, %v1904
        %v1906 = vpop.f32.mrb[0].mxu0
        %v1907 = vpop.f32.mrb[0].mxu0
        %v1908 = vadd.f32 0.0, %v1907
        %v1909 = vpop.f32.mrb[0].mxu0
        %1910 = vmatprep.mubr.bf16.mxu0 0
        %1911 = vmatmul.mubr.bf16.gmra.mrb[0].mxu0 %v1782
        %v1912 = vpop.f32.mrb[0].mxu0
        %v1913 = vadd.f32 0.0, %v1912
        %v1914 = vpop.f32.mrb[0].mxu0
        %v1915 = vpop.f32.mrb[0].mxu0
        %v1916 = vadd.f32 0.0, %v1915
        %v1917 = vpop.f32.mrb[0].mxu0
        %1918 = vmatprep.mubr.bf16.mxu0 0
        %1919 = vmatmul.mubr.bf16.gmra.mrb[0].mxu0 %v1785
        %v1920 = vpop.f32.mrb[0].mxu0
        %v1921 = vadd.f32 0.0, %v1920
        %v1922 = vpop.f32.mrb[0].mxu0
        %v1923 = vpop.f32.mrb[0].mxu0
        %v1924 = vadd.f32 0.0, %v1923
        %v1925 = vpop.f32.mrb[0].mxu0
        %1926 = vmatprep.mubr.bf16.mxu0 0
        %1927 = vmatmul.mubr.bf16.gmra.mrb[0].mxu0 %v1788
        %v1928 = vpop.f32.mrb[0].mxu0
        %v1929 = vadd.f32 0.0, %v1928
        %v1930 = vpop.f32.mrb[0].mxu0
        %v1931 = vpop.f32.mrb[0].mxu0
        %v1932 = vadd.f32 0.0, %v1931
        %v1933 = vpop.f32.mrb[0].mxu0
        %1934 = vmatprep.mubr.bf16.mxu0 0
        %1935 = vmatmul.mubr.bf16.gmra.mrb[0].mxu0 %v1791
        %v1936 = vpop.f32.mrb[0].mxu0
        %v1937 = vadd.f32 0.0, %v1936
        %v1938 = vpop.f32.mrb[0].mxu0
        %v1939 = vpop.f32.mrb[0].mxu0
        %v1940 = vadd.f32 0.0, %v1939
        %v1941 = vpop.f32.mrb[0].mxu0
        %1942 = vmatprep.mubr.bf16.mxu0 0
        %1943 = vmatmul.mubr.bf16.gmra.mrb[0].mxu0 %v1794
        %v1944 = vpop.f32.mrb[0].mxu0
        %v1945 = vadd.f32 0.0, %v1944
        %v1946 = vpop.f32.mrb[0].mxu0
        %v1947 = vpop.f32.mrb[0].mxu0
        %v1948 = vadd.f32 0.0, %v1947
        %v1949 = vpop.f32.mrb[0].mxu0
        %1950 = vmatprep.mubr.bf16.mxu0 0
        %1951 = vmatmul.mubr.bf16.gmra.mrb[0].mxu0 %v1797
        %v1952 = vpop.f32.mrb[0].mxu0
        %v1953 = vadd.f32 0.0, %v1952
        %v1954 = vpop.f32.mrb[0].mxu0
        %v1955 = vpop.f32.mrb[0].mxu0
        %v1956 = vadd.f32 0.0, %v1955
        %v1957 = vpop.f32.mrb[0].mxu0
        %1958 = vmatprep.mubr.bf16.mxu0 0
        %1959 = vmatmul.mubr.bf16.gmra.mrb[0].mxu0 %v1800
        %v1960 = vpop.f32.mrb[0].mxu0
        %v1961 = vadd.f32 0.0, %v1960
        %v1962 = vpop.f32.mrb[0].mxu0
        %v1963 = vpop.f32.mrb[0].mxu0
        %v1964 = vadd.f32 0.0, %v1963
        %v1965 = vpop.f32.mrb[0].mxu0
        %1966 = vmatprep.mubr.bf16.mxu0 0
        %1967 = vmatmul.mubr.bf16.gmra.mrb[0].mxu0 %v1803
        %v1968 = vpop.f32.mrb[0].mxu0
        %v1969 = vadd.f32 0.0, %v1968
        %v1970 = vpop.f32.mrb[0].mxu0
        %v1971 = vpop.f32.mrb[0].mxu0
        %v1972 = vadd.f32 0.0, %v1971
        %v1973 = vpop.f32.mrb[0].mxu0
        %1974 = vmatprep.mubr.bf16.mxu0 0
        %1975 = vmatmul.mubr.bf16.gmra.mrb[0].mxu0 %v1806
        %v1976 = vpop.f32.mrb[0].mxu0
        %v1977 = vadd.f32 0.0, %v1976
        %v1978 = vpop.f32.mrb[0].mxu0
        %v1979 = vpop.f32.mrb[0].mxu0
        %v1980 = vadd.f32 0.0, %v1979
        %v1981 = vpop.f32.mrb[0].mxu0
        %1982 = vmatprep.mubr.bf16.mxu0 0
        %1983 = vmatmul.mubr.bf16.gmra.mrb[0].mxu0 %v1809
        %v1984 = vpop.f32.mrb[0].mxu0
        %v1985 = vadd.f32 0.0, %v1984
        %v1986 = vpop.f32.mrb[0].mxu0
        %v1987 = vpop.f32.mrb[0].mxu0
        %v1988 = vadd.f32 0.0, %v1987
        %v1989 = vpop.f32.mrb[0].mxu0
        %1990 = vdwg.mxu0
        %s1991 = smul.u32 %s48, 128
        %s1992 = sld [smem:[#allocation4 + %s1991]]
        %s1993 = sadd.s32 %s1991, 1
        %s1994 = sld [smem:[#allocation4 + %s1993]]
        %s1995 = sadd.s32 %s1991, 2
        %s1996 = sld [smem:[#allocation4 + %s1995]]
        %s1997 = sadd.s32 %s1991, 3
        %s1998 = sld [smem:[#allocation4 + %s1997]]
        %s1999 = sadd.s32 %s1991, 4
        %s2000 = sld [smem:[#allocation4 + %s1999]]
        %p2001 = scmp.gt.f32.partialorder %s2000, 0.5
        // Predicated region
        $region53: #{_forward_impl.1} parent=51 // pred_check
          %p2002 = pneg %p2001
        $region54: #{_forward_impl.1} parent=51 // pred_check_branch
          %2004 = sbr.rel (%p2002) target = $region56
        $region55: #{_forward_impl.1} parent=51 // pred_region
          %s2005 = smul.u32 %s49, 3
          %v2006 = vstv %s2005
          %v2007 = vadd.s32 %v2006, 1
          %v2008 = vadd.s32 %v2006, 2
          %vm2009 = vcmp.lt.s32.totalorder %v2006, 0
          %v2010 = vsub.s32 0, %v2006
          %v2011 = vsel %vm2009, %v2010, %v2006
          %v2012 = vmul.u32.u64.compose %v2011, 2863311531
          %v2013 = vextract.low.u32 %v2012
          %v2014 = vextract.high.u32 %v2012
          %v2015 = vshrl.u32 %v2014, 1
          %v2016 = vmul.u32 %v2015, 3
          %v2017 = vsub.s32 %v2011, %v2016
          %v2018 = vsub.s32 0, %v2017
          %v2019 = vsel %vm2009, %v2018, %v2017
          %vm2020 = vcmp.lt.s32.totalorder %v2007, 0
          %v2021 = vsub.s32 0, %v2007
          %v2022 = vsel %vm2020, %v2021, %v2007
          %v2023 = vmul.u32.u64.compose %v2022, 2863311531
          %v2024 = vextract.low.u32 %v2023
          %v2025 = vextract.high.u32 %v2023
          %v2026 = vshrl.u32 %v2025, 1
          %v2027 = vmul.u32 %v2026, 3
          %v2028 = vsub.s32 %v2022, %v2027
          %v2029 = vsub.s32 0, %v2028
          %v2030 = vsel %vm2020, %v2029, %v2028
          %vm2031 = vcmp.lt.s32.totalorder %v2008, 0
          %v2032 = vsub.s32 0, %v2008
          %v2033 = vsel %vm2031, %v2032, %v2008
          %v2034 = vmul.u32.u64.compose %v2033, 2863311531
          %v2035 = vextract.low.u32 %v2034
          %v2036 = vextract.high.u32 %v2034
          %v2037 = vshrl.u32 %v2036, 1
          %v2038 = vmul.u32 %v2037, 3
          %v2039 = vsub.s32 %v2033, %v2038
          %v2040 = vsub.s32 0, %v2039
          %v2041 = vsel %vm2031, %v2040, %v2039
          %vm2042 = vcmp.ne.s32.totalorder %v2019, 0
          %vm2043 = vcmp.ne.s32.totalorder %v2030, 0
          %vm2044 = vcmp.ne.s32.totalorder %v2041, 0
          %vm2045 = vcmp.lt.s32.totalorder %v2019, 0
          %vm2046 = vcmp.lt.s32.totalorder %v2030, 0
          %vm2047 = vcmp.lt.s32.totalorder %v2041, 0
          %vm2048 = vmand %vm2045, %vm2042
          %vm2049 = vmand %vm2046, %vm2043
          %vm2050 = vmand %vm2047, %vm2044
          %v2051 = vadd.s32 %v2019, 3
          %v2052 = vadd.s32 %v2030, 3
          %v2053 = vadd.s32 %v2041, 3
          %v2054 = vsel %vm2048, %v2051, %v2019
          %v2055 = vsel %vm2049, %v2052, %v2030
          %v2056 = vsel %vm2050, %v2053, %v2041
          %vm2057 = vcmp.eq.s32.totalorder %v2054, 0
          %vm2058 = vcmp.eq.s32.totalorder %v2055, 0
          %vm2059 = vcmp.eq.s32.totalorder %v2056, 0
          %vm2060 = vcmp.eq.s32.totalorder %v2054, 1
          %vm2061 = vcmp.eq.s32.totalorder %v2055, 1
          %vm2062 = vcmp.eq.s32.totalorder %v2056, 1
          %v2063 = vstv %s1996
          %v2064 = vstv %s1998
          %v2065 = vsel %vm2060, %v2063, %v2064
          %v2066 = vsel %vm2061, %v2063, %v2064
          %v2067 = vsel %vm2062, %v2063, %v2064
          %v2068 = vstv %s1994
          %v2069 = vsel %vm2057, %v2068, %v2065
          %v2070 = vsel %vm2058, %v2068, %v2066
          %v2071 = vsel %vm2059, %v2068, %v2067
          %vm2072 = vcmp.gt.f32.partialorder %v1849, 0.0
          %vm2073 = vcmp.gt.f32.partialorder %v1852, 0.0
          %vm2074 = vcmp.gt.f32.partialorder %v1857, 0.0
          %vm2075 = vcmp.gt.f32.partialorder %v1860, 0.0
          %vm2076 = vcmp.gt.f32.partialorder %v1865, 0.0
          %vm2077 = vcmp.gt.f32.partialorder %v1868, 0.0
          %vm2078 = vcmp.gt.f32.partialorder %v1873, 0.0
          %vm2079 = vcmp.gt.f32.partialorder %v1876, 0.0
          %vm2080 = vcmp.gt.f32.partialorder %v1881, 0.0
          %vm2081 = vcmp.gt.f32.partialorder %v1884, 0.0
          %vm2082 = vcmp.gt.f32.partialorder %v1889, 0.0
          %vm2083 = vcmp.gt.f32.partialorder %v1892, 0.0
          %vm2084 = vcmp.gt.f32.partialorder %v1897, 0.0
          %vm2085 = vcmp.gt.f32.partialorder %v1900, 0.0
          %vm2086 = vcmp.gt.f32.partialorder %v1905, 0.0
          %vm2087 = vcmp.gt.f32.partialorder %v1908, 0.0
          %vm2088 = vcmp.gt.f32.partialorder %v1913, 0.0
          %vm2089 = vcmp.gt.f32.partialorder %v1916, 0.0
          %vm2090 = vcmp.gt.f32.partialorder %v1921, 0.0
          %vm2091 = vcmp.gt.f32.partialorder %v1924, 0.0
          %vm2092 = vcmp.gt.f32.partialorder %v1929, 0.0
          %vm2093 = vcmp.gt.f32.partialorder %v1932, 0.0
          %vm2094 = vcmp.gt.f32.partialorder %v1937, 0.0
          %vm2095 = vcmp.gt.f32.partialorder %v1940, 0.0
          %vm2096 = vcmp.gt.f32.partialorder %v1945, 0.0
          %vm2097 = vcmp.gt.f32.partialorder %v1948, 0.0
          %vm2098 = vcmp.gt.f32.partialorder %v1953, 0.0
          %vm2099 = vcmp.gt.f32.partialorder %v1956, 0.0
          %vm2100 = vcmp.gt.f32.partialorder %v1961, 0.0
          %vm2101 = vcmp.gt.f32.partialorder %v1964, 0.0
          %vm2102 = vcmp.gt.f32.partialorder %v1969, 0.0
          %vm2103 = vcmp.gt.f32.partialorder %v1972, 0.0
          %vm2104 = vcmp.gt.f32.partialorder %v1977, 0.0
          %vm2105 = vcmp.gt.f32.partialorder %v1980, 0.0
          %vm2106 = vcmp.gt.f32.partialorder %v1985, 0.0
          %vm2107 = vcmp.gt.f32.partialorder %v1988, 0.0
          %v2108 = vmax.f32 %v1849, 1e-30
          %v2109 = vmax.f32 %v1852, 1e-30
          %v2110 = vmax.f32 %v1857, 1e-30
          %v2111 = vmax.f32 %v1860, 1e-30
          %v2112 = vmax.f32 %v1865, 1e-30
          %v2113 = vmax.f32 %v1868, 1e-30
          %v2114 = vmax.f32 %v1873, 1e-30
          %v2115 = vmax.f32 %v1876, 1e-30
          %v2116 = vmax.f32 %v1881, 1e-30
          %v2117 = vmax.f32 %v1884, 1e-30
          %v2118 = vmax.f32 %v1889, 1e-30
          %v2119 = vmax.f32 %v1892, 1e-30
          %v2120 = vmax.f32 %v1897, 1e-30
          %v2121 = vmax.f32 %v1900, 1e-30
          %v2122 = vmax.f32 %v1905, 1e-30
          %v2123 = vmax.f32 %v1908, 1e-30
          %v2124 = vmax.f32 %v1913, 1e-30
          %v2125 = vmax.f32 %v1916, 1e-30
          %v2126 = vmax.f32 %v1921, 1e-30
          %v2127 = vmax.f32 %v1924, 1e-30
          %v2128 = vmax.f32 %v1929, 1e-30
          %v2129 = vmax.f32 %v1932, 1e-30
          %v2130 = vmax.f32 %v1937, 1e-30
          %v2131 = vmax.f32 %v1940, 1e-30
          %v2132 = vmax.f32 %v1945, 1e-30
          %v2133 = vmax.f32 %v1948, 1e-30
          %v2134 = vmax.f32 %v1953, 1e-30
          %v2135 = vmax.f32 %v1956, 1e-30
          %v2136 = vmax.f32 %v1961, 1e-30
          %v2137 = vmax.f32 %v1964, 1e-30
          %v2138 = vmax.f32 %v1969, 1e-30
          %v2139 = vmax.f32 %v1972, 1e-30
          %v2140 = vmax.f32 %v1977, 1e-30
          %v2141 = vmax.f32 %v1980, 1e-30
          %v2142 = vmax.f32 %v1985, 1e-30
          %v2143 = vmax.f32 %v1988, 1e-30
          %v2144 = vlog2.pop %v2108
          %v2145 = vmul.f32 %v2144, 0.6931472
          %v2146 = vlog2.pop %v2109
          %v2147 = vmul.f32 %v2146, 0.6931472
          %v2148 = vlog2.pop %v2110
          %v2149 = vmul.f32 %v2148, 0.6931472
          %v2150 = vlog2.pop %v2111
          %v2151 = vmul.f32 %v2150, 0.6931472
          %v2152 = vlog2.pop %v2112
          %v2153 = vmul.f32 %v2152, 0.6931472
          %v2154 = vlog2.pop %v2113
          %v2155 = vmul.f32 %v2154, 0.6931472
          %v2156 = vlog2.pop %v2114
          %v2157 = vmul.f32 %v2156, 0.6931472
          %v2158 = vlog2.pop %v2115
          %v2159 = vmul.f32 %v2158, 0.6931472
          %v2160 = vlog2.pop %v2116
          %v2161 = vmul.f32 %v2160, 0.6931472
          %v2162 = vlog2.pop %v2117
          %v2163 = vmul.f32 %v2162, 0.6931472
          %v2164 = vlog2.pop %v2118
          %v2165 = vmul.f32 %v2164, 0.6931472
          %v2166 = vlog2.pop %v2119
          %v2167 = vmul.f32 %v2166, 0.6931472
          %v2168 = vlog2.pop %v2120
          %v2169 = vmul.f32 %v2168, 0.6931472
          %v2170 = vlog2.pop %v2121
          %v2171 = vmul.f32 %v2170, 0.6931472
          %v2172 = vlog2.pop %v2122
          %v2173 = vmul.f32 %v2172, 0.6931472
          %v2174 = vlog2.pop %v2123
          %v2175 = vmul.f32 %v2174, 0.6931472
          %v2176 = vlog2.pop %v2124
          %v2177 = vmul.f32 %v2176, 0.6931472
          %v2178 = vlog2.pop %v2125
          %v2179 = vmul.f32 %v2178, 0.6931472
          %v2180 = vlog2.pop %v2126
          %v2181 = vmul.f32 %v2180, 0.6931472
          %v2182 = vlog2.pop %v2127
          %v2183 = vmul.f32 %v2182, 0.6931472
          %v2184 = vlog2.pop %v2128
          %v2185 = vmul.f32 %v2184, 0.6931472
          %v2186 = vlog2.pop %v2129
          %v2187 = vmul.f32 %v2186, 0.6931472
          %v2188 = vlog2.pop %v2130
          %v2189 = vmul.f32 %v2188, 0.6931472
          %v2190 = vlog2.pop %v2131
          %v2191 = vmul.f32 %v2190, 0.6931472
          %v2192 = vlog2.pop %v2132
          %v2193 = vmul.f32 %v2192, 0.6931472
          %v2194 = vlog2.pop %v2133
          %v2195 = vmul.f32 %v2194, 0.6931472
          %v2196 = vlog2.pop %v2134
          %v2197 = vmul.f32 %v2196, 0.6931472
          %v2198 = vlog2.pop %v2135
          %v2199 = vmul.f32 %v2198, 0.6931472
          %v2200 = vlog2.pop %v2136
          %v2201 = vmul.f32 %v2200, 0.6931472
          %v2202 = vlog2.pop %v2137
          %v2203 = vmul.f32 %v2202, 0.6931472
          %v2204 = vlog2.pop %v2138
          %v2205 = vmul.f32 %v2204, 0.6931472
          %v2206 = vlog2.pop %v2139
          %v2207 = vmul.f32 %v2206, 0.6931472
          %v2208 = vlog2.pop %v2140
          %v2209 = vmul.f32 %v2208, 0.6931472
          %v2210 = vlog2.pop %v2141
          %v2211 = vmul.f32 %v2210, 0.6931472
          %v2212 = vlog2.pop %v2142
          %v2213 = vmul.f32 %v2212, 0.6931472
          %v2214 = vlog2.pop %v2143
          %v2215 = vmul.f32 %v2214, 0.6931472
          %v2216 = vstv %s1992
          %v2217 = vmul.f32 %v2216, %v2145
          %v2218 = vmul.f32 %v2216, %v2147
          %v2219 = vmul.f32 %v2216, %v2149
          %v2220 = vmul.f32 %v2216, %v2151
          %v2221 = vmul.f32 %v2216, %v2153
          %v2222 = vmul.f32 %v2216, %v2155
          %v2223 = vmul.f32 %v2216, %v2157
          %v2224 = vmul.f32 %v2216, %v2159
          %v2225 = vmul.f32 %v2216, %v2161
          %v2226 = vmul.f32 %v2216, %v2163
          %v2227 = vmul.f32 %v2216, %v2165
          %v2228 = vmul.f32 %v2216, %v2167
          %v2229 = vmul.f32 %v2216, %v2169
          %v2230 = vmul.f32 %v2216, %v2171
          %v2231 = vmul.f32 %v2216, %v2173
          %v2232 = vmul.f32 %v2216, %v2175
          %v2233 = vmul.f32 %v2216, %v2177
          %v2234 = vmul.f32 %v2216, %v2179
          %v2235 = vmul.f32 %v2216, %v2181
          %v2236 = vmul.f32 %v2216, %v2183
          %v2237 = vmul.f32 %v2216, %v2185
          %v2238 = vmul.f32 %v2216, %v2187
          %v2239 = vmul.f32 %v2216, %v2189
          %v2240 = vmul.f32 %v2216, %v2191
          %v2241 = vmul.f32 %v2216, %v2193
          %v2242 = vmul.f32 %v2216, %v2195
          %v2243 = vmul.f32 %v2216, %v2197
          %v2244 = vmul.f32 %v2216, %v2199
          %v2245 = vmul.f32 %v2216, %v2201
          %v2246 = vmul.f32 %v2216, %v2203
          %v2247 = vmul.f32 %v2216, %v2205
          %v2248 = vmul.f32 %v2216, %v2207
          %v2249 = vmul.f32 %v2216, %v2209
          %v2250 = vmul.f32 %v2216, %v2211
          %v2251 = vmul.f32 %v2216, %v2213
          %v2252 = vmul.f32 %v2216, %v2215
          %v2253 = vmul.f32 %v2217, 1.442695
          %v2254 = vpow.pop %v2253
          %v2255 = vmul.f32 %v2218, 1.442695
          %v2256 = vpow.pop %v2255
          %v2257 = vmul.f32 %v2219, 1.442695
          %v2258 = vpow.pop %v2257
          %v2259 = vmul.f32 %v2220, 1.442695
          %v2260 = vpow.pop %v2259
          %v2261 = vmul.f32 %v2221, 1.442695
          %v2262 = vpow.pop %v2261
          %v2263 = vmul.f32 %v2222, 1.442695
          %v2264 = vpow.pop %v2263
          %v2265 = vmul.f32 %v2223, 1.442695
          %v2266 = vpow.pop %v2265
          %v2267 = vmul.f32 %v2224, 1.442695
          %v2268 = vpow.pop %v2267
          %v2269 = vmul.f32 %v2225, 1.442695
          %v2270 = vpow.pop %v2269
          %v2271 = vmul.f32 %v2226, 1.442695
          %v2272 = vpow.pop %v2271
          %v2273 = vmul.f32 %v2227, 1.442695
          %v2274 = vpow.pop %v2273
          %v2275 = vmul.f32 %v2228, 1.442695
          %v2276 = vpow.pop %v2275
          %v2277 = vmul.f32 %v2229, 1.442695
          %v2278 = vpow.pop %v2277
          %v2279 = vmul.f32 %v2230, 1.442695
          %v2280 = vpow.pop %v2279
          %v2281 = vmul.f32 %v2231, 1.442695
          %v2282 = vpow.pop %v2281
          %v2283 = vmul.f32 %v2232, 1.442695
          %v2284 = vpow.pop %v2283
          %v2285 = vmul.f32 %v2233, 1.442695
          %v2286 = vpow.pop %v2285
          %v2287 = vmul.f32 %v2234, 1.442695
          %v2288 = vpow.pop %v2287
          %v2289 = vmul.f32 %v2235, 1.442695
          %v2290 = vpow.pop %v2289
          %v2291 = vmul.f32 %v2236, 1.442695
          %v2292 = vpow.pop %v2291
          %v2293 = vmul.f32 %v2237, 1.442695
          %v2294 = vpow.pop %v2293
          %v2295 = vmul.f32 %v2238, 1.442695
          %v2296 = vpow.pop %v2295
          %v2297 = vmul.f32 %v2239, 1.442695
          %v2298 = vpow.pop %v2297
          %v2299 = vmul.f32 %v2240, 1.442695
          %v2300 = vpow.pop %v2299
          %v2301 = vmul.f32 %v2241, 1.442695
          %v2302 = vpow.pop %v2301
          %v2303 = vmul.f32 %v2242, 1.442695
          %v2304 = vpow.pop %v2303
          %v2305 = vmul.f32 %v2243, 1.442695
          %v2306 = vpow.pop %v2305
          %v2307 = vmul.f32 %v2244, 1.442695
          %v2308 = vpow.pop %v2307
          %v2309 = vmul.f32 %v2245, 1.442695
          %v2310 = vpow.pop %v2309
          %v2311 = vmul.f32 %v2246, 1.442695
          %v2312 = vpow.pop %v2311
          %v2313 = vmul.f32 %v2247, 1.442695
          %v2314 = vpow.pop %v2313
          %v2315 = vmul.f32 %v2248, 1.442695
          %v2316 = vpow.pop %v2315
          %v2317 = vmul.f32 %v2249, 1.442695
          %v2318 = vpow.pop %v2317
          %v2319 = vmul.f32 %v2250, 1.442695
          %v2320 = vpow.pop %v2319
          %v2321 = vmul.f32 %v2251, 1.442695
          %v2322 = vpow.pop %v2321
          %v2323 = vmul.f32 %v2252, 1.442695
          %v2324 = vpow.pop %v2323
          %v2325 = vsel %vm2072, %v2254, 0.0
          %v2326 = vsel %vm2073, %v2256, 0.0
          %v2327 = vsel %vm2074, %v2258, 0.0
          %v2328 = vsel %vm2075, %v2260, 0.0
          %v2329 = vsel %vm2076, %v2262, 0.0
          %v2330 = vsel %vm2077, %v2264, 0.0
          %v2331 = vsel %vm2078, %v2266, 0.0
          %v2332 = vsel %vm2079, %v2268, 0.0
          %v2333 = vsel %vm2080, %v2270, 0.0
          %v2334 = vsel %vm2081, %v2272, 0.0
          %v2335 = vsel %vm2082, %v2274, 0.0
          %v2336 = vsel %vm2083, %v2276, 0.0
          %v2337 = vsel %vm2084, %v2278, 0.0
          %v2338 = vsel %vm2085, %v2280, 0.0
          %v2339 = vsel %vm2086, %v2282, 0.0
          %v2340 = vsel %vm2087, %v2284, 0.0
          %v2341 = vsel %vm2088, %v2286, 0.0
          %v2342 = vsel %vm2089, %v2288, 0.0
          %v2343 = vsel %vm2090, %v2290, 0.0
          %v2344 = vsel %vm2091, %v2292, 0.0
          %v2345 = vsel %vm2092, %v2294, 0.0
          %v2346 = vsel %vm2093, %v2296, 0.0
          %v2347 = vsel %vm2094, %v2298, 0.0
          %v2348 = vsel %vm2095, %v2300, 0.0
          %v2349 = vsel %vm2096, %v2302, 0.0
          %v2350 = vsel %vm2097, %v2304, 0.0
          %v2351 = vsel %vm2098, %v2306, 0.0
          %v2352 = vsel %vm2099, %v2308, 0.0
          %v2353 = vsel %vm2100, %v2310, 0.0
          %v2354 = vsel %vm2101, %v2312, 0.0
          %v2355 = vsel %vm2102, %v2314, 0.0
          %v2356 = vsel %vm2103, %v2316, 0.0
          %v2357 = vsel %vm2104, %v2318, 0.0
          %v2358 = vsel %vm2105, %v2320, 0.0
          %v2359 = vsel %vm2106, %v2322, 0.0
          %v2360 = vsel %vm2107, %v2324, 0.0
          %v2361 = vmul.f32 %v2325, %v2069
          %v2362 = vmul.f32 %v2326, %v2069
          %v2363 = vmul.f32 %v2327, %v2070
          %v2364 = vmul.f32 %v2328, %v2070
          %v2365 = vmul.f32 %v2329, %v2071
          %v2366 = vmul.f32 %v2330, %v2071
          %v2367 = vmul.f32 %v2331, %v2069
          %v2368 = vmul.f32 %v2332, %v2069
          %v2369 = vmul.f32 %v2333, %v2070
          %v2370 = vmul.f32 %v2334, %v2070
          %v2371 = vmul.f32 %v2335, %v2071
          %v2372 = vmul.f32 %v2336, %v2071
          %v2373 = vmul.f32 %v2337, %v2069
          %v2374 = vmul.f32 %v2338, %v2069
          %v2375 = vmul.f32 %v2339, %v2070
          %v2376 = vmul.f32 %v2340, %v2070
          %v2377 = vmul.f32 %v2341, %v2071
          %v2378 = vmul.f32 %v2342, %v2071
          %v2379 = vmul.f32 %v2343, %v2069
          %v2380 = vmul.f32 %v2344, %v2069
          %v2381 = vmul.f32 %v2345, %v2070
          %v2382 = vmul.f32 %v2346, %v2070
          %v2383 = vmul.f32 %v2347, %v2071
          %v2384 = vmul.f32 %v2348, %v2071
          %v2385 = vmul.f32 %v2349, %v2069
          %v2386 = vmul.f32 %v2350, %v2069
          %v2387 = vmul.f32 %v2351, %v2070
          %v2388 = vmul.f32 %v2352, %v2070
          %v2389 = vmul.f32 %v2353, %v2071
          %v2390 = vmul.f32 %v2354, %v2071
          %v2391 = vmul.f32 %v2355, %v2069
          %v2392 = vmul.f32 %v2356, %v2069
          %v2393 = vmul.f32 %v2357, %v2070
          %v2394 = vmul.f32 %v2358, %v2070
          %v2395 = vmul.f32 %v2359, %v2071
          %v2396 = vmul.f32 %v2360, %v2071
          %v2397 = vmax.f32 %v2361, 0.0
          %v2398 = vmax.f32 %v2362, 0.0
          %v2399 = vmax.f32 %v2363, 0.0
          %v2400 = vmax.f32 %v2364, 0.0
          %v2401 = vmax.f32 %v2365, 0.0
          %v2402 = vmax.f32 %v2366, 0.0
          %v2403 = vmax.f32 %v2367, 0.0
          %v2404 = vmax.f32 %v2368, 0.0
          %v2405 = vmax.f32 %v2369, 0.0
          %v2406 = vmax.f32 %v2370, 0.0
          %v2407 = vmax.f32 %v2371, 0.0
          %v2408 = vmax.f32 %v2372, 0.0
          %v2409 = vmax.f32 %v2373, 0.0
          %v2410 = vmax.f32 %v2374, 0.0
          %v2411 = vmax.f32 %v2375, 0.0
          %v2412 = vmax.f32 %v2376, 0.0
          %v2413 = vmax.f32 %v2377, 0.0
          %v2414 = vmax.f32 %v2378, 0.0
          %v2415 = vmax.f32 %v2379, 0.0
          %v2416 = vmax.f32 %v2380, 0.0
          %v2417 = vmax.f32 %v2381, 0.0
          %v2418 = vmax.f32 %v2382, 0.0
          %v2419 = vmax.f32 %v2383, 0.0
          %v2420 = vmax.f32 %v2384, 0.0
          %v2421 = vmax.f32 %v2385, 0.0
          %v2422 = vmax.f32 %v2386, 0.0
          %v2423 = vmax.f32 %v2387, 0.0
          %v2424 = vmax.f32 %v2388, 0.0
          %v2425 = vmax.f32 %v2389, 0.0
          %v2426 = vmax.f32 %v2390, 0.0
          %v2427 = vmax.f32 %v2391, 0.0
          %v2428 = vmax.f32 %v2392, 0.0
          %v2429 = vmax.f32 %v2393, 0.0
          %v2430 = vmax.f32 %v2394, 0.0
          %v2431 = vmax.f32 %v2395, 0.0
          %v2432 = vmax.f32 %v2396, 0.0
          %v2433 = vmin.f32 %v2397, 1.0
          %v2434 = vmin.f32 %v2398, 1.0
          %v2435 = vmin.f32 %v2399, 1.0
          %v2436 = vmin.f32 %v2400, 1.0
          %v2437 = vmin.f32 %v2401, 1.0
          %v2438 = vmin.f32 %v2402, 1.0
          %v2439 = vmin.f32 %v2403, 1.0
          %v2440 = vmin.f32 %v2404, 1.0
          %v2441 = vmin.f32 %v2405, 1.0
          %v2442 = vmin.f32 %v2406, 1.0
          %v2443 = vmin.f32 %v2407, 1.0
          %v2444 = vmin.f32 %v2408, 1.0
          %v2445 = vmin.f32 %v2409, 1.0
          %v2446 = vmin.f32 %v2410, 1.0
          %v2447 = vmin.f32 %v2411, 1.0
          %v2448 = vmin.f32 %v2412, 1.0
          %v2449 = vmin.f32 %v2413, 1.0
          %v2450 = vmin.f32 %v2414, 1.0
          %v2451 = vmin.f32 %v2415, 1.0
          %v2452 = vmin.f32 %v2416, 1.0
          %v2453 = vmin.f32 %v2417, 1.0
          %v2454 = vmin.f32 %v2418, 1.0
          %v2455 = vmin.f32 %v2419, 1.0
          %v2456 = vmin.f32 %v2420, 1.0
          %v2457 = vmin.f32 %v2421, 1.0
          %v2458 = vmin.f32 %v2422, 1.0
          %v2459 = vmin.f32 %v2423, 1.0
          %v2460 = vmin.f32 %v2424, 1.0
          %v2461 = vmin.f32 %v2425, 1.0
          %v2462 = vmin.f32 %v2426, 1.0
          %v2463 = vmin.f32 %v2427, 1.0
          %v2464 = vmin.f32 %v2428, 1.0
          %v2465 = vmin.f32 %v2429, 1.0
          %v2466 = vmin.f32 %v2430, 1.0
          %v2467 = vmin.f32 %v2431, 1.0
          %v2468 = vmin.f32 %v2432, 1.0
          %vm2469 = vcmask 261120
          %2470 = vst.msk [vmem:[%s657] sm:$0xff] %vm2469, %v2433
          %2471 = vst.msk [vmem:[%s657 + $0x8] sm:$0xff] %vm2469, %v2434
          %2472 = vst.msk [vmem:[%s657 + $0x10] sm:$0xff] %vm2469, %v2435
          %2473 = vst.msk [vmem:[%s657 + $0x18] sm:$0xff] %vm2469, %v2436
          %2474 = vst.msk [vmem:[%s657 + $0x20] sm:$0xff] %vm2469, %v2437
          %2475 = vst.msk [vmem:[%s657 + $0x28] sm:$0xff] %vm2469, %v2438
          %2476 = vst.msk [vmem:[%s664] sm:$0xff] %vm2469, %v2439
          %2477 = vst.msk [vmem:[%s664 + $0x8] sm:$0xff] %vm2469, %v2440
          %2478 = vst.msk [vmem:[%s664 + $0x10] sm:$0xff] %vm2469, %v2441
          %2479 = vst.msk [vmem:[%s664 + $0x18] sm:$0xff] %vm2469, %v2442
          %2480 = vst.msk [vmem:[%s664 + $0x20] sm:$0xff] %vm2469, %v2443
          %2481 = vst.msk [vmem:[%s664 + $0x28] sm:$0xff] %vm2469, %v2444
          %2482 = vst.msk [vmem:[%s671] sm:$0xff] %vm2469, %v2445
          %2483 = vst.msk [vmem:[%s671 + $0x8] sm:$0xff] %vm2469, %v2446
          %2484 = vst.msk [vmem:[%s671 + $0x10] sm:$0xff] %vm2469, %v2447
          %2485 = vst.msk [vmem:[%s671 + $0x18] sm:$0xff] %vm2469, %v2448
          %2486 = vst.msk [vmem:[%s671 + $0x20] sm:$0xff] %vm2469, %v2449
          %2487 = vst.msk [vmem:[%s671 + $0x28] sm:$0xff] %vm2469, %v2450
          %2488 = vst.msk [vmem:[%s678] sm:$0xff] %vm2469, %v2451
          %2489 = vst.msk [vmem:[%s678 + $0x8] sm:$0xff] %vm2469, %v2452
          %2490 = vst.msk [vmem:[%s678 + $0x10] sm:$0xff] %vm2469, %v2453
          %2491 = vst.msk [vmem:[%s678 + $0x18] sm:$0xff] %vm2469, %v2454
          %2492 = vst.msk [vmem:[%s678 + $0x20] sm:$0xff] %vm2469, %v2455
          %2493 = vst.msk [vmem:[%s678 + $0x28] sm:$0xff] %vm2469, %v2456
          %2494 = vst.msk [vmem:[%s685] sm:$0xff] %vm2469, %v2457
          %2495 = vst.msk [vmem:[%s685 + $0x8] sm:$0xff] %vm2469, %v2458
          %2496 = vst.msk [vmem:[%s685 + $0x10] sm:$0xff] %vm2469, %v2459
          %2497 = vst.msk [vmem:[%s685 + $0x18] sm:$0xff] %vm2469, %v2460
          %2498 = vst.msk [vmem:[%s685 + $0x20] sm:$0xff] %vm2469, %v2461
          %2499 = vst.msk [vmem:[%s685 + $0x28] sm:$0xff] %vm2469, %v2462
          %2500 = vst.msk [vmem:[%s692] sm:$0xff] %vm2469, %v2463
          %2501 = vst.msk [vmem:[%s692 + $0x8] sm:$0xff] %vm2469, %v2464
          %2502 = vst.msk [vmem:[%s692 + $0x10] sm:$0xff] %vm2469, %v2465
          %2503 = vst.msk [vmem:[%s692 + $0x18] sm:$0xff] %vm2469, %v2466
          %2504 = vst.msk [vmem:[%s692 + $0x20] sm:$0xff] %vm2469, %v2467
          %2505 = vst.msk [vmem:[%s692 + $0x28] sm:$0xff] %vm2469, %v2468
        $region56: #{_forward_impl.1} parent=51 // pred_fallthru
          _
        %p2506 = scmp.le.f32.partialorder %s2000, 0.5
        // Predicated region
        $region57: #{_forward_impl.1} parent=51 // pred_check
          %p2507 = pneg %p2506
        $region58: #{_forward_impl.1} parent=51 // pred_check_branch
          %2509 = sbr.rel (%p2507) target = $region60
        $region59: #{_forward_impl.1} parent=51 // pred_region
          %vm2510 = vcmask 261120
          %2511 = vst.msk [vmem:[%s657] sm:$0xff] %vm2510, %v1849
          %2512 = vst.msk [vmem:[%s657 + $0x8] sm:$0xff] %vm2510, %v1852
          %2513 = vst.msk [vmem:[%s657 + $0x10] sm:$0xff] %vm2510, %v1857
          %2514 = vst.msk [vmem:[%s657 + $0x18] sm:$0xff] %vm2510, %v1860
          %2515 = vst.msk [vmem:[%s657 + $0x20] sm:$0xff] %vm2510, %v1865
          %2516 = vst.msk [vmem:[%s657 + $0x28] sm:$0xff] %vm2510, %v1868
          %2517 = vst.msk [vmem:[%s664] sm:$0xff] %vm2510, %v1873
          %2518 = vst.msk [vmem:[%s664 + $0x8] sm:$0xff] %vm2510, %v1876
          %2519 = vst.msk [vmem:[%s664 + $0x10] sm:$0xff] %vm2510, %v1881
          %2520 = vst.msk [vmem:[%s664 + $0x18] sm:$0xff] %vm2510, %v1884
          %2521 = vst.msk [vmem:[%s664 + $0x20] sm:$0xff] %vm2510, %v1889
          %2522 = vst.msk [vmem:[%s664 + $0x28] sm:$0xff] %vm2510, %v1892
          %2523 = vst.msk [vmem:[%s671] sm:$0xff] %vm2510, %v1897
          %2524 = vst.msk [vmem:[%s671 + $0x8] sm:$0xff] %vm2510, %v1900
          %2525 = vst.msk [vmem:[%s671 + $0x10] sm:$0xff] %vm2510, %v1905
          %2526 = vst.msk [vmem:[%s671 + $0x18] sm:$0xff] %vm2510, %v1908
          %2527 = vst.msk [vmem:[%s671 + $0x20] sm:$0xff] %vm2510, %v1913
          %2528 = vst.msk [vmem:[%s671 + $0x28] sm:$0xff] %vm2510, %v1916
          %2529 = vst.msk [vmem:[%s678] sm:$0xff] %vm2510, %v1921
          %2530 = vst.msk [vmem:[%s678 + $0x8] sm:$0xff] %vm2510, %v1924
          %2531 = vst.msk [vmem:[%s678 + $0x10] sm:$0xff] %vm2510, %v1929
          %2532 = vst.msk [vmem:[%s678 + $0x18] sm:$0xff] %vm2510, %v1932
          %2533 = vst.msk [vmem:[%s678 + $0x20] sm:$0xff] %vm2510, %v1937
          %2534 = vst.msk [vmem:[%s678 + $0x28] sm:$0xff] %vm2510, %v1940
          %2535 = vst.msk [vmem:[%s685] sm:$0xff] %vm2510, %v1945
          %2536 = vst.msk [vmem:[%s685 + $0x8] sm:$0xff] %vm2510, %v1948
          %2537 = vst.msk [vmem:[%s685 + $0x10] sm:$0xff] %vm2510, %v1953
          %2538 = vst.msk [vmem:[%s685 + $0x18] sm:$0xff] %vm2510, %v1956
          %2539 = vst.msk [vmem:[%s685 + $0x20] sm:$0xff] %vm2510, %v1961
          %2540 = vst.msk [vmem:[%s685 + $0x28] sm:$0xff] %vm2510, %v1964
          %2541 = vst.msk [vmem:[%s692] sm:$0xff] %vm2510, %v1969
          %2542 = vst.msk [vmem:[%s692 + $0x8] sm:$0xff] %vm2510, %v1972
          %2543 = vst.msk [vmem:[%s692 + $0x10] sm:$0xff] %vm2510, %v1977
          %2544 = vst.msk [vmem:[%s692 + $0x18] sm:$0xff] %vm2510, %v1980
          %2545 = vst.msk [vmem:[%s692 + $0x20] sm:$0xff] %vm2510, %v1985
          %2546 = vst.msk [vmem:[%s692 + $0x28] sm:$0xff] %vm2510, %v1988
        $region60: #{_forward_impl.1} parent=51 // pred_fallthru
          _
        %s2547 = sand.u32 %s286, 1
        %s2548 = scalar_lea.sflag [#allocation6], %s2547
        %s2549 = sand.u32 %s286, 1
        %s2550 = smul.addr %s2549, 48
        %s2551 = scalar_lea.vmem [#allocation5], %s2550
        %s2552 = sand.u32 %s44, 1
        %s2553 = scalar_lea.sflag [#allocation8], %s2552
        %s2554 = sand.u32 %s314, 1
        %s2555 = smul.addr %s2554, 48
        %s2556 = scalar_lea.vmem [#allocation7], %s2555
        %s2557 = sand.u32 %s44, 1
        %s2558 = scalar_lea.sflag [#allocation8], %s2557
        %s2559 = sand.u32 %s342, 1
        %s2560 = smul.addr %s2559, 48
        %s2561 = scalar_lea.vmem [#allocation9], %s2560
        %s2562 = sand.u32 %s44, 1
        %s2563 = scalar_lea.sflag [#allocation11], %s2562
        %s2564 = sand.u32 %s370, 1
        %s2565 = smul.addr %s2564, 48
        %s2566 = scalar_lea.vmem [#allocation10], %s2565
        %s2567 = sand.u32 %s44, 1
        %s2568 = scalar_lea.sflag [#allocation11], %s2567
        %s2569 = sand.u32 %s398, 1
        %s2570 = smul.addr %s2569, 48
        %s2571 = scalar_lea.vmem [#allocation12], %s2570
        %s2572 = sand.u32 %s426, 1
        %s2573 = scalar_lea.sflag [#allocation14], %s2572
        %s2574 = sand.u32 %s426, 1
        %s2575 = smul.addr %s2574, 48
        %s2576 = scalar_lea.vmem [#allocation13], %s2575
        // Predicated region
        $region61: #{_forward_impl.1} parent=51 // pred_check
          %p2577 = pneg %p296
        $region62: #{_forward_impl.1} parent=51 // pred_check_branch
          %2579 = sbr.rel (%p2577) target = $region64
        $region63: #{_forward_impl.1} parent=51 // pred_region
          %s2580 = smul.u32 3, %s49
          %s2582 = ssub.s32 768, 768
          %2583 = vsyncadd %s2548, %s2582
          %s2584 = smul.addr %s2580, 2
          %s2585 = smul.addr %s48, 6
          %s2586 = sadd.s32 %s2584, %s2585
          %s2587 = smul.addr %s2586, 128
          %s2588 = scalar_lea.hbm %s9, %s2587
          %s2589 = sshll.u32 %s2551, 4
          %s2590 = int_to_ptr.vmem [resolvable:$true] %s2589
          %2595 = dma.vmem_to_hbm [thread:$0]  %s2590, 768, %s2588, %s2548, 128, 128, 8
        $region64: #{_forward_impl.1} parent=51 // pred_fallthru
          _
        // Predicated region
        $region65: #{_forward_impl.1} parent=51 // pred_check
          %p2596 = pneg %p324
        $region66: #{_forward_impl.1} parent=51 // pred_check_branch
          %2598 = sbr.rel (%p2596) target = $region68
        $region67: #{_forward_impl.1} parent=51 // pred_region
          %s2599 = smul.u32 3, %s49
          %s2601 = ssub.s32 768, 768
          %2602 = vsyncadd %s2553, %s2601
          %s2603 = smul.addr %s2599, 2
          %s2604 = smul.addr %s48, 6
          %s2605 = sadd.s32 %s2603, %s2604
          %s2606 = smul.addr %s2605, 128
          %s2607 = scalar_lea.hbm %s10, %s2606
          %s2608 = sshll.u32 %s2556, 4
          %s2609 = int_to_ptr.vmem [resolvable:$true] %s2608
          %2614 = dma.vmem_to_hbm [thread:$0]  %s2609, 768, %s2607, %s2553, 128, 128, 8
        $region68: #{_forward_impl.1} parent=51 // pred_fallthru
          _
        // Predicated region
        $region69: #{_forward_impl.1} parent=51 // pred_check
          %p2615 = pneg %p352
        $region70: #{_forward_impl.1} parent=51 // pred_check_branch
          %2617 = sbr.rel (%p2615) target = $region72
        $region71: #{_forward_impl.1} parent=51 // pred_region
          %s2618 = smul.u32 3, %s49
          %s2620 = ssub.s32 768, 768
          %2621 = vsyncadd %s2558, %s2620
          %s2622 = smul.addr %s2618, 2
          %s2623 = smul.addr %s48, 6
          %s2624 = sadd.s32 %s2622, %s2623
          %s2625 = smul.addr %s2624, 128
          %s2626 = scalar_lea.hbm %s11, %s2625
          %s2627 = sshll.u32 %s2561, 4
          %s2628 = int_to_ptr.vmem [resolvable:$true] %s2627
          %2633 = dma.vmem_to_hbm [thread:$0]  %s2628, 768, %s2626, %s2558, 128, 128, 8
        $region72: #{_forward_impl.1} parent=51 // pred_fallthru
          _
        // Predicated region
        $region73: #{_forward_impl.1} parent=51 // pred_check
          %p2634 = pneg %p380
        $region74: #{_forward_impl.1} parent=51 // pred_check_branch
          %2636 = sbr.rel (%p2634) target = $region76
        $region75: #{_forward_impl.1} parent=51 // pred_region
          %s2637 = smul.u32 3, %s49
          %s2639 = ssub.s32 768, 768
          %2640 = vsyncadd %s2563, %s2639
          %s2641 = smul.addr %s2637, 2
          %s2642 = smul.addr %s48, 6
          %s2643 = sadd.s32 %s2641, %s2642
          %s2644 = smul.addr %s2643, 128
          %s2645 = scalar_lea.hbm %s12, %s2644
          %s2646 = sshll.u32 %s2566, 4
          %s2647 = int_to_ptr.vmem [resolvable:$true] %s2646
          %2652 = dma.vmem_to_hbm [thread:$0]  %s2647, 768, %s2645, %s2563, 128, 128, 8
        $region76: #{_forward_impl.1} parent=51 // pred_fallthru
          _
        // Predicated region
        $region77: #{_forward_impl.1} parent=51 // pred_check
          %p2653 = pneg %p408
        $region78: #{_forward_impl.1} parent=51 // pred_check_branch
          %2655 = sbr.rel (%p2653) target = $region80
        $region79: #{_forward_impl.1} parent=51 // pred_region
          %s2656 = smul.u32 3, %s49
          %s2658 = ssub.s32 768, 768
          %2659 = vsyncadd %s2568, %s2658
          %s2660 = smul.addr %s2656, 2
          %s2661 = smul.addr %s48, 6
          %s2662 = sadd.s32 %s2660, %s2661
          %s2663 = smul.addr %s2662, 128
          %s2664 = scalar_lea.hbm %s13, %s2663
          %s2665 = sshll.u32 %s2571, 4
          %s2666 = int_to_ptr.vmem [resolvable:$true] %s2665
          %2671 = dma.vmem_to_hbm [thread:$0]  %s2666, 768, %s2664, %s2568, 128, 128, 8
        $region80: #{_forward_impl.1} parent=51 // pred_fallthru
          _
        // Predicated region
        $region81: #{_forward_impl.1} parent=51 // pred_check
          %p2672 = pneg %p436
        $region82: #{_forward_impl.1} parent=51 // pred_check_branch
          %2674 = sbr.rel (%p2672) target = $region84
        $region83: #{_forward_impl.1} parent=51 // pred_region
          %s2675 = smul.u32 3, %s49
          %s2677 = ssub.s32 768, 768
          %2678 = vsyncadd %s2573, %s2677
          %s2679 = smul.addr %s2675, 2
          %s2680 = smul.addr %s48, 6
          %s2681 = sadd.s32 %s2679, %s2680
          %s2682 = smul.addr %s2681, 128
          %s2683 = scalar_lea.hbm %s14, %s2682
          %s2684 = sshll.u32 %s2576, 4
          %s2685 = int_to_ptr.vmem [resolvable:$true] %s2684
          %2690 = dma.vmem_to_hbm [thread:$0]  %s2685, 768, %s2683, %s2573, 128, 128, 8
        $region84: #{_forward_impl.1} parent=51 // pred_fallthru
          _
      $region52: #{_forward_impl.1} parent=5 // pred_fallthru
        _
      %p2691 = scmp.le.s32.totalorder 2, %s39
      // Predicated region
      $region85: #{_forward_impl.1} parent=5 // pred_check
        %p2692 = pneg %p2691
      $region86: #{_forward_impl.1} parent=5 // pred_check_branch
        %2694 = sbr.rel (%p2692) target = $region88
      $region87: #{_forward_impl.1} parent=5 // pred_region
        %s2695 = ssub.s32 %s39, 2
        // Predicated region
        $region89: #{_forward_impl.1} parent=87 // pred_check
          %p2696 = pneg %p302
        $region90: #{_forward_impl.1} parent=87 // pred_check_branch
          %2698 = sbr.rel (%p2696) target = $region92
        $region91: #{_forward_impl.1} parent=87 // pred_region
          %s2699 = sand.u32 %s287, 1
          %s2700 = scalar_lea.sflag [#allocation6], %s2699
          %s2701 = sand.u32 %s287, 1
          %s2702 = smul.addr %s2701, 48
          %s2703 = scalar_lea.vmem [#allocation5], %s2702
          %2704 = dma.done %s2700, 768
        $region92: #{_forward_impl.1} parent=87 // pred_fallthru
          _
        // Predicated region
        $region93: #{_forward_impl.1} parent=87 // pred_check
          %p2705 = pneg %p330
        $region94: #{_forward_impl.1} parent=87 // pred_check_branch
          %2707 = sbr.rel (%p2705) target = $region96
        $region95: #{_forward_impl.1} parent=87 // pred_region
          %s2708 = sand.u32 %s45, 1
          %s2709 = scalar_lea.sflag [#allocation8], %s2708
          %s2710 = sand.u32 %s315, 1
          %s2711 = smul.addr %s2710, 48
          %s2712 = scalar_lea.vmem [#allocation7], %s2711
          %2713 = dma.done %s2709, 768
        $region96: #{_forward_impl.1} parent=87 // pred_fallthru
          _
        // Predicated region
        $region97: #{_forward_impl.1} parent=87 // pred_check
          %p2714 = pneg %p358
        $region98: #{_forward_impl.1} parent=87 // pred_check_branch
          %2716 = sbr.rel (%p2714) target = $region100
        $region99: #{_forward_impl.1} parent=87 // pred_region
          %s2717 = sand.u32 %s45, 1
          %s2718 = scalar_lea.sflag [#allocation8], %s2717
          %s2719 = sand.u32 %s343, 1
          %s2720 = smul.addr %s2719, 48
          %s2721 = scalar_lea.vmem [#allocation9], %s2720
          %2722 = dma.done %s2718, 768
        $region100: #{_forward_impl.1} parent=87 // pred_fallthru
          _
        // Predicated region
        $region101: #{_forward_impl.1} parent=87 // pred_check
          %p2723 = pneg %p386
        $region102: #{_forward_impl.1} parent=87 // pred_check_branch
          %2725 = sbr.rel (%p2723) target = $region104
        $region103: #{_forward_impl.1} parent=87 // pred_region
          %s2726 = sand.u32 %s45, 1
          %s2727 = scalar_lea.sflag [#allocation11], %s2726
          %s2728 = sand.u32 %s371, 1
          %s2729 = smul.addr %s2728, 48
          %s2730 = scalar_lea.vmem [#allocation10], %s2729
          %2731 = dma.done %s2727, 768
        $region104: #{_forward_impl.1} parent=87 // pred_fallthru
          _
        // Predicated region
        $region105: #{_forward_impl.1} parent=87 // pred_check
          %p2732 = pneg %p414
        $region106: #{_forward_impl.1} parent=87 // pred_check_branch
          %2734 = sbr.rel (%p2732) target = $region108
        $region107: #{_forward_impl.1} parent=87 // pred_region
          %s2735 = sand.u32 %s45, 1
          %s2736 = scalar_lea.sflag [#allocation11], %s2735
          %s2737 = sand.u32 %s399, 1
          %s2738 = smul.addr %s2737, 48
          %s2739 = scalar_lea.vmem [#allocation12], %s2738
          %2740 = dma.done %s2736, 768
        $region108: #{_forward_impl.1} parent=87 // pred_fallthru
          _
        // Predicated region
        $region109: #{_forward_impl.1} parent=87 // pred_check
          %p2741 = pneg %p442
        $region110: #{_forward_impl.1} parent=87 // pred_check_branch
          %2743 = sbr.rel (%p2741) target = $region112
        $region111: #{_forward_impl.1} parent=87 // pred_region
          %s2744 = sand.u32 %s427, 1
          %s2745 = scalar_lea.sflag [#allocation14], %s2744
          %s2746 = sand.u32 %s427, 1
          %s2747 = smul.addr %s2746, 48
          %s2748 = scalar_lea.vmem [#allocation13], %s2747
          %2749 = dma.done %s2745, 768
        $region112: #{_forward_impl.1} parent=87 // pred_fallthru
          _
      $region88: #{_forward_impl.1} parent=5 // pred_fallthru
        _
    $region6: #{_forward_impl.1} parent=1 // loop_footer
      %s43 = sadd.s32 1, %s39
    $region7: #{_forward_impl.1} parent=1 // loop_footer_branch
      %38 = sbr.rel target = $region3
    $region8: #{_forward_impl.1} parent=1 // loop_exit
      _
    %2750 = vsyncpa [#allocation6], 1
    %s2751 = scalar_lea.sflag [#allocation6], 1
    %2752 = vsyncpa %s2751, 1
    %2753 = vsyncpa [#allocation8], 1
    %s2754 = scalar_lea.sflag [#allocation8], 1
    %2755 = vsyncpa %s2754, 1
    %2756 = vsyncpa [#allocation11], 1
    %s2757 = scalar_lea.sflag [#allocation11], 1
    %2758 = vsyncpa %s2757, 1
    %2759 = vsyncpa [#allocation14], 1
    %s2760 = scalar_lea.sflag [#allocation14], 1
    %2761 = vsyncpa %s2760, 1

</llo_original>
